<compile_context>
chip_gen: v7x
topology: tpu7x:2x2x1
jax: 0.10.0
libtpu: 0.0.40
codegen_flags: <defaults>
</compile_context>

<pallas_src>
import numpy as np
import jax
import jax.numpy as jnp
from jax.experimental import pallas as pl
from jax.experimental.pallas import tpu as pltpu

LANE = 128  # TPU vreg lane width; all layer dims here are <= 128.


# ----------------------------------------------------------------------------
# Layer-size bookkeeping (replicates AutoCompleteVAE.__init__)
# ----------------------------------------------------------------------------
def build_vae_spec(indim=80, width=10, n_depth=4, n_multiples=0):
    outdim = indim
    zdim = int(indim / width)
    zlist = [int(v) for v in np.linspace(indim, zdim, n_depth + 1).astype(int)]
    spec = []
    for li in range(n_depth):
        dnow, dnext = zlist[li], zlist[li + 1]
        spec.append((dnow, dnext))
        if li != n_depth - 1:
            for _ in range(n_multiples):
                spec.append((dnext, dnext))
    # encoder: Linear(d1, d2) + LeakyReLU for every entry in spec
    enc = [(d1, d2) for (d1, d2) in spec]
    z_final = zlist[-1]
    # decoder: Linear(d1, d2') with LeakyReLU on all but the last
    dec = []
    rev = spec[::-1]
    for si, (d2, d1) in enumerate(rev):
        d2o = outdim if si == len(rev) - 1 else d2
        dec.append((d1, d2o, si != len(rev) - 1))
    return enc, z_final, dec


# ----------------------------------------------------------------------------
# Parameter init (nn.Linear default: uniform +-1/sqrt(fan_in)); W stored
# pre-transposed as (in_dim, out_dim) so the kernel computes h @ W + b.
# ----------------------------------------------------------------------------
def init_params(enc, z_final, dec, key):
    def linear(k, d_in, d_out):
        kw, kb = jax.random.split(k)
        bound = 1.0 / np.sqrt(d_in)
        w = jax.random.uniform(kw, (d_in, d_out), jnp.float32, -bound, bound)
        b = jax.random.uniform(kb, (1, d_out), jnp.float32, -bound, bound)
        return w, b

    params = {"enc": [], "dec": []}
    for (d1, d2) in enc:
        key, k = jax.random.split(key)
        params["enc"].append(linear(k, d1, d2))
    key, k = jax.random.split(key)
    params["mean"] = linear(k, z_final, z_final)
    key, k = jax.random.split(key)
    params["logvar"] = linear(k, z_final, z_final)
    for (d1, d2, _) in dec:
        key, k = jax.random.split(key)
        params["dec"].append(linear(k, d1, d2))
    return params


def _pad_to(a, rows, cols):
    r, c = a.shape
    return jnp.pad(a, ((0, rows - r), (0, cols - c)))


def pack_params(params):
    """Zero-pad every weight to (128, 128) bf16 and every bias to (1, 128) f32."""
    ordered = (list(params["enc"]) + [params["mean"], params["logvar"]]
               + list(params["dec"]))
    flat = []
    for (w, b) in ordered:
        flat.append(_pad_to(w, LANE, LANE).astype(jnp.bfloat16))
        flat.append(_pad_to(b, 1, LANE).astype(jnp.float32))
    return flat


# ----------------------------------------------------------------------------
# Kernel
# ----------------------------------------------------------------------------
def _make_vae_kernel(n_enc, dec_nonlin, neg_slope=0.01):
    def kernel(x_ref, eps_ref, *refs):
        recon_ref, mean_ref, logvar_ref = refs[-3:]
        prefs = refs[:-3]

        def linear(h, li):
            w = prefs[2 * li][...]       # (128, 128) bf16, resident in VMEM
            b = prefs[2 * li + 1][...]   # (1, 128)   f32
            return jnp.dot(h.astype(jnp.bfloat16), w,
                           preferred_element_type=jnp.float32) + b

        def lrelu(h):
            return jnp.where(h > 0, h, jnp.float32(neg_slope) * h)

        h = x_ref[...]                   # (TB, 128) f32, lane-dense
        li = 0
        for _ in range(n_enc):           # encoder: Linear + LeakyReLU
            h = lrelu(linear(h, li))
            li += 1
        mean = linear(h, li); li += 1    # mean_layer
        logvar = linear(h, li); li += 1  # logvar_layer
        # reparameterize: z = mean + eps * exp(0.5 * logvar)   (EUP exp, f32)
        z = mean + eps_ref[...] * jnp.exp(jnp.float32(0.5) * logvar)
        h = z
        for nl in dec_nonlin:            # decoder: LeakyReLU on all but last
            h = linear(h, li); li += 1
            if nl:
                h = lrelu(h)
        recon_ref[...] = h.astype(recon_ref.dtype)
        mean_ref[...] = mean.astype(mean_ref.dtype)
        logvar_ref[...] = logvar.astype(logvar_ref.dtype)

    return kernel


def _round_up(x, m):
    return (x + m - 1) // m * m


def autocomplete_vae_forward(x, eps, params, enc, z_final, dec, *,
                             block_batch=1024):
    B, indim = x.shape
    outdim = dec[-1][1]
    n_enc = len(enc)
    dec_nonlin = tuple(nl for (_, _, nl) in dec)

    flat_params = pack_params(params)

    # Lane-pad features to 128; batch-pad to a multiple of the batch tile.
    TB = min(_round_up(block_batch, 8), _round_up(B, 8))
    Bp = _round_up(B, TB)
    xp = jnp.pad(x, ((0, Bp - B), (0, LANE - indim)))
    epsp = jnp.pad(eps, ((0, Bp - B), (0, LANE - eps.shape[1])))

    act_spec = pl.BlockSpec((TB, LANE), lambda i: (i, 0))
    in_specs = [act_spec, act_spec]
    for p in flat_params:
        in_specs.append(pl.BlockSpec(p.shape, lambda i: (0, 0)))  # resident
    out_specs = (act_spec, act_spec, act_spec)
    out_shape = tuple(jax.ShapeDtypeStruct((Bp, LANE), jnp.float32)
                      for _ in range(3))

    kernel = _make_vae_kernel(n_enc, dec_nonlin)

    recon, mean, logvar = pl.pallas_call(
        kernel,
        out_shape=out_shape,
        grid=(Bp // TB,),
        in_specs=in_specs,
        out_specs=out_specs,
        compiler_params=pltpu.CompilerParams(
            dimension_semantics=("parallel",),
        ),
    )(xp, epsp, *flat_params)

    return recon[:B, :outdim], mean[:B, :z_final], logvar[:B, :z_final]


# ----------------------------------------------------------------------------
# Pure-JAX reference (bf16 matmul operands, f32 accumulation, same as kernel)
# ----------------------------------------------------------------------------
def vae_reference(x, eps, params, dec, *, bf16_matmul=True):
    def linear(h, w, b):
        if bf16_matmul:
            return jnp.dot(h.astype(jnp.bfloat16), w.astype(jnp.bfloat16),
                           preferred_element_type=jnp.float32) + b
        return h @ w + b

    def lrelu(h):
        return jnp.where(h > 0, h, 0.01 * h)

    h = x
    for (w, b) in params["enc"]:
        h = lrelu(linear(h, w, b))
    mean = linear(h, *params["mean"])
    logvar = linear(h, *params["logvar"])
    z = mean + eps * jnp.exp(0.5 * logvar)
    h = z
    for (w, b), (_, _, nl) in zip(params["dec"], dec):
        h = linear(h, w, b)
        if nl:
            h = lrelu(h)
    return h, mean, logvar


if __name__ == "__main__":
    # Module defaults: indim=80, width=10, n_depth=4, n_multiples=0
    INDIM, WIDTH, NDEPTH, NMULT = 80, 10, 4, 0
    BATCH = 256

    enc, z_final, dec = build_vae_spec(INDIM, WIDTH, NDEPTH, NMULT)
    # encoder: 80->62->44->26->8 (LeakyReLU after each); mean/logvar: 8->8;
    # decoder: 8->26->44->62 (LeakyReLU) -> 80 (no nonlin)

    key = jax.random.PRNGKey(0)
    key, kx, ke = jax.random.split(key, 3)
    params = init_params(enc, z_final, dec, key)
    x = jax.random.normal(kx, (BATCH, INDIM), jnp.float32)
    eps = jax.random.normal(ke, (BATCH, z_final), jnp.float32)  # torch.randn_like

    recon, mean, logvar = autocomplete_vae_forward(
        x, eps, params, enc, z_final, dec, block_batch=128)
    recon, mean, logvar = jax.block_until_ready((recon, mean, logvar))

    r_ref, m_ref, lv_ref = vae_reference(x, eps, params, dec, bf16_matmul=True)
    np.testing.assert_allclose(np.asarray(mean), np.asarray(m_ref),
                               rtol=1e-2, atol=1e-2)
    np.testing.assert_allclose(np.asarray(logvar), np.asarray(lv_ref),
                               rtol=1e-2, atol=1e-2)
    np.testing.assert_allclose(np.asarray(recon), np.asarray(r_ref),
                               rtol=1e-2, atol=1e-2)

    print("KERNEL_OK")
</pallas_src>

<mosaic_0001>
module attributes {stable_mosaic.version = 11 : i64} {
  func.func @kernel(%arg0: i32, %arg1: memref<128x128xf32, #tpu.memory_space<vmem>>, %arg2: memref<128x128xf32, #tpu.memory_space<vmem>>, %arg3: memref<128x128xbf16, #tpu.memory_space<vmem>>, %arg4: memref<1x128xf32, #tpu.memory_space<vmem>>, %arg5: memref<128x128xbf16, #tpu.memory_space<vmem>>, %arg6: memref<1x128xf32, #tpu.memory_space<vmem>>, %arg7: memref<128x128xbf16, #tpu.memory_space<vmem>>, %arg8: memref<1x128xf32, #tpu.memory_space<vmem>>, %arg9: memref<128x128xbf16, #tpu.memory_space<vmem>>, %arg10: memref<1x128xf32, #tpu.memory_space<vmem>>, %arg11: memref<128x128xbf16, #tpu.memory_space<vmem>>, %arg12: memref<1x128xf32, #tpu.memory_space<vmem>>, %arg13: memref<128x128xbf16, #tpu.memory_space<vmem>>, %arg14: memref<1x128xf32, #tpu.memory_space<vmem>>, %arg15: memref<128x128xbf16, #tpu.memory_space<vmem>>, %arg16: memref<1x128xf32, #tpu.memory_space<vmem>>, %arg17: memref<128x128xbf16, #tpu.memory_space<vmem>>, %arg18: memref<1x128xf32, #tpu.memory_space<vmem>>, %arg19: memref<128x128xbf16, #tpu.memory_space<vmem>>, %arg20: memref<1x128xf32, #tpu.memory_space<vmem>>, %arg21: memref<128x128xbf16, #tpu.memory_space<vmem>>, %arg22: memref<1x128xf32, #tpu.memory_space<vmem>>, %arg23: memref<128x128xf32, #tpu.memory_space<vmem>>, %arg24: memref<128x128xf32, #tpu.memory_space<vmem>>, %arg25: memref<128x128xf32, #tpu.memory_space<vmem>>) attributes {dimension_semantics = [#tpu.dimension_semantics<parallel>], iteration_bounds = array<i64: 2>, scalar_prefetch = 0 : i64, scratch_operands = 0 : i64, tpu.core_type = #tpu.core_type<tc>, window_params = [{transform_indices = @transform_0, window_bounds = array<i64: 128, 128>}, {transform_indices = @transform_1, window_bounds = array<i64: 128, 128>}, {pipeline_mode = #tpu.pipeline_mode<synchronous>, transform_indices = @transform_2, window_bounds = array<i64: 128, 128>}, {pipeline_mode = #tpu.pipeline_mode<synchronous>, transform_indices = @transform_3, window_bounds = array<i64: 1, 128>}, {pipeline_mode = #tpu.pipeline_mode<synchronous>, transform_indices = @transform_4, window_bounds = array<i64: 128, 128>}, {pipeline_mode = #tpu.pipeline_mode<synchronous>, transform_indices = @transform_5, window_bounds = array<i64: 1, 128>}, {pipeline_mode = #tpu.pipeline_mode<synchronous>, transform_indices = @transform_6, window_bounds = array<i64: 128, 128>}, {pipeline_mode = #tpu.pipeline_mode<synchronous>, transform_indices = @transform_7, window_bounds = array<i64: 1, 128>}, {pipeline_mode = #tpu.pipeline_mode<synchronous>, transform_indices = @transform_8, window_bounds = array<i64: 128, 128>}, {pipeline_mode = #tpu.pipeline_mode<synchronous>, transform_indices = @transform_9, window_bounds = array<i64: 1, 128>}, {pipeline_mode = #tpu.pipeline_mode<synchronous>, transform_indices = @transform_10, window_bounds = array<i64: 128, 128>}, {pipeline_mode = #tpu.pipeline_mode<synchronous>, transform_indices = @transform_11, window_bounds = array<i64: 1, 128>}, {pipeline_mode = #tpu.pipeline_mode<synchronous>, transform_indices = @transform_12, window_bounds = array<i64: 128, 128>}, {pipeline_mode = #tpu.pipeline_mode<synchronous>, transform_indices = @transform_13, window_bounds = array<i64: 1, 128>}, {pipeline_mode = #tpu.pipeline_mode<synchronous>, transform_indices = @transform_14, window_bounds = array<i64: 128, 128>}, {pipeline_mode = #tpu.pipeline_mode<synchronous>, transform_indices = @transform_15, window_bounds = array<i64: 1, 128>}, {pipeline_mode = #tpu.pipeline_mode<synchronous>, transform_indices = @transform_16, window_bounds = array<i64: 128, 128>}, {pipeline_mode = #tpu.pipeline_mode<synchronous>, transform_indices = @transform_17, window_bounds = array<i64: 1, 128>}, {pipeline_mode = #tpu.pipeline_mode<synchronous>, transform_indices = @transform_18, window_bounds = array<i64: 128, 128>}, {pipeline_mode = #tpu.pipeline_mode<synchronous>, transform_indices = @transform_19, window_bounds = array<i64: 1, 128>}, {pipeline_mode = #tpu.pipeline_mode<synchronous>, transform_indices = @transform_20, window_bounds = array<i64: 128, 128>}, {pipeline_mode = #tpu.pipeline_mode<synchronous>, transform_indices = @transform_21, window_bounds = array<i64: 1, 128>}, {transform_indices = @transform_22, window_bounds = array<i64: 128, 128>}, {transform_indices = @transform_23, window_bounds = array<i64: 128, 128>}, {transform_indices = @transform_24, window_bounds = array<i64: 128, 128>}]} {
    %c0 = arith.constant 0 : index
    %c0_0 = arith.constant 0 : index
    %0 = vector.load %arg1[%c0, %c0_0] : memref<128x128xf32, #tpu.memory_space<vmem>>, vector<128x128xf32>
    %c0_1 = arith.constant 0 : index
    %c0_2 = arith.constant 0 : index
    %1 = vector.load %arg3[%c0_1, %c0_2] : memref<128x128xbf16, #tpu.memory_space<vmem>>, vector<128x128xbf16>
    %c0_3 = arith.constant 0 : index
    %c0_4 = arith.constant 0 : index
    %2 = vector.load %arg4[%c0_3, %c0_4] : memref<1x128xf32, #tpu.memory_space<vmem>>, vector<1x128xf32>
    %3 = arith.truncf %0 : vector<128x128xf32> to vector<128x128xbf16>
    %cst = arith.constant dense<0.000000e+00> : vector<128x128xf32>
    %4 = tpu.matmul %3, %1, %cst {dimension_numbers = #tpu.dot_dimension_numbers<[1], [0], [0], [1], [0, 0, 1, 1], [], []>} : vector<128x128xbf16>, vector<128x128xbf16>, vector<128x128xf32> -> vector<128x128xf32>
    %5 = vector.broadcast %2 : vector<1x128xf32> to vector<128x128xf32>
    %6 = arith.addf %4, %5 : vector<128x128xf32>
    %cst_5 = arith.constant 0.000000e+00 : f32
    %7 = vector.broadcast %cst_5 : f32 to vector<128x128xf32>
    %8 = arith.cmpf ogt, %6, %7 : vector<128x128xf32>
    %cst_6 = arith.constant 0.00999999977 : f32
    %9 = vector.broadcast %cst_6 : f32 to vector<128x128xf32>
    %10 = arith.mulf %9, %6 : vector<128x128xf32>
    %11 = arith.select %8, %6, %10 : vector<128x128xi1>, vector<128x128xf32>
    %c0_7 = arith.constant 0 : index
    %c0_8 = arith.constant 0 : index
    %12 = vector.load %arg5[%c0_7, %c0_8] : memref<128x128xbf16, #tpu.memory_space<vmem>>, vector<128x128xbf16>
    %c0_9 = arith.constant 0 : index
    %c0_10 = arith.constant 0 : index
    %13 = vector.load %arg6[%c0_9, %c0_10] : memref<1x128xf32, #tpu.memory_space<vmem>>, vector<1x128xf32>
    %14 = arith.truncf %11 : vector<128x128xf32> to vector<128x128xbf16>
    %cst_11 = arith.constant dense<0.000000e+00> : vector<128x128xf32>
    %15 = tpu.matmul %14, %12, %cst_11 {dimension_numbers = #tpu.dot_dimension_numbers<[1], [0], [0], [1], [0, 0, 1, 1], [], []>} : vector<128x128xbf16>, vector<128x128xbf16>, vector<128x128xf32> -> vector<128x128xf32>
    %16 = vector.broadcast %13 : vector<1x128xf32> to vector<128x128xf32>
    %17 = arith.addf %15, %16 : vector<128x128xf32>
    %cst_12 = arith.constant 0.000000e+00 : f32
    %18 = vector.broadcast %cst_12 : f32 to vector<128x128xf32>
    %19 = arith.cmpf ogt, %17, %18 : vector<128x128xf32>
    %cst_13 = arith.constant 0.00999999977 : f32
    %20 = vector.broadcast %cst_13 : f32 to vector<128x128xf32>
    %21 = arith.mulf %20, %17 : vector<128x128xf32>
    %22 = arith.select %19, %17, %21 : vector<128x128xi1>, vector<128x128xf32>
    %c0_14 = arith.constant 0 : index
    %c0_15 = arith.constant 0 : index
    %23 = vector.load %arg7[%c0_14, %c0_15] : memref<128x128xbf16, #tpu.memory_space<vmem>>, vector<128x128xbf16>
    %c0_16 = arith.constant 0 : index
    %c0_17 = arith.constant 0 : index
    %24 = vector.load %arg8[%c0_16, %c0_17] : memref<1x128xf32, #tpu.memory_space<vmem>>, vector<1x128xf32>
    %25 = arith.truncf %22 : vector<128x128xf32> to vector<128x128xbf16>
    %cst_18 = arith.constant dense<0.000000e+00> : vector<128x128xf32>
    %26 = tpu.matmul %25, %23, %cst_18 {dimension_numbers = #tpu.dot_dimension_numbers<[1], [0], [0], [1], [0, 0, 1, 1], [], []>} : vector<128x128xbf16>, vector<128x128xbf16>, vector<128x128xf32> -> vector<128x128xf32>
    %27 = vector.broadcast %24 : vector<1x128xf32> to vector<128x128xf32>
    %28 = arith.addf %26, %27 : vector<128x128xf32>
    %cst_19 = arith.constant 0.000000e+00 : f32
    %29 = vector.broadcast %cst_19 : f32 to vector<128x128xf32>
    %30 = arith.cmpf ogt, %28, %29 : vector<128x128xf32>
    %cst_20 = arith.constant 0.00999999977 : f32
    %31 = vector.broadcast %cst_20 : f32 to vector<128x128xf32>
    %32 = arith.mulf %31, %28 : vector<128x128xf32>
    %33 = arith.select %30, %28, %32 : vector<128x128xi1>, vector<128x128xf32>
    %c0_21 = arith.constant 0 : index
    %c0_22 = arith.constant 0 : index
    %34 = vector.load %arg9[%c0_21, %c0_22] : memref<128x128xbf16, #tpu.memory_space<vmem>>, vector<128x128xbf16>
    %c0_23 = arith.constant 0 : index
    %c0_24 = arith.constant 0 : index
    %35 = vector.load %arg10[%c0_23, %c0_24] : memref<1x128xf32, #tpu.memory_space<vmem>>, vector<1x128xf32>
    %36 = arith.truncf %33 : vector<128x128xf32> to vector<128x128xbf16>
    %cst_25 = arith.constant dense<0.000000e+00> : vector<128x128xf32>
    %37 = tpu.matmul %36, %34, %cst_25 {dimension_numbers = #tpu.dot_dimension_numbers<[1], [0], [0], [1], [0, 0, 1, 1], [], []>} : vector<128x128xbf16>, vector<128x128xbf16>, vector<128x128xf32> -> vector<128x128xf32>
    %38 = vector.broadcast %35 : vector<1x128xf32> to vector<128x128xf32>
    %39 = arith.addf %37, %38 : vector<128x128xf32>
    %cst_26 = arith.constant 0.000000e+00 : f32
    %40 = vector.broadcast %cst_26 : f32 to vector<128x128xf32>
    %41 = arith.cmpf ogt, %39, %40 : vector<128x128xf32>
    %cst_27 = arith.constant 0.00999999977 : f32
    %42 = vector.broadcast %cst_27 : f32 to vector<128x128xf32>
    %43 = arith.mulf %42, %39 : vector<128x128xf32>
    %44 = arith.select %41, %39, %43 : vector<128x128xi1>, vector<128x128xf32>
    %c0_28 = arith.constant 0 : index
    %c0_29 = arith.constant 0 : index
    %45 = vector.load %arg11[%c0_28, %c0_29] : memref<128x128xbf16, #tpu.memory_space<vmem>>, vector<128x128xbf16>
    %c0_30 = arith.constant 0 : index
    %c0_31 = arith.constant 0 : index
    %46 = vector.load %arg12[%c0_30, %c0_31] : memref<1x128xf32, #tpu.memory_space<vmem>>, vector<1x128xf32>
    %47 = arith.truncf %44 : vector<128x128xf32> to vector<128x128xbf16>
    %cst_32 = arith.constant dense<0.000000e+00> : vector<128x128xf32>
    %48 = tpu.matmul %47, %45, %cst_32 {dimension_numbers = #tpu.dot_dimension_numbers<[1], [0], [0], [1], [0, 0, 1, 1], [], []>} : vector<128x128xbf16>, vector<128x128xbf16>, vector<128x128xf32> -> vector<128x128xf32>
    %49 = vector.broadcast %46 : vector<1x128xf32> to vector<128x128xf32>
    %50 = arith.addf %48, %49 : vector<128x128xf32>
    %c0_33 = arith.constant 0 : index
    %c0_34 = arith.constant 0 : index
    %51 = vector.load %arg13[%c0_33, %c0_34] : memref<128x128xbf16, #tpu.memory_space<vmem>>, vector<128x128xbf16>
    %c0_35 = arith.constant 0 : index
    %c0_36 = arith.constant 0 : index
    %52 = vector.load %arg14[%c0_35, %c0_36] : memref<1x128xf32, #tpu.memory_space<vmem>>, vector<1x128xf32>
    %53 = arith.truncf %44 : vector<128x128xf32> to vector<128x128xbf16>
    %cst_37 = arith.constant dense<0.000000e+00> : vector<128x128xf32>
    %54 = tpu.matmul %53, %51, %cst_37 {dimension_numbers = #tpu.dot_dimension_numbers<[1], [0], [0], [1], [0, 0, 1, 1], [], []>} : vector<128x128xbf16>, vector<128x128xbf16>, vector<128x128xf32> -> vector<128x128xf32>
    %55 = vector.broadcast %52 : vector<1x128xf32> to vector<128x128xf32>
    %56 = arith.addf %54, %55 : vector<128x128xf32>
    %c0_38 = arith.constant 0 : index
    %c0_39 = arith.constant 0 : index
    %57 = vector.load %arg2[%c0_38, %c0_39] : memref<128x128xf32, #tpu.memory_space<vmem>>, vector<128x128xf32>
    %cst_40 = arith.constant 5.000000e-01 : f32
    %58 = vector.broadcast %cst_40 : f32 to vector<128x128xf32>
    %59 = arith.mulf %58, %56 : vector<128x128xf32>
    %60 = math.exp %59 : vector<128x128xf32>
    %61 = arith.mulf %57, %60 : vector<128x128xf32>
    %62 = arith.addf %50, %61 : vector<128x128xf32>
    %c0_41 = arith.constant 0 : index
    %c0_42 = arith.constant 0 : index
    %63 = vector.load %arg15[%c0_41, %c0_42] : memref<128x128xbf16, #tpu.memory_space<vmem>>, vector<128x128xbf16>
    %c0_43 = arith.constant 0 : index
    %c0_44 = arith.constant 0 : index
    %64 = vector.load %arg16[%c0_43, %c0_44] : memref<1x128xf32, #tpu.memory_space<vmem>>, vector<1x128xf32>
    %65 = arith.truncf %62 : vector<128x128xf32> to vector<128x128xbf16>
    %cst_45 = arith.constant dense<0.000000e+00> : vector<128x128xf32>
    %66 = tpu.matmul %65, %63, %cst_45 {dimension_numbers = #tpu.dot_dimension_numbers<[1], [0], [0], [1], [0, 0, 1, 1], [], []>} : vector<128x128xbf16>, vector<128x128xbf16>, vector<128x128xf32> -> vector<128x128xf32>
    %67 = vector.broadcast %64 : vector<1x128xf32> to vector<128x128xf32>
    %68 = arith.addf %66, %67 : vector<128x128xf32>
    %cst_46 = arith.constant 0.000000e+00 : f32
    %69 = vector.broadcast %cst_46 : f32 to vector<128x128xf32>
    %70 = arith.cmpf ogt, %68, %69 : vector<128x128xf32>
    %cst_47 = arith.constant 0.00999999977 : f32
    %71 = vector.broadcast %cst_47 : f32 to vector<128x128xf32>
    %72 = arith.mulf %71, %68 : vector<128x128xf32>
    %73 = arith.select %70, %68, %72 : vector<128x128xi1>, vector<128x128xf32>
    %c0_48 = arith.constant 0 : index
    %c0_49 = arith.constant 0 : index
    %74 = vector.load %arg17[%c0_48, %c0_49] : memref<128x128xbf16, #tpu.memory_space<vmem>>, vector<128x128xbf16>
    %c0_50 = arith.constant 0 : index
    %c0_51 = arith.constant 0 : index
    %75 = vector.load %arg18[%c0_50, %c0_51] : memref<1x128xf32, #tpu.memory_space<vmem>>, vector<1x128xf32>
    %76 = arith.truncf %73 : vector<128x128xf32> to vector<128x128xbf16>
    %cst_52 = arith.constant dense<0.000000e+00> : vector<128x128xf32>
    %77 = tpu.matmul %76, %74, %cst_52 {dimension_numbers = #tpu.dot_dimension_numbers<[1], [0], [0], [1], [0, 0, 1, 1], [], []>} : vector<128x128xbf16>, vector<128x128xbf16>, vector<128x128xf32> -> vector<128x128xf32>
    %78 = vector.broadcast %75 : vector<1x128xf32> to vector<128x128xf32>
    %79 = arith.addf %77, %78 : vector<128x128xf32>
    %cst_53 = arith.constant 0.000000e+00 : f32
    %80 = vector.broadcast %cst_53 : f32 to vector<128x128xf32>
    %81 = arith.cmpf ogt, %79, %80 : vector<128x128xf32>
    %cst_54 = arith.constant 0.00999999977 : f32
    %82 = vector.broadcast %cst_54 : f32 to vector<128x128xf32>
    %83 = arith.mulf %82, %79 : vector<128x128xf32>
    %84 = arith.select %81, %79, %83 : vector<128x128xi1>, vector<128x128xf32>
    %c0_55 = arith.constant 0 : index
    %c0_56 = arith.constant 0 : index
    %85 = vector.load %arg19[%c0_55, %c0_56] : memref<128x128xbf16, #tpu.memory_space<vmem>>, vector<128x128xbf16>
    %c0_57 = arith.constant 0 : index
    %c0_58 = arith.constant 0 : index
    %86 = vector.load %arg20[%c0_57, %c0_58] : memref<1x128xf32, #tpu.memory_space<vmem>>, vector<1x128xf32>
    %87 = arith.truncf %84 : vector<128x128xf32> to vector<128x128xbf16>
    %cst_59 = arith.constant dense<0.000000e+00> : vector<128x128xf32>
    %88 = tpu.matmul %87, %85, %cst_59 {dimension_numbers = #tpu.dot_dimension_numbers<[1], [0], [0], [1], [0, 0, 1, 1], [], []>} : vector<128x128xbf16>, vector<128x128xbf16>, vector<128x128xf32> -> vector<128x128xf32>
    %89 = vector.broadcast %86 : vector<1x128xf32> to vector<128x128xf32>
    %90 = arith.addf %88, %89 : vector<128x128xf32>
    %cst_60 = arith.constant 0.000000e+00 : f32
    %91 = vector.broadcast %cst_60 : f32 to vector<128x128xf32>
    %92 = arith.cmpf ogt, %90, %91 : vector<128x128xf32>
    %cst_61 = arith.constant 0.00999999977 : f32
    %93 = vector.broadcast %cst_61 : f32 to vector<128x128xf32>
    %94 = arith.mulf %93, %90 : vector<128x128xf32>
    %95 = arith.select %92, %90, %94 : vector<128x128xi1>, vector<128x128xf32>
    %c0_62 = arith.constant 0 : index
    %c0_63 = arith.constant 0 : index
    %96 = vector.load %arg21[%c0_62, %c0_63] : memref<128x128xbf16, #tpu.memory_space<vmem>>, vector<128x128xbf16>
    %c0_64 = arith.constant 0 : index
    %c0_65 = arith.constant 0 : index
    %97 = vector.load %arg22[%c0_64, %c0_65] : memref<1x128xf32, #tpu.memory_space<vmem>>, vector<1x128xf32>
    %98 = arith.truncf %95 : vector<128x128xf32> to vector<128x128xbf16>
    %cst_66 = arith.constant dense<0.000000e+00> : vector<128x128xf32>
    %99 = tpu.matmul %98, %96, %cst_66 {dimension_numbers = #tpu.dot_dimension_numbers<[1], [0], [0], [1], [0, 0, 1, 1], [], []>} : vector<128x128xbf16>, vector<128x128xbf16>, vector<128x128xf32> -> vector<128x128xf32>
    %100 = vector.broadcast %97 : vector<1x128xf32> to vector<128x128xf32>
    %101 = arith.addf %99, %100 : vector<128x128xf32>
    %c0_67 = arith.constant 0 : index
    %c0_68 = arith.constant 0 : index
    %102 = vector.load %arg23[%c0_67, %c0_68] : memref<128x128xf32, #tpu.memory_space<vmem>>, vector<128x128xf32>
    tpu.vector_store %arg23[%c0_67, %c0_68], %101 {strides = array<i32>} : memref<128x128xf32, #tpu.memory_space<vmem>>, vector<128x128xf32>,
    %c0_69 = arith.constant 0 : index
    %c0_70 = arith.constant 0 : index
    %103 = vector.load %arg24[%c0_69, %c0_70] : memref<128x128xf32, #tpu.memory_space<vmem>>, vector<128x128xf32>
    tpu.vector_store %arg24[%c0_69, %c0_70], %50 {strides = array<i32>} : memref<128x128xf32, #tpu.memory_space<vmem>>, vector<128x128xf32>,
    %c0_71 = arith.constant 0 : index
    %c0_72 = arith.constant 0 : index
    %104 = vector.load %arg25[%c0_71, %c0_72] : memref<128x128xf32, #tpu.memory_space<vmem>>, vector<128x128xf32>
    tpu.vector_store %arg25[%c0_71, %c0_72], %56 {strides = array<i32>} : memref<128x128xf32, #tpu.memory_space<vmem>>, vector<128x128xf32>,
    return
  }
  func.func @transform_0(%arg0: i32) -> (i32, i32) {
    %c0_i32 = arith.constant 0 : i32
    %c0_i32_0 = arith.constant 0 : i32
    return %arg0, %c0_i32 : i32, i32
  }
  func.func @transform_1(%arg0: i32) -> (i32, i32) {
    %c0_i32 = arith.constant 0 : i32
    %c0_i32_0 = arith.constant 0 : i32
    return %arg0, %c0_i32 : i32, i32
  }
  func.func @transform_2(%arg0: i32) -> (i32, i32) {
    %c0_i32 = arith.constant 0 : i32
    %c0_i32_0 = arith.constant 0 : i32
    %c0_i32_1 = arith.constant 0 : i32
    return %c0_i32, %c0_i32_0 : i32, i32
  }
  func.func @transform_3(%arg0: i32) -> (i32, i32) {
    %c0_i32 = arith.constant 0 : i32
    %c0_i32_0 = arith.constant 0 : i32
    %c0_i32_1 = arith.constant 0 : i32
    return %c0_i32, %c0_i32_0 : i32, i32
  }
  func.func @transform_4(%arg0: i32) -> (i32, i32) {
    %c0_i32 = arith.constant 0 : i32
    %c0_i32_0 = arith.constant 0 : i32
    %c0_i32_1 = arith.constant 0 : i32
    return %c0_i32, %c0_i32_0 : i32, i32
  }
  func.func @transform_5(%arg0: i32) -> (i32, i32) {
    %c0_i32 = arith.constant 0 : i32
    %c0_i32_0 = arith.constant 0 : i32
    %c0_i32_1 = arith.constant 0 : i32
    return %c0_i32, %c0_i32_0 : i32, i32
  }
  func.func @transform_6(%arg0: i32) -> (i32, i32) {
    %c0_i32 = arith.constant 0 : i32
    %c0_i32_0 = arith.constant 0 : i32
    %c0_i32_1 = arith.constant 0 : i32
    return %c0_i32, %c0_i32_0 : i32, i32
  }
  func.func @transform_7(%arg0: i32) -> (i32, i32) {
    %c0_i32 = arith.constant 0 : i32
    %c0_i32_0 = arith.constant 0 : i32
    %c0_i32_1 = arith.constant 0 : i32
    return %c0_i32, %c0_i32_0 : i32, i32
  }
  func.func @transform_8(%arg0: i32) -> (i32, i32) {
    %c0_i32 = arith.constant 0 : i32
    %c0_i32_0 = arith.constant 0 : i32
    %c0_i32_1 = arith.constant 0 : i32
    return %c0_i32, %c0_i32_0 : i32, i32
  }
  func.func @transform_9(%arg0: i32) -> (i32, i32) {
    %c0_i32 = arith.constant 0 : i32
    %c0_i32_0 = arith.constant 0 : i32
    %c0_i32_1 = arith.constant 0 : i32
    return %c0_i32, %c0_i32_0 : i32, i32
  }
  func.func @transform_10(%arg0: i32) -> (i32, i32) {
    %c0_i32 = arith.constant 0 : i32
    %c0_i32_0 = arith.constant 0 : i32
    %c0_i32_1 = arith.constant 0 : i32
    return %c0_i32, %c0_i32_0 : i32, i32
  }
  func.func @transform_11(%arg0: i32) -> (i32, i32) {
    %c0_i32 = arith.constant 0 : i32
    %c0_i32_0 = arith.constant 0 : i32
    %c0_i32_1 = arith.constant 0 : i32
    return %c0_i32, %c0_i32_0 : i32, i32
  }
  func.func @transform_12(%arg0: i32) -> (i32, i32) {
    %c0_i32 = arith.constant 0 : i32
    %c0_i32_0 = arith.constant 0 : i32
    %c0_i32_1 = arith.constant 0 : i32
    return %c0_i32, %c0_i32_0 : i32, i32
  }
  func.func @transform_13(%arg0: i32) -> (i32, i32) {
    %c0_i32 = arith.constant 0 : i32
    %c0_i32_0 = arith.constant 0 : i32
    %c0_i32_1 = arith.constant 0 : i32
    return %c0_i32, %c0_i32_0 : i32, i32
  }
  func.func @transform_14(%arg0: i32) -> (i32, i32) {
    %c0_i32 = arith.constant 0 : i32
    %c0_i32_0 = arith.constant 0 : i32
    %c0_i32_1 = arith.constant 0 : i32
    return %c0_i32, %c0_i32_0 : i32, i32
  }
  func.func @transform_15(%arg0: i32) -> (i32, i32) {
    %c0_i32 = arith.constant 0 : i32
    %c0_i32_0 = arith.constant 0 : i32
    %c0_i32_1 = arith.constant 0 : i32
    return %c0_i32, %c0_i32_0 : i32, i32
  }
  func.func @transform_16(%arg0: i32) -> (i32, i32) {
    %c0_i32 = arith.constant 0 : i32
    %c0_i32_0 = arith.constant 0 : i32
    %c0_i32_1 = arith.constant 0 : i32
    return %c0_i32, %c0_i32_0 : i32, i32
  }
  func.func @transform_17(%arg0: i32) -> (i32, i32) {
    %c0_i32 = arith.constant 0 : i32
    %c0_i32_0 = arith.constant 0 : i32
    %c0_i32_1 = arith.constant 0 : i32
    return %c0_i32, %c0_i32_0 : i32, i32
  }
  func.func @transform_18(%arg0: i32) -> (i32, i32) {
    %c0_i32 = arith.constant 0 : i32
    %c0_i32_0 = arith.constant 0 : i32
    %c0_i32_1 = arith.constant 0 : i32
    return %c0_i32, %c0_i32_0 : i32, i32
  }
  func.func @transform_19(%arg0: i32) -> (i32, i32) {
    %c0_i32 = arith.constant 0 : i32
    %c0_i32_0 = arith.constant 0 : i32
    %c0_i32_1 = arith.constant 0 : i32
    return %c0_i32, %c0_i32_0 : i32, i32
  }
  func.func @transform_20(%arg0: i32) -> (i32, i32) {
    %c0_i32 = arith.constant 0 : i32
    %c0_i32_0 = arith.constant 0 : i32
    %c0_i32_1 = arith.constant 0 : i32
    return %c0_i32, %c0_i32_0 : i32, i32
  }
  func.func @transform_21(%arg0: i32) -> (i32, i32) {
    %c0_i32 = arith.constant 0 : i32
    %c0_i32_0 = arith.constant 0 : i32
    %c0_i32_1 = arith.constant 0 : i32
    return %c0_i32, %c0_i32_0 : i32, i32
  }
  func.func @transform_22(%arg0: i32) -> (i32, i32) {
    %c0_i32 = arith.constant 0 : i32
    %c0_i32_0 = arith.constant 0 : i32
    return %arg0, %c0_i32 : i32, i32
  }
  func.func @transform_23(%arg0: i32) -> (i32, i32) {
    %c0_i32 = arith.constant 0 : i32
    %c0_i32_0 = arith.constant 0 : i32
    return %arg0, %c0_i32 : i32, i32
  }
  func.func @transform_24(%arg0: i32) -> (i32, i32) {
    %c0_i32 = arith.constant 0 : i32
    %c0_i32_0 = arith.constant 0 : i32
    return %arg0, %c0_i32 : i32, i32
  }
}

</mosaic_0001>

<llo_original>
// kernel: tpu_custom_call.1
$region0: #{tpu_custom_call.1}
  #allocation0 [shape = 'u32[]', space=smem, size = 0x4, offset = 0x4, fixed_abs, tag = 'smem constant byte address 0x4 - core index']
  #allocation1 [shape = 'u32[144,128]{1,0:T(1,128)}', space=vmem, size = 0x12000, scoped, tag = 'internal scratch']
  %s0 = inlined_call_operand.hbm [shape: f32[256,128], index: 0, kind: input, shape index: {}]
  %s1 = inlined_call_operand.hbm [shape: f32[256,128], index: 1, kind: input, shape index: {}]
  %s2 = inlined_call_operand.hbm [shape: bf16[128,128], index: 2, kind: input, shape index: {}]
  %s3 = inlined_call_operand.vmem [shape: f32[1,128], index: 3, kind: input, shape index: {}]
  %s4 = inlined_call_operand.hbm [shape: bf16[128,128], index: 4, kind: input, shape index: {}]
  %s5 = inlined_call_operand.vmem [shape: f32[1,128], index: 5, kind: input, shape index: {}]
  %s6 = inlined_call_operand.hbm [shape: bf16[128,128], index: 6, kind: input, shape index: {}]
  %s7 = inlined_call_operand.vmem [shape: f32[1,128], index: 7, kind: input, shape index: {}]
  %s8 = inlined_call_operand.hbm [shape: bf16[128,128], index: 8, kind: input, shape index: {}]
  %s9 = inlined_call_operand.vmem [shape: f32[1,128], index: 9, kind: input, shape index: {}]
  %s10 = inlined_call_operand.hbm [shape: bf16[128,128], index: 10, kind: input, shape index: {}]
  %s11 = inlined_call_operand.hbm [shape: f32[1,128], index: 11, kind: input, shape index: {}]
  %s12 = inlined_call_operand.hbm [shape: bf16[128,128], index: 12, kind: input, shape index: {}]
  %s13 = inlined_call_operand.hbm [shape: f32[1,128], index: 13, kind: input, shape index: {}]
  %s14 = inlined_call_operand.hbm [shape: bf16[128,128], index: 14, kind: input, shape index: {}]
  %s15 = inlined_call_operand.hbm [shape: f32[1,128], index: 15, kind: input, shape index: {}]
  %s16 = inlined_call_operand.hbm [shape: bf16[128,128], index: 16, kind: input, shape index: {}]
  %s17 = inlined_call_operand.hbm [shape: f32[1,128], index: 17, kind: input, shape index: {}]
  %s18 = inlined_call_operand.vmem [shape: bf16[128,128], index: 18, kind: input, shape index: {}]
  %s19 = inlined_call_operand.vmem [shape: f32[1,128], index: 19, kind: input, shape index: {}]
  %s20 = inlined_call_operand.hbm [shape: bf16[128,128], index: 20, kind: input, shape index: {}]
  %s21 = inlined_call_operand.vmem [shape: f32[1,128], index: 21, kind: input, shape index: {}]
  %s22 = inlined_call_operand.hbm [shape: f32[256,128], index: 22, kind: output, shape index: {0}]
  %s23 = inlined_call_operand.hbm [shape: f32[256,128], index: 23, kind: output, shape index: {1}]
  %s24 = inlined_call_operand.hbm [shape: f32[256,128], index: 24, kind: output, shape index: {2}]
  %25 = xla_tuple %s22, %s23, %s24
  %s26 = sld [smem:[#allocation0]]
  $region197: #{tpu_custom_call.1} parent=0
    _
  %s28 = ssub.s32 1, %s26
  %s29 = scalar_select 0, %s28, %s26
  $region1: #{tpu_custom_call.1} parent=0
    #allocation2 [shape = 'u8[131072]{0}', space=vmem, size = 0x20000, scoped, tag = 'input window, operand 0']
    #allocation3 [shape = 's32[2]{0}', space=sflag, size = 0x8, scoped, tag = 'scoped memory for tpu_custom_call.1']
    #allocation4 [shape = 's32[2]{0}', space=sflag, size = 0x8, scoped, tag = 'scoped memory for tpu_custom_call.1']
    #allocation5 [shape = 'u8[131072]{0}', space=vmem, size = 0x20000, scoped, tag = 'input window, operand 1']
    #allocation6 [shape = 's32[2]{0}', space=sflag, size = 0x8, scoped, tag = 'scoped memory for tpu_custom_call.1']
    #allocation7 [shape = 'u8[32768]{0}', space=vmem, size = 0x8000, scoped, tag = 'input window, operand 2, single buffered']
    #allocation8 [shape = 'u8[32768]{0}', space=vmem, size = 0x8000, scoped, tag = 'input window, operand 4, single buffered']
    #allocation9 [shape = 's32[1]{0}', space=sflag, size = 0x4, scoped, tag = 'scoped memory for tpu_custom_call.1']
    #allocation10 [shape = 'u8[32768]{0}', space=vmem, size = 0x8000, scoped, tag = 'input window, operand 6, single buffered']
    #allocation11 [shape = 'u8[32768]{0}', space=vmem, size = 0x8000, scoped, tag = 'input window, operand 8, single buffered']
    #allocation12 [shape = 's32[1]{0}', space=sflag, size = 0x4, scoped, tag = 'scoped memory for tpu_custom_call.1']
    #allocation13 [shape = 'u8[32768]{0}', space=vmem, size = 0x8000, scoped, tag = 'input window, operand 10, single buffered']
    #allocation14 [shape = 'u8[512]{0}', space=vmem, size = 0x400, scoped, tag = 'input window, operand 11, single buffered']
    #allocation15 [shape = 's32[1]{0}', space=sflag, size = 0x4, scoped, tag = 'scoped memory for tpu_custom_call.1']
    #allocation16 [shape = 'u8[32768]{0}', space=vmem, size = 0x8000, scoped, tag = 'input window, operand 12, single buffered']
    #allocation17 [shape = 'u8[512]{0}', space=vmem, size = 0x400, scoped, tag = 'input window, operand 13, single buffered']
    #allocation18 [shape = 's32[1]{0}', space=sflag, size = 0x4, scoped, tag = 'scoped memory for tpu_custom_call.1']
    #allocation19 [shape = 'u8[32768]{0}', space=vmem, size = 0x8000, scoped, tag = 'input window, operand 14, single buffered']
    #allocation20 [shape = 'u8[512]{0}', space=vmem, size = 0x400, scoped, tag = 'input window, operand 15, single buffered']
    #allocation21 [shape = 's32[1]{0}', space=sflag, size = 0x4, scoped, tag = 'scoped memory for tpu_custom_call.1']
    #allocation22 [shape = 'u8[32768]{0}', space=vmem, size = 0x8000, scoped, tag = 'input window, operand 16, single buffered']
    #allocation23 [shape = 'u8[512]{0}', space=vmem, size = 0x400, scoped, tag = 'input window, operand 17, single buffered']
    #allocation24 [shape = 's32[1]{0}', space=sflag, size = 0x4, scoped, tag = 'scoped memory for tpu_custom_call.1']
    #allocation25 [shape = 'u8[32768]{0}', space=vmem, size = 0x8000, scoped, tag = 'input window, operand 20, single buffered']
    #allocation26 [shape = 'u8[131072]{0}', space=vmem, size = 0x20000, scoped, tag = 'output window, operand 0']
    #allocation27 [shape = 'u8[131072]{0}', space=vmem, size = 0x20000, scoped, tag = 'output window, operand 1']
    #allocation28 [shape = 's32[2]{0}', space=sflag, size = 0x8, scoped, tag = 'scoped memory for tpu_custom_call.1']
    #allocation29 [shape = 'u8[131072]{0}', space=vmem, size = 0x20000, scoped, tag = 'output window, operand 2']
    %30 = vsyncpa [#allocation3], 0
    %s31 = scalar_lea.sflag [#allocation3], 1
    %32 = vsyncpa %s31, 0
    %33 = vsyncpa [#allocation6], 0
    %s34 = scalar_lea.sflag [#allocation6], 1
    %35 = vsyncpa %s34, 0
    %36 = vsyncpa [#allocation9], 0
    %37 = vsyncpa [#allocation12], 0
    %38 = vsyncpa [#allocation15], 0
    %39 = vsyncpa [#allocation18], 0
    %40 = vsyncpa [#allocation21], 0
    %41 = vsyncpa [#allocation24], 0
    %42 = vsyncpa [#allocation4], 0
    %s43 = scalar_lea.sflag [#allocation4], 1
    %44 = vsyncpa %s43, 0
    %45 = vsyncpa [#allocation28], 0
    %s46 = scalar_lea.sflag [#allocation28], 1
    %47 = vsyncpa %s46, 0
    loop: start=0, step=1, limit=4
    $region2: #{tpu_custom_call.1} parent=1 // loop_pre_header
      _
    $region3: #{tpu_custom_call.1} parent=1 // loop_header
      %s49 = sphi 0, %s53
      %p50 = scmp.ge.s32.totalorder %s49, 4
      %s59 = sphi 0, %s61
      %s62 = sphi 0, %s59
      %s63 = sphi 0, %s62
      %s79 = sphi 0, %s63
      %s85 = sphi 0, %s87
      %s88 = sphi 0, %s85
      %s89 = sphi 0, %s88
      %s105 = sphi 0, %s89
      %s109 = sphi 0, %s109
      %s111 = sphi 0, %s109
      %s112 = sphi 0, %s111
      %s126 = sphi 0, %s112
      %s130 = sphi 0, %s130
      %s132 = sphi 0, %s130
      %s133 = sphi 0, %s132
      %s147 = sphi 0, %s133
      %s151 = sphi 0, %s151
      %s153 = sphi 0, %s151
      %s154 = sphi 0, %s153
      %s168 = sphi 0, %s154
      %s172 = sphi 0, %s172
      %s174 = sphi 0, %s172
      %s175 = sphi 0, %s174
      %s189 = sphi 0, %s175
      %s193 = sphi 0, %s193
      %s195 = sphi 0, %s193
      %s196 = sphi 0, %s195
      %s210 = sphi 0, %s196
      %s214 = sphi 0, %s214
      %s216 = sphi 0, %s214
      %s217 = sphi 0, %s216
      %s231 = sphi 0, %s217
      %s235 = sphi 0, %s235
      %s237 = sphi 0, %s235
      %s238 = sphi 0, %s237
      %s252 = sphi 0, %s238
      %s256 = sphi 0, %s256
      %s258 = sphi 0, %s256
      %s259 = sphi 0, %s258
      %s273 = sphi 0, %s259
      %s277 = sphi 0, %s277
      %s279 = sphi 0, %s277
      %s280 = sphi 0, %s279
      %s294 = sphi 0, %s280
      %s298 = sphi 0, %s298
      %s300 = sphi 0, %s298
      %s301 = sphi 0, %s300
      %s315 = sphi 0, %s301
      %s319 = sphi 0, %s319
      %s321 = sphi 0, %s319
      %s322 = sphi 0, %s321
      %s336 = sphi 0, %s322
      %s340 = sphi 0, %s340
      %s342 = sphi 0, %s340
      %s343 = sphi 0, %s342
      %s357 = sphi 0, %s343
      %s361 = sphi 0, %s361
      %s363 = sphi 0, %s361
      %s364 = sphi 0, %s363
      %s378 = sphi 0, %s364
      %s382 = sphi 0, %s382
      %s384 = sphi 0, %s382
      %s385 = sphi 0, %s384
      %s399 = sphi 0, %s385
      %s403 = sphi 0, %s403
      %s405 = sphi 0, %s403
      %s406 = sphi 0, %s405
      %s420 = sphi 0, %s406
      %s424 = sphi 0, %s424
      %s426 = sphi 0, %s424
      %s427 = sphi 0, %s426
      %s441 = sphi 0, %s427
      %s445 = sphi 0, %s445
      %s447 = sphi 0, %s445
      %s448 = sphi 0, %s447
      %s462 = sphi 0, %s448
      %s466 = sphi 0, %s466
      %s468 = sphi 0, %s466
      %s469 = sphi 0, %s468
      %s483 = sphi 0, %s469
      %s487 = sphi 0, %s487
      %s489 = sphi 0, %s487
      %s490 = sphi 0, %s489
      %s504 = sphi 0, %s490
      %s508 = sphi 0, %s508
      %s510 = sphi 0, %s508
      %s511 = sphi 0, %s510
      %s525 = sphi 0, %s511
      %s531 = sphi 0, %s533
      %s534 = sphi 0, %s531
      %s535 = sphi 0, %s534
      %s551 = sphi 0, %s535
      %s557 = sphi 0, %s559
      %s560 = sphi 0, %s557
      %s561 = sphi 0, %s560
      %s577 = sphi 0, %s561
      %s583 = sphi 0, %s585
      %s586 = sphi 0, %s583
      %s587 = sphi 0, %s586
      %s603 = sphi 0, %s587
    $region4: #{tpu_custom_call.1} parent=1 // loop_header_branch
      %52 = sbr.rel (%p50) target = $region8
    $region5: #{tpu_custom_call.1} parent=1 // loop_body
      %s54 = ssub.s32 %s49, 1
      %s55 = ssub.s32 %s49, 2
      %s56 = sadd.s32 %s49, 1
      %s57 = ssub.s32 %s49, %s56
      %p58 = scmp.eq.s32.totalorder %s57, 0
      %s60 = sadd.s32 %s59, 1
      %s61 = scalar_select %p58, %s59, %s60
      %p64 = pneg %p58
      %p65 = scmp.eq.s32.totalorder %s49, 1
      %p66 = por %p64, %p65
      %p67 = scmp.ne.s32.totalorder %s59, %s62
      %p68 = scmp.eq.s32.totalorder %s49, 0
      %p69 = por %p67, %p68
      %p70 = scmp.ne.s32.totalorder %s59, %s62
      %p71 = scmp.eq.s32.totalorder %s54, 1
      %p72 = por %p70, %p71
      %p73 = scmp.ne.s32.totalorder %s62, %s63
      %p74 = scmp.eq.s32.totalorder %s54, 0
      %p75 = por %p73, %p74
      %p76 = scmp.ne.s32.totalorder %s62, %s63
      %p77 = scmp.eq.s32.totalorder %s55, 1
      %p78 = por %p76, %p77
      %p80 = scmp.ne.s32.totalorder %s63, %s79
      %p81 = scmp.eq.s32.totalorder %s55, 0
      %p82 = por %p80, %p81
      %s83 = ssub.s32 %s49, %s56
      %p84 = scmp.eq.s32.totalorder %s83, 0
      %s86 = sadd.s32 %s85, 1
      %s87 = scalar_select %p84, %s85, %s86
      %p90 = pneg %p84
      %p91 = scmp.eq.s32.totalorder %s49, 1
      %p92 = por %p90, %p91
      %p93 = scmp.ne.s32.totalorder %s85, %s88
      %p94 = scmp.eq.s32.totalorder %s49, 0
      %p95 = por %p93, %p94
      %p96 = scmp.ne.s32.totalorder %s85, %s88
      %p97 = scmp.eq.s32.totalorder %s54, 1
      %p98 = por %p96, %p97
      %p99 = scmp.ne.s32.totalorder %s88, %s89
      %p100 = scmp.eq.s32.totalorder %s54, 0
      %p101 = por %p99, %p100
      %p102 = scmp.ne.s32.totalorder %s88, %s89
      %p103 = scmp.eq.s32.totalorder %s55, 1
      %p104 = por %p102, %p103
      %p106 = scmp.ne.s32.totalorder %s89, %s105
      %p107 = scmp.eq.s32.totalorder %s55, 0
      %p108 = por %p106, %p107
      %s110 = sadd.s32 %s109, 1
      %p113 = scmp.eq.s32.totalorder %s49, 1
      %p114 = scmp.ne.s32.totalorder %s109, %s111
      %p115 = scmp.eq.s32.totalorder %s49, 0
      %p116 = por %p114, %p115
      %p117 = scmp.ne.s32.totalorder %s109, %s111
      %p118 = scmp.eq.s32.totalorder %s54, 1
      %p119 = por %p117, %p118
      %p120 = scmp.ne.s32.totalorder %s111, %s112
      %p121 = scmp.eq.s32.totalorder %s54, 0
      %p122 = por %p120, %p121
      %p123 = scmp.ne.s32.totalorder %s111, %s112
      %p124 = scmp.eq.s32.totalorder %s55, 1
      %p125 = por %p123, %p124
      %p127 = scmp.ne.s32.totalorder %s112, %s126
      %p128 = scmp.eq.s32.totalorder %s55, 0
      %p129 = por %p127, %p128
      %s131 = sadd.s32 %s130, 1
      %p134 = scmp.eq.s32.totalorder %s49, 1
      %p135 = scmp.ne.s32.totalorder %s130, %s132
      %p136 = scmp.eq.s32.totalorder %s49, 0
      %p137 = por %p135, %p136
      %p138 = scmp.ne.s32.totalorder %s130, %s132
      %p139 = scmp.eq.s32.totalorder %s54, 1
      %p140 = por %p138, %p139
      %p141 = scmp.ne.s32.totalorder %s132, %s133
      %p142 = scmp.eq.s32.totalorder %s54, 0
      %p143 = por %p141, %p142
      %p144 = scmp.ne.s32.totalorder %s132, %s133
      %p145 = scmp.eq.s32.totalorder %s55, 1
      %p146 = por %p144, %p145
      %p148 = scmp.ne.s32.totalorder %s133, %s147
      %p149 = scmp.eq.s32.totalorder %s55, 0
      %p150 = por %p148, %p149
      %s152 = sadd.s32 %s151, 1
      %p155 = scmp.eq.s32.totalorder %s49, 1
      %p156 = scmp.ne.s32.totalorder %s151, %s153
      %p157 = scmp.eq.s32.totalorder %s49, 0
      %p158 = por %p156, %p157
      %p159 = scmp.ne.s32.totalorder %s151, %s153
      %p160 = scmp.eq.s32.totalorder %s54, 1
      %p161 = por %p159, %p160
      %p162 = scmp.ne.s32.totalorder %s153, %s154
      %p163 = scmp.eq.s32.totalorder %s54, 0
      %p164 = por %p162, %p163
      %p165 = scmp.ne.s32.totalorder %s153, %s154
      %p166 = scmp.eq.s32.totalorder %s55, 1
      %p167 = por %p165, %p166
      %p169 = scmp.ne.s32.totalorder %s154, %s168
      %p170 = scmp.eq.s32.totalorder %s55, 0
      %p171 = por %p169, %p170
      %s173 = sadd.s32 %s172, 1
      %p176 = scmp.eq.s32.totalorder %s49, 1
      %p177 = scmp.ne.s32.totalorder %s172, %s174
      %p178 = scmp.eq.s32.totalorder %s49, 0
      %p179 = por %p177, %p178
      %p180 = scmp.ne.s32.totalorder %s172, %s174
      %p181 = scmp.eq.s32.totalorder %s54, 1
      %p182 = por %p180, %p181
      %p183 = scmp.ne.s32.totalorder %s174, %s175
      %p184 = scmp.eq.s32.totalorder %s54, 0
      %p185 = por %p183, %p184
      %p186 = scmp.ne.s32.totalorder %s174, %s175
      %p187 = scmp.eq.s32.totalorder %s55, 1
      %p188 = por %p186, %p187
      %p190 = scmp.ne.s32.totalorder %s175, %s189
      %p191 = scmp.eq.s32.totalorder %s55, 0
      %p192 = por %p190, %p191
      %s194 = sadd.s32 %s193, 1
      %p197 = scmp.eq.s32.totalorder %s49, 1
      %p198 = scmp.ne.s32.totalorder %s193, %s195
      %p199 = scmp.eq.s32.totalorder %s49, 0
      %p200 = por %p198, %p199
      %p201 = scmp.ne.s32.totalorder %s193, %s195
      %p202 = scmp.eq.s32.totalorder %s54, 1
      %p203 = por %p201, %p202
      %p204 = scmp.ne.s32.totalorder %s195, %s196
      %p205 = scmp.eq.s32.totalorder %s54, 0
      %p206 = por %p204, %p205
      %p207 = scmp.ne.s32.totalorder %s195, %s196
      %p208 = scmp.eq.s32.totalorder %s55, 1
      %p209 = por %p207, %p208
      %p211 = scmp.ne.s32.totalorder %s196, %s210
      %p212 = scmp.eq.s32.totalorder %s55, 0
      %p213 = por %p211, %p212
      %s215 = sadd.s32 %s214, 1
      %p218 = scmp.eq.s32.totalorder %s49, 1
      %p219 = scmp.ne.s32.totalorder %s214, %s216
      %p220 = scmp.eq.s32.totalorder %s49, 0
      %p221 = por %p219, %p220
      %p222 = scmp.ne.s32.totalorder %s214, %s216
      %p223 = scmp.eq.s32.totalorder %s54, 1
      %p224 = por %p222, %p223
      %p225 = scmp.ne.s32.totalorder %s216, %s217
      %p226 = scmp.eq.s32.totalorder %s54, 0
      %p227 = por %p225, %p226
      %p228 = scmp.ne.s32.totalorder %s216, %s217
      %p229 = scmp.eq.s32.totalorder %s55, 1
      %p230 = por %p228, %p229
      %p232 = scmp.ne.s32.totalorder %s217, %s231
      %p233 = scmp.eq.s32.totalorder %s55, 0
      %p234 = por %p232, %p233
      %s236 = sadd.s32 %s235, 1
      %p239 = scmp.eq.s32.totalorder %s49, 1
      %p240 = scmp.ne.s32.totalorder %s235, %s237
      %p241 = scmp.eq.s32.totalorder %s49, 0
      %p242 = por %p240, %p241
      %p243 = scmp.ne.s32.totalorder %s235, %s237
      %p244 = scmp.eq.s32.totalorder %s54, 1
      %p245 = por %p243, %p244
      %p246 = scmp.ne.s32.totalorder %s237, %s238
      %p247 = scmp.eq.s32.totalorder %s54, 0
      %p248 = por %p246, %p247
      %p249 = scmp.ne.s32.totalorder %s237, %s238
      %p250 = scmp.eq.s32.totalorder %s55, 1
      %p251 = por %p249, %p250
      %p253 = scmp.ne.s32.totalorder %s238, %s252
      %p254 = scmp.eq.s32.totalorder %s55, 0
      %p255 = por %p253, %p254
      %s257 = sadd.s32 %s256, 1
      %p260 = scmp.eq.s32.totalorder %s49, 1
      %p261 = scmp.ne.s32.totalorder %s256, %s258
      %p262 = scmp.eq.s32.totalorder %s49, 0
      %p263 = por %p261, %p262
      %p264 = scmp.ne.s32.totalorder %s256, %s258
      %p265 = scmp.eq.s32.totalorder %s54, 1
      %p266 = por %p264, %p265
      %p267 = scmp.ne.s32.totalorder %s258, %s259
      %p268 = scmp.eq.s32.totalorder %s54, 0
      %p269 = por %p267, %p268
      %p270 = scmp.ne.s32.totalorder %s258, %s259
      %p271 = scmp.eq.s32.totalorder %s55, 1
      %p272 = por %p270, %p271
      %p274 = scmp.ne.s32.totalorder %s259, %s273
      %p275 = scmp.eq.s32.totalorder %s55, 0
      %p276 = por %p274, %p275
      %s278 = sadd.s32 %s277, 1
      %p281 = scmp.eq.s32.totalorder %s49, 1
      %p282 = scmp.ne.s32.totalorder %s277, %s279
      %p283 = scmp.eq.s32.totalorder %s49, 0
      %p284 = por %p282, %p283
      %p285 = scmp.ne.s32.totalorder %s277, %s279
      %p286 = scmp.eq.s32.totalorder %s54, 1
      %p287 = por %p285, %p286
      %p288 = scmp.ne.s32.totalorder %s279, %s280
      %p289 = scmp.eq.s32.totalorder %s54, 0
      %p290 = por %p288, %p289
      %p291 = scmp.ne.s32.totalorder %s279, %s280
      %p292 = scmp.eq.s32.totalorder %s55, 1
      %p293 = por %p291, %p292
      %p295 = scmp.ne.s32.totalorder %s280, %s294
      %p296 = scmp.eq.s32.totalorder %s55, 0
      %p297 = por %p295, %p296
      %s299 = sadd.s32 %s298, 1
      %p302 = scmp.eq.s32.totalorder %s49, 1
      %p303 = scmp.ne.s32.totalorder %s298, %s300
      %p304 = scmp.eq.s32.totalorder %s49, 0
      %p305 = por %p303, %p304
      %p306 = scmp.ne.s32.totalorder %s298, %s300
      %p307 = scmp.eq.s32.totalorder %s54, 1
      %p308 = por %p306, %p307
      %p309 = scmp.ne.s32.totalorder %s300, %s301
      %p310 = scmp.eq.s32.totalorder %s54, 0
      %p311 = por %p309, %p310
      %p312 = scmp.ne.s32.totalorder %s300, %s301
      %p313 = scmp.eq.s32.totalorder %s55, 1
      %p314 = por %p312, %p313
      %p316 = scmp.ne.s32.totalorder %s301, %s315
      %p317 = scmp.eq.s32.totalorder %s55, 0
      %p318 = por %p316, %p317
      %s320 = sadd.s32 %s319, 1
      %p323 = scmp.eq.s32.totalorder %s49, 1
      %p324 = scmp.ne.s32.totalorder %s319, %s321
      %p325 = scmp.eq.s32.totalorder %s49, 0
      %p326 = por %p324, %p325
      %p327 = scmp.ne.s32.totalorder %s319, %s321
      %p328 = scmp.eq.s32.totalorder %s54, 1
      %p329 = por %p327, %p328
      %p330 = scmp.ne.s32.totalorder %s321, %s322
      %p331 = scmp.eq.s32.totalorder %s54, 0
      %p332 = por %p330, %p331
      %p333 = scmp.ne.s32.totalorder %s321, %s322
      %p334 = scmp.eq.s32.totalorder %s55, 1
      %p335 = por %p333, %p334
      %p337 = scmp.ne.s32.totalorder %s322, %s336
      %p338 = scmp.eq.s32.totalorder %s55, 0
      %p339 = por %p337, %p338
      %s341 = sadd.s32 %s340, 1
      %p344 = scmp.eq.s32.totalorder %s49, 1
      %p345 = scmp.ne.s32.totalorder %s340, %s342
      %p346 = scmp.eq.s32.totalorder %s49, 0
      %p347 = por %p345, %p346
      %p348 = scmp.ne.s32.totalorder %s340, %s342
      %p349 = scmp.eq.s32.totalorder %s54, 1
      %p350 = por %p348, %p349
      %p351 = scmp.ne.s32.totalorder %s342, %s343
      %p352 = scmp.eq.s32.totalorder %s54, 0
      %p353 = por %p351, %p352
      %p354 = scmp.ne.s32.totalorder %s342, %s343
      %p355 = scmp.eq.s32.totalorder %s55, 1
      %p356 = por %p354, %p355
      %p358 = scmp.ne.s32.totalorder %s343, %s357
      %p359 = scmp.eq.s32.totalorder %s55, 0
      %p360 = por %p358, %p359
      %s362 = sadd.s32 %s361, 1
      %p365 = scmp.eq.s32.totalorder %s49, 1
      %p366 = scmp.ne.s32.totalorder %s361, %s363
      %p367 = scmp.eq.s32.totalorder %s49, 0
      %p368 = por %p366, %p367
      %p369 = scmp.ne.s32.totalorder %s361, %s363
      %p370 = scmp.eq.s32.totalorder %s54, 1
      %p371 = por %p369, %p370
      %p372 = scmp.ne.s32.totalorder %s363, %s364
      %p373 = scmp.eq.s32.totalorder %s54, 0
      %p374 = por %p372, %p373
      %p375 = scmp.ne.s32.totalorder %s363, %s364
      %p376 = scmp.eq.s32.totalorder %s55, 1
      %p377 = por %p375, %p376
      %p379 = scmp.ne.s32.totalorder %s364, %s378
      %p380 = scmp.eq.s32.totalorder %s55, 0
      %p381 = por %p379, %p380
      %s383 = sadd.s32 %s382, 1
      %p386 = scmp.eq.s32.totalorder %s49, 1
      %p387 = scmp.ne.s32.totalorder %s382, %s384
      %p388 = scmp.eq.s32.totalorder %s49, 0
      %p389 = por %p387, %p388
      %p390 = scmp.ne.s32.totalorder %s382, %s384
      %p391 = scmp.eq.s32.totalorder %s54, 1
      %p392 = por %p390, %p391
      %p393 = scmp.ne.s32.totalorder %s384, %s385
      %p394 = scmp.eq.s32.totalorder %s54, 0
      %p395 = por %p393, %p394
      %p396 = scmp.ne.s32.totalorder %s384, %s385
      %p397 = scmp.eq.s32.totalorder %s55, 1
      %p398 = por %p396, %p397
      %p400 = scmp.ne.s32.totalorder %s385, %s399
      %p401 = scmp.eq.s32.totalorder %s55, 0
      %p402 = por %p400, %p401
      %s404 = sadd.s32 %s403, 1
      %p407 = scmp.eq.s32.totalorder %s49, 1
      %p408 = scmp.ne.s32.totalorder %s403, %s405
      %p409 = scmp.eq.s32.totalorder %s49, 0
      %p410 = por %p408, %p409
      %p411 = scmp.ne.s32.totalorder %s403, %s405
      %p412 = scmp.eq.s32.totalorder %s54, 1
      %p413 = por %p411, %p412
      %p414 = scmp.ne.s32.totalorder %s405, %s406
      %p415 = scmp.eq.s32.totalorder %s54, 0
      %p416 = por %p414, %p415
      %p417 = scmp.ne.s32.totalorder %s405, %s406
      %p418 = scmp.eq.s32.totalorder %s55, 1
      %p419 = por %p417, %p418
      %p421 = scmp.ne.s32.totalorder %s406, %s420
      %p422 = scmp.eq.s32.totalorder %s55, 0
      %p423 = por %p421, %p422
      %s425 = sadd.s32 %s424, 1
      %p428 = scmp.eq.s32.totalorder %s49, 1
      %p429 = scmp.ne.s32.totalorder %s424, %s426
      %p430 = scmp.eq.s32.totalorder %s49, 0
      %p431 = por %p429, %p430
      %p432 = scmp.ne.s32.totalorder %s424, %s426
      %p433 = scmp.eq.s32.totalorder %s54, 1
      %p434 = por %p432, %p433
      %p435 = scmp.ne.s32.totalorder %s426, %s427
      %p436 = scmp.eq.s32.totalorder %s54, 0
      %p437 = por %p435, %p436
      %p438 = scmp.ne.s32.totalorder %s426, %s427
      %p439 = scmp.eq.s32.totalorder %s55, 1
      %p440 = por %p438, %p439
      %p442 = scmp.ne.s32.totalorder %s427, %s441
      %p443 = scmp.eq.s32.totalorder %s55, 0
      %p444 = por %p442, %p443
      %s446 = sadd.s32 %s445, 1
      %p449 = scmp.eq.s32.totalorder %s49, 1
      %p450 = scmp.ne.s32.totalorder %s445, %s447
      %p451 = scmp.eq.s32.totalorder %s49, 0
      %p452 = por %p450, %p451
      %p453 = scmp.ne.s32.totalorder %s445, %s447
      %p454 = scmp.eq.s32.totalorder %s54, 1
      %p455 = por %p453, %p454
      %p456 = scmp.ne.s32.totalorder %s447, %s448
      %p457 = scmp.eq.s32.totalorder %s54, 0
      %p458 = por %p456, %p457
      %p459 = scmp.ne.s32.totalorder %s447, %s448
      %p460 = scmp.eq.s32.totalorder %s55, 1
      %p461 = por %p459, %p460
      %p463 = scmp.ne.s32.totalorder %s448, %s462
      %p464 = scmp.eq.s32.totalorder %s55, 0
      %p465 = por %p463, %p464
      %s467 = sadd.s32 %s466, 1
      %p470 = scmp.eq.s32.totalorder %s49, 1
      %p471 = scmp.ne.s32.totalorder %s466, %s468
      %p472 = scmp.eq.s32.totalorder %s49, 0
      %p473 = por %p471, %p472
      %p474 = scmp.ne.s32.totalorder %s466, %s468
      %p475 = scmp.eq.s32.totalorder %s54, 1
      %p476 = por %p474, %p475
      %p477 = scmp.ne.s32.totalorder %s468, %s469
      %p478 = scmp.eq.s32.totalorder %s54, 0
      %p479 = por %p477, %p478
      %p480 = scmp.ne.s32.totalorder %s468, %s469
      %p481 = scmp.eq.s32.totalorder %s55, 1
      %p482 = por %p480, %p481
      %p484 = scmp.ne.s32.totalorder %s469, %s483
      %p485 = scmp.eq.s32.totalorder %s55, 0
      %p486 = por %p484, %p485
      %s488 = sadd.s32 %s487, 1
      %p491 = scmp.eq.s32.totalorder %s49, 1
      %p492 = scmp.ne.s32.totalorder %s487, %s489
      %p493 = scmp.eq.s32.totalorder %s49, 0
      %p494 = por %p492, %p493
      %p495 = scmp.ne.s32.totalorder %s487, %s489
      %p496 = scmp.eq.s32.totalorder %s54, 1
      %p497 = por %p495, %p496
      %p498 = scmp.ne.s32.totalorder %s489, %s490
      %p499 = scmp.eq.s32.totalorder %s54, 0
      %p500 = por %p498, %p499
      %p501 = scmp.ne.s32.totalorder %s489, %s490
      %p502 = scmp.eq.s32.totalorder %s55, 1
      %p503 = por %p501, %p502
      %p505 = scmp.ne.s32.totalorder %s490, %s504
      %p506 = scmp.eq.s32.totalorder %s55, 0
      %p507 = por %p505, %p506
      %s509 = sadd.s32 %s508, 1
      %p512 = scmp.eq.s32.totalorder %s49, 1
      %p513 = scmp.ne.s32.totalorder %s508, %s510
      %p514 = scmp.eq.s32.totalorder %s49, 0
      %p515 = por %p513, %p514
      %p516 = scmp.ne.s32.totalorder %s508, %s510
      %p517 = scmp.eq.s32.totalorder %s54, 1
      %p518 = por %p516, %p517
      %p519 = scmp.ne.s32.totalorder %s510, %s511
      %p520 = scmp.eq.s32.totalorder %s54, 0
      %p521 = por %p519, %p520
      %p522 = scmp.ne.s32.totalorder %s510, %s511
      %p523 = scmp.eq.s32.totalorder %s55, 1
      %p524 = por %p522, %p523
      %p526 = scmp.ne.s32.totalorder %s511, %s525
      %p527 = scmp.eq.s32.totalorder %s55, 0
      %p528 = por %p526, %p527
      %s529 = ssub.s32 %s49, %s56
      %p530 = scmp.eq.s32.totalorder %s529, 0
      %s532 = sadd.s32 %s531, 1
      %s533 = scalar_select %p530, %s531, %s532
      %p536 = pneg %p530
      %p537 = scmp.eq.s32.totalorder %s49, 1
      %p538 = por %p536, %p537
      %p539 = scmp.ne.s32.totalorder %s531, %s534
      %p540 = scmp.eq.s32.totalorder %s49, 0
      %p541 = por %p539, %p540
      %p542 = scmp.ne.s32.totalorder %s531, %s534
      %p543 = scmp.eq.s32.totalorder %s54, 1
      %p544 = por %p542, %p543
      %p545 = scmp.ne.s32.totalorder %s534, %s535
      %p546 = scmp.eq.s32.totalorder %s54, 0
      %p547 = por %p545, %p546
      %p548 = scmp.ne.s32.totalorder %s534, %s535
      %p549 = scmp.eq.s32.totalorder %s55, 1
      %p550 = por %p548, %p549
      %p552 = scmp.ne.s32.totalorder %s535, %s551
      %p553 = scmp.eq.s32.totalorder %s55, 0
      %p554 = por %p552, %p553
      %s555 = ssub.s32 %s49, %s56
      %p556 = scmp.eq.s32.totalorder %s555, 0
      %s558 = sadd.s32 %s557, 1
      %s559 = scalar_select %p556, %s557, %s558
      %p562 = pneg %p556
      %p563 = scmp.eq.s32.totalorder %s49, 1
      %p564 = por %p562, %p563
      %p565 = scmp.ne.s32.totalorder %s557, %s560
      %p566 = scmp.eq.s32.totalorder %s49, 0
      %p567 = por %p565, %p566
      %p568 = scmp.ne.s32.totalorder %s557, %s560
      %p569 = scmp.eq.s32.totalorder %s54, 1
      %p570 = por %p568, %p569
      %p571 = scmp.ne.s32.totalorder %s560, %s561
      %p572 = scmp.eq.s32.totalorder %s54, 0
      %p573 = por %p571, %p572
      %p574 = scmp.ne.s32.totalorder %s560, %s561
      %p575 = scmp.eq.s32.totalorder %s55, 1
      %p576 = por %p574, %p575
      %p578 = scmp.ne.s32.totalorder %s561, %s577
      %p579 = scmp.eq.s32.totalorder %s55, 0
      %p580 = por %p578, %p579
      %s581 = ssub.s32 %s49, %s56
      %p582 = scmp.eq.s32.totalorder %s581, 0
      %s584 = sadd.s32 %s583, 1
      %s585 = scalar_select %p582, %s583, %s584
      %p588 = pneg %p582
      %p589 = scmp.eq.s32.totalorder %s49, 1
      %p590 = por %p588, %p589
      %p591 = scmp.ne.s32.totalorder %s583, %s586
      %p592 = scmp.eq.s32.totalorder %s49, 0
      %p593 = por %p591, %p592
      %p594 = scmp.ne.s32.totalorder %s583, %s586
      %p595 = scmp.eq.s32.totalorder %s54, 1
      %p596 = por %p594, %p595
      %p597 = scmp.ne.s32.totalorder %s586, %s587
      %p598 = scmp.eq.s32.totalorder %s54, 0
      %p599 = por %p597, %p598
      %p600 = scmp.ne.s32.totalorder %s586, %s587
      %p601 = scmp.eq.s32.totalorder %s55, 1
      %p602 = por %p600, %p601
      %p604 = scmp.ne.s32.totalorder %s587, %s603
      %p605 = scmp.eq.s32.totalorder %s55, 0
      %p606 = por %p604, %p605
      %p607 = scmp.le.s32.totalorder 1, %s49
      %p608 = scmp.lt.s32.totalorder %s49, 3
      %p609 = pnand %p607, %p608
      %p610 = pneg %p609
      // Predicated region
      $region9: #{tpu_custom_call.1} parent=5 // pred_check
        _
      $region10: #{tpu_custom_call.1} parent=5 // pred_check_branch
        %612 = sbr.rel (%p609) target = $region12
      $region11: #{tpu_custom_call.1} parent=5 // pred_region
        %s613 = ssub.s32 %s49, 1
        // Predicated region
        $region13: #{tpu_custom_call.1} parent=11 // pred_check
          %p614 = pneg %p122
        $region14: #{tpu_custom_call.1} parent=11 // pred_check_branch
          %616 = sbr.rel (%p614) target = $region16
        $region15: #{tpu_custom_call.1} parent=11 // pred_region
          %s618 = ssub.s32 1024, 1024
          %619 = vsyncadd [#allocation6], %s618
          %s620 = sshll.u32 [#allocation7], 4
          %s621 = int_to_ptr.vmem [resolvable:$true] %s620
          %626 = dma.hbm_to_vmem [thread:$0]  %s2, 1024, %s621, [#allocation6], 64, 64, 4
        $region16: #{tpu_custom_call.1} parent=11 // pred_fallthru
          _
        // Predicated region
        $region17: #{tpu_custom_call.1} parent=11 // pred_check
          %p627 = pneg %p143
        $region18: #{tpu_custom_call.1} parent=11 // pred_check_branch
          %629 = sbr.rel (%p627) target = $region20
        $region19: #{tpu_custom_call.1} parent=11 // pred_region
          _
        $region20: #{tpu_custom_call.1} parent=11 // pred_fallthru
          _
        // Predicated region
        $region21: #{tpu_custom_call.1} parent=11 // pred_check
          %p630 = pneg %p164
        $region22: #{tpu_custom_call.1} parent=11 // pred_check_branch
          %632 = sbr.rel (%p630) target = $region24
        $region23: #{tpu_custom_call.1} parent=11 // pred_region
          %s634 = ssub.s32 1024, 1024
          %635 = vsyncadd [#allocation9], %s634
          %s636 = sshll.u32 [#allocation8], 4
          %s637 = int_to_ptr.vmem [resolvable:$true] %s636
          %642 = dma.hbm_to_vmem [thread:$0]  %s4, 1024, %s637, [#allocation9], 64, 64, 4
        $region24: #{tpu_custom_call.1} parent=11 // pred_fallthru
          _
        // Predicated region
        $region25: #{tpu_custom_call.1} parent=11 // pred_check
          %p643 = pneg %p185
        $region26: #{tpu_custom_call.1} parent=11 // pred_check_branch
          %645 = sbr.rel (%p643) target = $region28
        $region27: #{tpu_custom_call.1} parent=11 // pred_region
          _
        $region28: #{tpu_custom_call.1} parent=11 // pred_fallthru
          _
        // Predicated region
        $region29: #{tpu_custom_call.1} parent=11 // pred_check
          %p646 = pneg %p206
        $region30: #{tpu_custom_call.1} parent=11 // pred_check_branch
          %648 = sbr.rel (%p646) target = $region32
        $region31: #{tpu_custom_call.1} parent=11 // pred_region
          %s650 = ssub.s32 1024, 1024
          %651 = vsyncadd [#allocation9], %s650
          %s652 = sshll.u32 [#allocation10], 4
          %s653 = int_to_ptr.vmem [resolvable:$true] %s652
          %658 = dma.hbm_to_vmem [thread:$0]  %s6, 1024, %s653, [#allocation9], 64, 64, 4
        $region32: #{tpu_custom_call.1} parent=11 // pred_fallthru
          _
        // Predicated region
        $region33: #{tpu_custom_call.1} parent=11 // pred_check
          %p659 = pneg %p227
        $region34: #{tpu_custom_call.1} parent=11 // pred_check_branch
          %661 = sbr.rel (%p659) target = $region36
        $region35: #{tpu_custom_call.1} parent=11 // pred_region
          _
        $region36: #{tpu_custom_call.1} parent=11 // pred_fallthru
          _
        // Predicated region
        $region37: #{tpu_custom_call.1} parent=11 // pred_check
          %p662 = pneg %p248
        $region38: #{tpu_custom_call.1} parent=11 // pred_check_branch
          %664 = sbr.rel (%p662) target = $region40
        $region39: #{tpu_custom_call.1} parent=11 // pred_region
          %s666 = ssub.s32 1024, 1024
          %667 = vsyncadd [#allocation12], %s666
          %s668 = sshll.u32 [#allocation11], 4
          %s669 = int_to_ptr.vmem [resolvable:$true] %s668
          %674 = dma.hbm_to_vmem [thread:$0]  %s8, 1024, %s669, [#allocation12], 64, 64, 4
        $region40: #{tpu_custom_call.1} parent=11 // pred_fallthru
          _
        // Predicated region
        $region41: #{tpu_custom_call.1} parent=11 // pred_check
          %p675 = pneg %p269
        $region42: #{tpu_custom_call.1} parent=11 // pred_check_branch
          %677 = sbr.rel (%p675) target = $region44
        $region43: #{tpu_custom_call.1} parent=11 // pred_region
          _
        $region44: #{tpu_custom_call.1} parent=11 // pred_fallthru
          _
        // Predicated region
        $region45: #{tpu_custom_call.1} parent=11 // pred_check
          %p678 = pneg %p290
        $region46: #{tpu_custom_call.1} parent=11 // pred_check_branch
          %680 = sbr.rel (%p678) target = $region48
        $region47: #{tpu_custom_call.1} parent=11 // pred_region
          %s682 = ssub.s32 1024, 1024
          %683 = vsyncadd [#allocation12], %s682
          %s684 = sshll.u32 [#allocation13], 4
          %s685 = int_to_ptr.vmem [resolvable:$true] %s684
          %690 = dma.hbm_to_vmem [thread:$0]  %s10, 1024, %s685, [#allocation12], 64, 64, 4
        $region48: #{tpu_custom_call.1} parent=11 // pred_fallthru
          _
        // Predicated region
        $region49: #{tpu_custom_call.1} parent=11 // pred_check
          %p691 = pneg %p311
        $region50: #{tpu_custom_call.1} parent=11 // pred_check_branch
          %693 = sbr.rel (%p691) target = $region52
        $region51: #{tpu_custom_call.1} parent=11 // pred_region
          %s695 = ssub.s32 16, 16
          %696 = vsyncadd [#allocation15], %s695
          %s698 = sshll.u32 [#allocation14], 4
          %s699 = int_to_ptr.vmem [resolvable:$true] %s698
          %701 = dma.hbm_to_vmem [thread:$0]  %s11, 16, %s699, [#allocation15]
        $region52: #{tpu_custom_call.1} parent=11 // pred_fallthru
          _
        // Predicated region
        $region53: #{tpu_custom_call.1} parent=11 // pred_check
          %p702 = pneg %p332
        $region54: #{tpu_custom_call.1} parent=11 // pred_check_branch
          %704 = sbr.rel (%p702) target = $region56
        $region55: #{tpu_custom_call.1} parent=11 // pred_region
          %s706 = ssub.s32 1024, 1024
          %707 = vsyncadd [#allocation15], %s706
          %s708 = sshll.u32 [#allocation16], 4
          %s709 = int_to_ptr.vmem [resolvable:$true] %s708
          %714 = dma.hbm_to_vmem [thread:$0]  %s12, 1024, %s709, [#allocation15], 64, 64, 4
        $region56: #{tpu_custom_call.1} parent=11 // pred_fallthru
          _
        // Predicated region
        $region57: #{tpu_custom_call.1} parent=11 // pred_check
          %p715 = pneg %p353
        $region58: #{tpu_custom_call.1} parent=11 // pred_check_branch
          %717 = sbr.rel (%p715) target = $region60
        $region59: #{tpu_custom_call.1} parent=11 // pred_region
          %s719 = ssub.s32 16, 16
          %720 = vsyncadd [#allocation18], %s719
          %s722 = sshll.u32 [#allocation17], 4
          %s723 = int_to_ptr.vmem [resolvable:$true] %s722
          %725 = dma.hbm_to_vmem [thread:$0]  %s13, 16, %s723, [#allocation18]
        $region60: #{tpu_custom_call.1} parent=11 // pred_fallthru
          _
        // Predicated region
        $region61: #{tpu_custom_call.1} parent=11 // pred_check
          %p726 = pneg %p374
        $region62: #{tpu_custom_call.1} parent=11 // pred_check_branch
          %728 = sbr.rel (%p726) target = $region64
        $region63: #{tpu_custom_call.1} parent=11 // pred_region
          %s730 = ssub.s32 1024, 1024
          %731 = vsyncadd [#allocation18], %s730
          %s732 = sshll.u32 [#allocation19], 4
          %s733 = int_to_ptr.vmem [resolvable:$true] %s732
          %738 = dma.hbm_to_vmem [thread:$0]  %s14, 1024, %s733, [#allocation18], 64, 64, 4
        $region64: #{tpu_custom_call.1} parent=11 // pred_fallthru
          _
        // Predicated region
        $region65: #{tpu_custom_call.1} parent=11 // pred_check
          %p739 = pneg %p395
        $region66: #{tpu_custom_call.1} parent=11 // pred_check_branch
          %741 = sbr.rel (%p739) target = $region68
        $region67: #{tpu_custom_call.1} parent=11 // pred_region
          %s743 = ssub.s32 16, 16
          %744 = vsyncadd [#allocation21], %s743
          %s746 = sshll.u32 [#allocation20], 4
          %s747 = int_to_ptr.vmem [resolvable:$true] %s746
          %749 = dma.hbm_to_vmem [thread:$0]  %s15, 16, %s747, [#allocation21]
        $region68: #{tpu_custom_call.1} parent=11 // pred_fallthru
          _
        // Predicated region
        $region69: #{tpu_custom_call.1} parent=11 // pred_check
          %p750 = pneg %p416
        $region70: #{tpu_custom_call.1} parent=11 // pred_check_branch
          %752 = sbr.rel (%p750) target = $region72
        $region71: #{tpu_custom_call.1} parent=11 // pred_region
          %s754 = ssub.s32 1024, 1024
          %755 = vsyncadd [#allocation21], %s754
          %s756 = sshll.u32 [#allocation22], 4
          %s757 = int_to_ptr.vmem [resolvable:$true] %s756
          %762 = dma.hbm_to_vmem [thread:$0]  %s16, 1024, %s757, [#allocation21], 64, 64, 4
        $region72: #{tpu_custom_call.1} parent=11 // pred_fallthru
          _
        // Predicated region
        $region73: #{tpu_custom_call.1} parent=11 // pred_check
          %p763 = pneg %p437
        $region74: #{tpu_custom_call.1} parent=11 // pred_check_branch
          %765 = sbr.rel (%p763) target = $region76
        $region75: #{tpu_custom_call.1} parent=11 // pred_region
          %s767 = ssub.s32 16, 16
          %768 = vsyncadd [#allocation24], %s767
          %s770 = sshll.u32 [#allocation23], 4
          %s771 = int_to_ptr.vmem [resolvable:$true] %s770
          %773 = dma.hbm_to_vmem [thread:$0]  %s17, 16, %s771, [#allocation24]
        $region76: #{tpu_custom_call.1} parent=11 // pred_fallthru
          _
        // Predicated region
        $region77: #{tpu_custom_call.1} parent=11 // pred_check
          %p774 = pneg %p458
        $region78: #{tpu_custom_call.1} parent=11 // pred_check_branch
          %776 = sbr.rel (%p774) target = $region80
        $region79: #{tpu_custom_call.1} parent=11 // pred_region
          _
        $region80: #{tpu_custom_call.1} parent=11 // pred_fallthru
          _
        // Predicated region
        $region81: #{tpu_custom_call.1} parent=11 // pred_check
          %p777 = pneg %p479
        $region82: #{tpu_custom_call.1} parent=11 // pred_check_branch
          %779 = sbr.rel (%p777) target = $region84
        $region83: #{tpu_custom_call.1} parent=11 // pred_region
          _
        $region84: #{tpu_custom_call.1} parent=11 // pred_fallthru
          _
        // Predicated region
        $region85: #{tpu_custom_call.1} parent=11 // pred_check
          %p780 = pneg %p500
        $region86: #{tpu_custom_call.1} parent=11 // pred_check_branch
          %782 = sbr.rel (%p780) target = $region88
        $region87: #{tpu_custom_call.1} parent=11 // pred_region
          %s784 = ssub.s32 1024, 1024
          %785 = vsyncadd [#allocation24], %s784
          %s786 = sshll.u32 [#allocation25], 4
          %s787 = int_to_ptr.vmem [resolvable:$true] %s786
          %792 = dma.hbm_to_vmem [thread:$0]  %s20, 1024, %s787, [#allocation24], 64, 64, 4
        $region88: #{tpu_custom_call.1} parent=11 // pred_fallthru
          _
        // Predicated region
        $region89: #{tpu_custom_call.1} parent=11 // pred_check
          %p793 = pneg %p521
        $region90: #{tpu_custom_call.1} parent=11 // pred_check_branch
          %795 = sbr.rel (%p793) target = $region92
        $region91: #{tpu_custom_call.1} parent=11 // pred_region
          _
        $region92: #{tpu_custom_call.1} parent=11 // pred_fallthru
          _
      $region12: #{tpu_custom_call.1} parent=5 // pred_fallthru
        _
      %p796 = scmp.lt.s32.totalorder %s49, 2
      // Predicated region
      $region93: #{tpu_custom_call.1} parent=5 // pred_check
        %p797 = pneg %p796
      $region94: #{tpu_custom_call.1} parent=5 // pred_check_branch
        %799 = sbr.rel (%p797) target = $region96
      $region95: #{tpu_custom_call.1} parent=5 // pred_region
        // Predicated region
        $region97: #{tpu_custom_call.1} parent=95 // pred_check
          %p800 = pneg %p69
        $region98: #{tpu_custom_call.1} parent=95 // pred_check_branch
          %802 = sbr.rel (%p800) target = $region100
        $region99: #{tpu_custom_call.1} parent=95 // pred_region
          %s803 = sand.u32 %s59, 1
          %s804 = scalar_lea.sflag [#allocation3], %s803
          %s805 = sand.u32 %s59, 1
          %s806 = smul.addr %s805, 128
          %s807 = scalar_lea.vmem [#allocation2], %s806
          %s808 = smul.u32 16, %s49
          %s810 = ssub.s32 2048, 2048
          %811 = vsyncadd %s804, %s810
          %s812 = smul.addr %s808, 128
          %s813 = scalar_lea.hbm %s0, %s812
          %s814 = sshll.u32 %s807, 4
          %s815 = int_to_ptr.vmem [resolvable:$true] %s814
          %820 = dma.hbm_to_vmem [thread:$0]  %s813, 2048, %s815, %s804, 128, 128, 8
        $region100: #{tpu_custom_call.1} parent=95 // pred_fallthru
          _
        // Predicated region
        $region101: #{tpu_custom_call.1} parent=95 // pred_check
          %p821 = pneg %p95
        $region102: #{tpu_custom_call.1} parent=95 // pred_check_branch
          %823 = sbr.rel (%p821) target = $region104
        $region103: #{tpu_custom_call.1} parent=95 // pred_region
          %s824 = sand.u32 %s49, 1
          %s825 = scalar_lea.sflag [#allocation6], %s824
          %s826 = sand.u32 %s85, 1
          %s827 = smul.addr %s826, 128
          %s828 = scalar_lea.vmem [#allocation5], %s827
          %s829 = smul.u32 16, %s49
          %s831 = ssub.s32 2048, 2048
          %832 = vsyncadd %s825, %s831
          %s833 = smul.addr %s829, 128
          %s834 = scalar_lea.hbm %s1, %s833
          %s835 = sshll.u32 %s828, 4
          %s836 = int_to_ptr.vmem [resolvable:$true] %s835
          %841 = dma.hbm_to_vmem [thread:$0]  %s834, 2048, %s836, %s825, 128, 128, 8
        $region104: #{tpu_custom_call.1} parent=95 // pred_fallthru
          _
      $region96: #{tpu_custom_call.1} parent=5 // pred_fallthru
        _
      %p842 = scmp.le.s32.totalorder 1, %s49
      %p843 = scmp.lt.s32.totalorder %s49, 3
      %p844 = pnand %p842, %p843
      %p845 = pneg %p844
      // Predicated region
      $region105: #{tpu_custom_call.1} parent=5 // pred_check
        _
      $region106: #{tpu_custom_call.1} parent=5 // pred_check_branch
        %847 = sbr.rel (%p844) target = $region108
      $region107: #{tpu_custom_call.1} parent=5 // pred_region
        %s848 = ssub.s32 %s49, 1
        %s849 = sand.u32 %s62, 1
        %s850 = scalar_lea.sflag [#allocation3], %s849
        %s851 = sand.u32 %s62, 1
        %s852 = smul.addr %s851, 128
        %s853 = scalar_lea.vmem [#allocation2], %s852
        // Predicated region
        $region109: #{tpu_custom_call.1} parent=107 // pred_check
          %p854 = pneg %p75
        $region110: #{tpu_custom_call.1} parent=107 // pred_check_branch
          %856 = sbr.rel (%p854) target = $region112
        $region111: #{tpu_custom_call.1} parent=107 // pred_region
          %857 = dma.done %s850, 2048
        $region112: #{tpu_custom_call.1} parent=107 // pred_fallthru
          _
        %s858 = sand.u32 %s54, 1
        %s859 = scalar_lea.sflag [#allocation6], %s858
        %s860 = sand.u32 %s88, 1
        %s861 = smul.addr %s860, 128
        %s862 = scalar_lea.vmem [#allocation5], %s861
        // Predicated region
        $region113: #{tpu_custom_call.1} parent=107 // pred_check
          %p863 = pneg %p101
        $region114: #{tpu_custom_call.1} parent=107 // pred_check_branch
          %865 = sbr.rel (%p863) target = $region116
        $region115: #{tpu_custom_call.1} parent=107 // pred_region
          %866 = dma.done %s859, 2048
        $region116: #{tpu_custom_call.1} parent=107 // pred_fallthru
          _
        // Predicated region
        $region117: #{tpu_custom_call.1} parent=107 // pred_check
          %p867 = pneg %p122
        $region118: #{tpu_custom_call.1} parent=107 // pred_check_branch
          %869 = sbr.rel (%p867) target = $region120
        $region119: #{tpu_custom_call.1} parent=107 // pred_region
          %870 = dma.done [#allocation6], 1024
        $region120: #{tpu_custom_call.1} parent=107 // pred_fallthru
          _
        // Predicated region
        $region121: #{tpu_custom_call.1} parent=107 // pred_check
          %p871 = pneg %p164
        $region122: #{tpu_custom_call.1} parent=107 // pred_check_branch
          %873 = sbr.rel (%p871) target = $region124
        $region123: #{tpu_custom_call.1} parent=107 // pred_region
          %874 = dma.done [#allocation9], 1024
        $region124: #{tpu_custom_call.1} parent=107 // pred_fallthru
          _
        // Predicated region
        $region125: #{tpu_custom_call.1} parent=107 // pred_check
          %p875 = pneg %p206
        $region126: #{tpu_custom_call.1} parent=107 // pred_check_branch
          %877 = sbr.rel (%p875) target = $region128
        $region127: #{tpu_custom_call.1} parent=107 // pred_region
          %878 = dma.done [#allocation9], 1024
        $region128: #{tpu_custom_call.1} parent=107 // pred_fallthru
          _
        // Predicated region
        $region129: #{tpu_custom_call.1} parent=107 // pred_check
          %p879 = pneg %p248
        $region130: #{tpu_custom_call.1} parent=107 // pred_check_branch
          %881 = sbr.rel (%p879) target = $region132
        $region131: #{tpu_custom_call.1} parent=107 // pred_region
          %882 = dma.done [#allocation12], 1024
        $region132: #{tpu_custom_call.1} parent=107 // pred_fallthru
          _
        // Predicated region
        $region133: #{tpu_custom_call.1} parent=107 // pred_check
          %p883 = pneg %p290
        $region134: #{tpu_custom_call.1} parent=107 // pred_check_branch
          %885 = sbr.rel (%p883) target = $region136
        $region135: #{tpu_custom_call.1} parent=107 // pred_region
          %886 = dma.done [#allocation12], 1024
        $region136: #{tpu_custom_call.1} parent=107 // pred_fallthru
          _
        // Predicated region
        $region137: #{tpu_custom_call.1} parent=107 // pred_check
          %p887 = pneg %p311
        $region138: #{tpu_custom_call.1} parent=107 // pred_check_branch
          %889 = sbr.rel (%p887) target = $region140
        $region139: #{tpu_custom_call.1} parent=107 // pred_region
          %890 = dma.done [#allocation15], 16
        $region140: #{tpu_custom_call.1} parent=107 // pred_fallthru
          _
        // Predicated region
        $region141: #{tpu_custom_call.1} parent=107 // pred_check
          %p891 = pneg %p332
        $region142: #{tpu_custom_call.1} parent=107 // pred_check_branch
          %893 = sbr.rel (%p891) target = $region144
        $region143: #{tpu_custom_call.1} parent=107 // pred_region
          %894 = dma.done [#allocation15], 1024
        $region144: #{tpu_custom_call.1} parent=107 // pred_fallthru
          _
        // Predicated region
        $region145: #{tpu_custom_call.1} parent=107 // pred_check
          %p895 = pneg %p353
        $region146: #{tpu_custom_call.1} parent=107 // pred_check_branch
          %897 = sbr.rel (%p895) target = $region148
        $region147: #{tpu_custom_call.1} parent=107 // pred_region
          %898 = dma.done [#allocation18], 16
        $region148: #{tpu_custom_call.1} parent=107 // pred_fallthru
          _
        // Predicated region
        $region149: #{tpu_custom_call.1} parent=107 // pred_check
          %p899 = pneg %p374
        $region150: #{tpu_custom_call.1} parent=107 // pred_check_branch
          %901 = sbr.rel (%p899) target = $region152
        $region151: #{tpu_custom_call.1} parent=107 // pred_region
          %902 = dma.done [#allocation18], 1024
        $region152: #{tpu_custom_call.1} parent=107 // pred_fallthru
          _
        // Predicated region
        $region153: #{tpu_custom_call.1} parent=107 // pred_check
          %p903 = pneg %p395
        $region154: #{tpu_custom_call.1} parent=107 // pred_check_branch
          %905 = sbr.rel (%p903) target = $region156
        $region155: #{tpu_custom_call.1} parent=107 // pred_region
          %906 = dma.done [#allocation21], 16
        $region156: #{tpu_custom_call.1} parent=107 // pred_fallthru
          _
        // Predicated region
        $region157: #{tpu_custom_call.1} parent=107 // pred_check
          %p907 = pneg %p416
        $region158: #{tpu_custom_call.1} parent=107 // pred_check_branch
          %909 = sbr.rel (%p907) target = $region160
        $region159: #{tpu_custom_call.1} parent=107 // pred_region
          %910 = dma.done [#allocation21], 1024
        $region160: #{tpu_custom_call.1} parent=107 // pred_fallthru
          _
        // Predicated region
        $region161: #{tpu_custom_call.1} parent=107 // pred_check
          %p911 = pneg %p437
        $region162: #{tpu_custom_call.1} parent=107 // pred_check_branch
          %913 = sbr.rel (%p911) target = $region164
        $region163: #{tpu_custom_call.1} parent=107 // pred_region
          %914 = dma.done [#allocation24], 16
        $region164: #{tpu_custom_call.1} parent=107 // pred_fallthru
          _
        // Predicated region
        $region165: #{tpu_custom_call.1} parent=107 // pred_check
          %p915 = pneg %p500
        $region166: #{tpu_custom_call.1} parent=107 // pred_check_branch
          %917 = sbr.rel (%p915) target = $region168
        $region167: #{tpu_custom_call.1} parent=107 // pred_region
          %918 = dma.done [#allocation24], 1024
        $region168: #{tpu_custom_call.1} parent=107 // pred_fallthru
          _
        %s919 = sand.u32 %s62, 1
        %s920 = scalar_lea.sflag [#allocation3], %s919
        %s921 = sand.u32 %s62, 1
        %s922 = smul.addr %s921, 128
        %s923 = scalar_lea.vmem [#allocation2], %s922
        %p924 = pneg %p75
        %p925 = pneg %p72
        %s926 = sand.u32 %s54, 1
        %s927 = scalar_lea.sflag [#allocation6], %s926
        %s928 = sand.u32 %s88, 1
        %s929 = smul.addr %s928, 128
        %s930 = scalar_lea.vmem [#allocation5], %s929
        %p931 = pneg %p101
        %p932 = pneg %p98
        %p933 = pneg %p122
        %p934 = pneg %p119
        %p935 = pneg %p143
        %p936 = pneg %p140
        %p937 = pneg %p164
        %p938 = pneg %p161
        %p939 = pneg %p185
        %p940 = pneg %p182
        %p941 = pneg %p206
        %p942 = pneg %p203
        %p943 = pneg %p227
        %p944 = pneg %p224
        %p945 = pneg %p248
        %p946 = pneg %p245
        %p947 = pneg %p269
        %p948 = pneg %p266
        %p949 = pneg %p290
        %p950 = pneg %p287
        %p951 = pneg %p311
        %p952 = pneg %p308
        %p953 = pneg %p332
        %p954 = pneg %p329
        %p955 = pneg %p353
        %p956 = pneg %p350
        %p957 = pneg %p374
        %p958 = pneg %p371
        %p959 = pneg %p395
        %p960 = pneg %p392
        %p961 = pneg %p416
        %p962 = pneg %p413
        %p963 = pneg %p437
        %p964 = pneg %p434
        %p965 = pneg %p458
        %p966 = pneg %p455
        %p967 = pneg %p479
        %p968 = pneg %p476
        %p969 = pneg %p500
        %p970 = pneg %p497
        %p971 = pneg %p521
        %p972 = pneg %p518
        %p973 = pneg %p547
        %p974 = pneg %p544
        %s975 = sand.u32 %s534, 1
        %s976 = scalar_lea.sflag [#allocation4], %s975
        %s977 = sand.u32 %s534, 1
        %s978 = smul.addr %s977, 128
        %s979 = scalar_lea.vmem [#allocation26], %s978
        %p980 = pneg %p573
        %p981 = pneg %p570
        %s982 = sand.u32 %s54, 1
        %s983 = scalar_lea.sflag [#allocation28], %s982
        %s984 = sand.u32 %s560, 1
        %s985 = smul.addr %s984, 128
        %s986 = scalar_lea.vmem [#allocation27], %s985
        %p987 = pneg %p599
        %p988 = pneg %p596
        %s989 = sand.u32 %s54, 1
        %s990 = scalar_lea.sflag [#allocation28], %s989
        %s991 = sand.u32 %s586, 1
        %s992 = smul.addr %s991, 128
        %s993 = scalar_lea.vmem [#allocation29], %s992
        %s994 = smul.u32 16, %s54
        %s995 = smul.u32 16, %s54
        %s996 = smul.u32 16, %s54
        %s997 = smul.u32 16, %s54
        %s998 = smul.u32 16, %s54
        %v1000 = vld [vmem:[%s853] sm:$0xff]
        %v1001 = vld [vmem:[%s853 + $0x8] sm:$0xff]
        %v1002 = vld [vmem:[%s853 + $0x10] sm:$0xff]
        %v1003 = vld [vmem:[%s853 + $0x18] sm:$0xff]
        %v1004 = vld [vmem:[%s853 + $0x20] sm:$0xff]
        %v1005 = vld [vmem:[%s853 + $0x28] sm:$0xff]
        %v1006 = vld [vmem:[%s853 + $0x30] sm:$0xff]
        %v1007 = vld [vmem:[%s853 + $0x38] sm:$0xff]
        %v1008 = vld [vmem:[%s853 + $0x40] sm:$0xff]
        %v1009 = vld [vmem:[%s853 + $0x48] sm:$0xff]
        %v1010 = vld [vmem:[%s853 + $0x50] sm:$0xff]
        %v1011 = vld [vmem:[%s853 + $0x58] sm:$0xff]
        %v1012 = vld [vmem:[%s853 + $0x60] sm:$0xff]
        %v1013 = vld [vmem:[%s853 + $0x68] sm:$0xff]
        %v1014 = vld [vmem:[%s853 + $0x70] sm:$0xff]
        %v1015 = vld [vmem:[%s853 + $0x78] sm:$0xff]
        %v1016 = vld [vmem:[#allocation7] sm:$0xf]
        %v1017 = vld [vmem:[#allocation7 + $0x4] sm:$0xf]
        %v1018 = vld [vmem:[#allocation7 + $0x8] sm:$0xf]
        %v1019 = vld [vmem:[#allocation7 + $0xc] sm:$0xf]
        %v1020 = vld [vmem:[#allocation7 + $0x10] sm:$0xf]
        %v1021 = vld [vmem:[#allocation7 + $0x14] sm:$0xf]
        %v1022 = vld [vmem:[#allocation7 + $0x18] sm:$0xf]
        %v1023 = vld [vmem:[#allocation7 + $0x1c] sm:$0xf]
        %v1024 = vld [vmem:[#allocation7 + $0x20] sm:$0xf]
        %v1025 = vld [vmem:[#allocation7 + $0x24] sm:$0xf]
        %v1026 = vld [vmem:[#allocation7 + $0x28] sm:$0xf]
        %v1027 = vld [vmem:[#allocation7 + $0x2c] sm:$0xf]
        %v1028 = vld [vmem:[#allocation7 + $0x30] sm:$0xf]
        %v1029 = vld [vmem:[#allocation7 + $0x34] sm:$0xf]
        %v1030 = vld [vmem:[#allocation7 + $0x38] sm:$0xf]
        %v1031 = vld [vmem:[#allocation7 + $0x3c] sm:$0xf]
        %v1032 = vld [vmem:[%s3] sm:$0x1]
        %v1033 = vpack.c.bf16 %v1001, %v1000
        %v1034 = vpack.c.bf16 %v1003, %v1002
        %v1035 = vpack.c.bf16 %v1005, %v1004
        %v1036 = vpack.c.bf16 %v1007, %v1006
        %v1037 = vpack.c.bf16 %v1009, %v1008
        %v1038 = vpack.c.bf16 %v1011, %v1010
        %v1039 = vpack.c.bf16 %v1013, %v1012
        %v1040 = vpack.c.bf16 %v1015, %v1014
        %v1042 = vlaneseq
        %v1043 = vshrl.u32 %v1042, 7
        %v1044 = vsub.s32 0, %v1043
        %v1045 = vrot.slane %v1032, %v1044
        %v1063 = vunpack.c.l.b16 %v1016
        %v1064 = vunpack.c.l.b16 %v1017
        %v1065 = vunpack.c.l.b16 %v1018
        %v1066 = vunpack.c.l.b16 %v1019
        %v1067 = vunpack.c.l.b16 %v1020
        %v1068 = vunpack.c.l.b16 %v1021
        %v1069 = vunpack.c.l.b16 %v1022
        %v1070 = vunpack.c.l.b16 %v1023
        %v1071 = vunpack.c.l.b16 %v1024
        %v1072 = vunpack.c.l.b16 %v1025
        %v1073 = vunpack.c.l.b16 %v1026
        %v1074 = vunpack.c.l.b16 %v1027
        %v1075 = vunpack.c.l.b16 %v1028
        %v1076 = vunpack.c.l.b16 %v1029
        %v1077 = vunpack.c.l.b16 %v1030
        %v1078 = vunpack.c.l.b16 %v1031
        %v1079 = vpack.c.b16 %v1064, %v1063
        %v1080 = vpack.c.b16 %v1066, %v1065
        %v1081 = vpack.c.b16 %v1068, %v1067
        %v1082 = vpack.c.b16 %v1070, %v1069
        %v1083 = vpack.c.b16 %v1072, %v1071
        %v1084 = vpack.c.b16 %v1074, %v1073
        %v1085 = vpack.c.b16 %v1076, %v1075
        %v1086 = vpack.c.b16 %v1078, %v1077
        %1095 = vmatprep.subr.bf16.mxu0 0
        %1096 = vmatpush1.bf16.msra.mxu0 %v1079
        %1097 = vmatprep.subr.bf16.mxu0 0
        %1098 = vmatpush1.bf16.msra.mxu0 %v1080
        %1099 = vmatprep.subr.bf16.mxu0 0
        %1100 = vmatpush1.bf16.msra.mxu0 %v1081
        %1101 = vmatprep.subr.bf16.mxu0 0
        %1102 = vmatpush1.bf16.msra.mxu0 %v1082
        %1103 = vmatprep.subr.bf16.mxu0 0
        %1104 = vmatpush1.bf16.msra.mxu0 %v1083
        %1105 = vmatprep.subr.bf16.mxu0 0
        %1106 = vmatpush1.bf16.msra.mxu0 %v1084
        %1107 = vmatprep.subr.bf16.mxu0 0
        %1108 = vmatpush1.bf16.msra.mxu0 %v1085
        %1109 = vmatprep.subr.bf16.mxu0 0
        %1110 = vmatpush1.bf16.msra.mxu0 %v1086
        %1111 = vmatprep.subr.bf16.mxu0 0
        %1112 = vmatpush1.bf16.msra.mxu0 0
        %1113 = vmatprep.subr.bf16.mxu0 0
        %1114 = vmatpush1.bf16.msra.mxu0 0
        %1115 = vmatprep.subr.bf16.mxu0 0
        %1116 = vmatpush1.bf16.msra.mxu0 0
        %1117 = vmatprep.subr.bf16.mxu0 0
        %1118 = vmatpush1.bf16.msra.mxu0 0
        %1119 = vmatprep.subr.bf16.mxu0 0
        %1120 = vmatpush1.bf16.msra.mxu0 0
        %1121 = vmatprep.subr.bf16.mxu0 0
        %1122 = vmatpush1.bf16.msra.mxu0 0
        %1123 = vmatprep.subr.bf16.mxu0 0
        %1124 = vmatpush1.bf16.msra.mxu0 0
        %1125 = vmatprep.subr.bf16.mxu0 0
        %1126 = vmatpush1.bf16.msra.mxu0 0
        %1127 = vmatprep.mubr.bf16.mxu0 0
        %1128 = vmatmul.mubr.bf16.gmra.mrb[0].mxu0 %v1033
        %v1129 = vpop.f32.mrb[0].mxu0
        %v1130 = vadd.f32 %v1045, %v1129
        %v1131 = vpop.f32.mrb[0].mxu0
        %v1132 = vpop.f32.mrb[0].mxu0
        %v1133 = vadd.f32 %v1045, %v1132
        %v1134 = vpop.f32.mrb[0].mxu0
        %1135 = vmatprep.mubr.bf16.mxu0 0
        %1136 = vmatmul.mubr.bf16.gmra.mrb[0].mxu0 %v1034
        %v1137 = vpop.f32.mrb[0].mxu0
        %v1138 = vadd.f32 %v1045, %v1137
        %v1139 = vpop.f32.mrb[0].mxu0
        %v1140 = vpop.f32.mrb[0].mxu0
        %v1141 = vadd.f32 %v1045, %v1140
        %v1142 = vpop.f32.mrb[0].mxu0
        %1143 = vmatprep.mubr.bf16.mxu0 0
        %1144 = vmatmul.mubr.bf16.gmra.mrb[0].mxu0 %v1035
        %v1145 = vpop.f32.mrb[0].mxu0
        %v1146 = vadd.f32 %v1045, %v1145
        %v1147 = vpop.f32.mrb[0].mxu0
        %v1148 = vpop.f32.mrb[0].mxu0
        %v1149 = vadd.f32 %v1045, %v1148
        %v1150 = vpop.f32.mrb[0].mxu0
        %1151 = vmatprep.mubr.bf16.mxu0 0
        %1152 = vmatmul.mubr.bf16.gmra.mrb[0].mxu0 %v1036
        %v1153 = vpop.f32.mrb[0].mxu0
        %v1154 = vadd.f32 %v1045, %v1153
        %v1155 = vpop.f32.mrb[0].mxu0
        %v1156 = vpop.f32.mrb[0].mxu0
        %v1157 = vadd.f32 %v1045, %v1156
        %v1158 = vpop.f32.mrb[0].mxu0
        %1159 = vmatprep.mubr.bf16.mxu0 0
        %1160 = vmatmul.mubr.bf16.gmra.mrb[0].mxu0 %v1037
        %v1161 = vpop.f32.mrb[0].mxu0
        %v1162 = vadd.f32 %v1045, %v1161
        %v1163 = vpop.f32.mrb[0].mxu0
        %v1164 = vpop.f32.mrb[0].mxu0
        %v1165 = vadd.f32 %v1045, %v1164
        %v1166 = vpop.f32.mrb[0].mxu0
        %1167 = vmatprep.mubr.bf16.mxu0 0
        %1168 = vmatmul.mubr.bf16.gmra.mrb[0].mxu0 %v1038
        %v1169 = vpop.f32.mrb[0].mxu0
        %v1170 = vadd.f32 %v1045, %v1169
        %v1171 = vpop.f32.mrb[0].mxu0
        %v1172 = vpop.f32.mrb[0].mxu0
        %v1173 = vadd.f32 %v1045, %v1172
        %v1174 = vpop.f32.mrb[0].mxu0
        %1175 = vmatprep.mubr.bf16.mxu0 0
        %1176 = vmatmul.mubr.bf16.gmra.mrb[0].mxu0 %v1039
        %v1177 = vpop.f32.mrb[0].mxu0
        %v1178 = vadd.f32 %v1045, %v1177
        %v1179 = vpop.f32.mrb[0].mxu0
        %v1180 = vpop.f32.mrb[0].mxu0
        %v1181 = vadd.f32 %v1045, %v1180
        %v1182 = vpop.f32.mrb[0].mxu0
        %1183 = vmatprep.mubr.bf16.mxu0 0
        %1184 = vmatmul.mubr.bf16.gmra.mrb[0].mxu0 %v1040
        %v1185 = vpop.f32.mrb[0].mxu0
        %v1186 = vadd.f32 %v1045, %v1185
        %v1187 = vpop.f32.mrb[0].mxu0
        %v1188 = vpop.f32.mrb[0].mxu0
        %v1189 = vadd.f32 %v1045, %v1188
        %v1190 = vpop.f32.mrb[0].mxu0
        %1191 = vdwg.mxu0
        %vm1192 = vcmp.gt.f32.partialorder %v1130, 0.0
        %vm1193 = vcmp.gt.f32.partialorder %v1133, 0.0
        %vm1194 = vcmp.gt.f32.partialorder %v1138, 0.0
        %vm1195 = vcmp.gt.f32.partialorder %v1141, 0.0
        %vm1196 = vcmp.gt.f32.partialorder %v1146, 0.0
        %vm1197 = vcmp.gt.f32.partialorder %v1149, 0.0
        %vm1198 = vcmp.gt.f32.partialorder %v1154, 0.0
        %vm1199 = vcmp.gt.f32.partialorder %v1157, 0.0
        %vm1200 = vcmp.gt.f32.partialorder %v1162, 0.0
        %vm1201 = vcmp.gt.f32.partialorder %v1165, 0.0
        %vm1202 = vcmp.gt.f32.partialorder %v1170, 0.0
        %vm1203 = vcmp.gt.f32.partialorder %v1173, 0.0
        %vm1204 = vcmp.gt.f32.partialorder %v1178, 0.0
        %vm1205 = vcmp.gt.f32.partialorder %v1181, 0.0
        %vm1206 = vcmp.gt.f32.partialorder %v1186, 0.0
        %vm1207 = vcmp.gt.f32.partialorder %v1189, 0.0
        %v1208 = vmul.f32 %v1130, 0.01
        %v1209 = vmul.f32 %v1133, 0.01
        %v1210 = vmul.f32 %v1138, 0.01
        %v1211 = vmul.f32 %v1141, 0.01
        %v1212 = vmul.f32 %v1146, 0.01
        %v1213 = vmul.f32 %v1149, 0.01
        %v1214 = vmul.f32 %v1154, 0.01
        %v1215 = vmul.f32 %v1157, 0.01
        %v1216 = vmul.f32 %v1162, 0.01
        %v1217 = vmul.f32 %v1165, 0.01
        %v1218 = vmul.f32 %v1170, 0.01
        %v1219 = vmul.f32 %v1173, 0.01
        %v1220 = vmul.f32 %v1178, 0.01
        %v1221 = vmul.f32 %v1181, 0.01
        %v1222 = vmul.f32 %v1186, 0.01
        %v1223 = vmul.f32 %v1189, 0.01
        %v1224 = vsel %vm1192, %v1130, %v1208
        %v1225 = vsel %vm1193, %v1133, %v1209
        %v1226 = vsel %vm1194, %v1138, %v1210
        %v1227 = vsel %vm1195, %v1141, %v1211
        %v1228 = vsel %vm1196, %v1146, %v1212
        %v1229 = vsel %vm1197, %v1149, %v1213
        %v1230 = vsel %vm1198, %v1154, %v1214
        %v1231 = vsel %vm1199, %v1157, %v1215
        %v1232 = vsel %vm1200, %v1162, %v1216
        %v1233 = vsel %vm1201, %v1165, %v1217
        %v1234 = vsel %vm1202, %v1170, %v1218
        %v1235 = vsel %vm1203, %v1173, %v1219
        %v1236 = vsel %vm1204, %v1178, %v1220
        %v1237 = vsel %vm1205, %v1181, %v1221
        %v1238 = vsel %vm1206, %v1186, %v1222
        %v1239 = vsel %vm1207, %v1189, %v1223
        %v1240 = vld [vmem:[#allocation8] sm:$0xf]
        %v1241 = vld [vmem:[#allocation8 + $0x4] sm:$0xf]
        %v1242 = vld [vmem:[#allocation8 + $0x8] sm:$0xf]
        %v1243 = vld [vmem:[#allocation8 + $0xc] sm:$0xf]
        %v1244 = vld [vmem:[#allocation8 + $0x10] sm:$0xf]
        %v1245 = vld [vmem:[#allocation8 + $0x14] sm:$0xf]
        %v1246 = vld [vmem:[#allocation8 + $0x18] sm:$0xf]
        %v1247 = vld [vmem:[#allocation8 + $0x1c] sm:$0xf]
        %v1248 = vld [vmem:[#allocation8 + $0x20] sm:$0xf]
        %v1249 = vld [vmem:[#allocation8 + $0x24] sm:$0xf]
        %v1250 = vld [vmem:[#allocation8 + $0x28] sm:$0xf]
        %v1251 = vld [vmem:[#allocation8 + $0x2c] sm:$0xf]
        %v1252 = vld [vmem:[#allocation8 + $0x30] sm:$0xf]
        %v1253 = vld [vmem:[#allocation8 + $0x34] sm:$0xf]
        %v1254 = vld [vmem:[#allocation8 + $0x38] sm:$0xf]
        %v1255 = vld [vmem:[#allocation8 + $0x3c] sm:$0xf]
        %v1256 = vld [vmem:[%s5] sm:$0x1]
        %v1257 = vpack.c.bf16 %v1225, %v1224
        %v1258 = vpack.c.bf16 %v1227, %v1226
        %v1259 = vpack.c.bf16 %v1229, %v1228
        %v1260 = vpack.c.bf16 %v1231, %v1230
        %v1261 = vpack.c.bf16 %v1233, %v1232
        %v1262 = vpack.c.bf16 %v1235, %v1234
        %v1263 = vpack.c.bf16 %v1237, %v1236
        %v1264 = vpack.c.bf16 %v1239, %v1238
        %v1266 = vlaneseq
        %v1267 = vshrl.u32 %v1266, 7
        %v1268 = vsub.s32 0, %v1267
        %v1269 = vrot.slane %v1256, %v1268
        %v1287 = vunpack.c.l.b16 %v1240
        %v1288 = vunpack.c.l.b16 %v1241
        %v1289 = vunpack.c.l.b16 %v1242
        %v1290 = vunpack.c.l.b16 %v1243
        %v1291 = vunpack.c.l.b16 %v1244
        %v1292 = vunpack.c.l.b16 %v1245
        %v1293 = vunpack.c.l.b16 %v1246
        %v1294 = vunpack.c.l.b16 %v1247
        %v1295 = vunpack.c.l.b16 %v1248
        %v1296 = vunpack.c.l.b16 %v1249
        %v1297 = vunpack.c.l.b16 %v1250
        %v1298 = vunpack.c.l.b16 %v1251
        %v1299 = vunpack.c.l.b16 %v1252
        %v1300 = vunpack.c.l.b16 %v1253
        %v1301 = vunpack.c.l.b16 %v1254
        %v1302 = vunpack.c.l.b16 %v1255
        %v1303 = vpack.c.b16 %v1288, %v1287
        %v1304 = vpack.c.b16 %v1290, %v1289
        %v1305 = vpack.c.b16 %v1292, %v1291
        %v1306 = vpack.c.b16 %v1294, %v1293
        %v1307 = vpack.c.b16 %v1296, %v1295
        %v1308 = vpack.c.b16 %v1298, %v1297
        %v1309 = vpack.c.b16 %v1300, %v1299
        %v1310 = vpack.c.b16 %v1302, %v1301
        %1319 = vmatprep.subr.bf16.mxu0 0
        %1320 = vmatpush1.bf16.msra.mxu0 %v1303
        %1321 = vmatprep.subr.bf16.mxu0 0
        %1322 = vmatpush1.bf16.msra.mxu0 %v1304
        %1323 = vmatprep.subr.bf16.mxu0 0
        %1324 = vmatpush1.bf16.msra.mxu0 %v1305
        %1325 = vmatprep.subr.bf16.mxu0 0
        %1326 = vmatpush1.bf16.msra.mxu0 %v1306
        %1327 = vmatprep.subr.bf16.mxu0 0
        %1328 = vmatpush1.bf16.msra.mxu0 %v1307
        %1329 = vmatprep.subr.bf16.mxu0 0
        %1330 = vmatpush1.bf16.msra.mxu0 %v1308
        %1331 = vmatprep.subr.bf16.mxu0 0
        %1332 = vmatpush1.bf16.msra.mxu0 %v1309
        %1333 = vmatprep.subr.bf16.mxu0 0
        %1334 = vmatpush1.bf16.msra.mxu0 %v1310
        %1335 = vmatprep.subr.bf16.mxu0 0
        %1336 = vmatpush1.bf16.msra.mxu0 0
        %1337 = vmatprep.subr.bf16.mxu0 0
        %1338 = vmatpush1.bf16.msra.mxu0 0
        %1339 = vmatprep.subr.bf16.mxu0 0
        %1340 = vmatpush1.bf16.msra.mxu0 0
        %1341 = vmatprep.subr.bf16.mxu0 0
        %1342 = vmatpush1.bf16.msra.mxu0 0
        %1343 = vmatprep.subr.bf16.mxu0 0
        %1344 = vmatpush1.bf16.msra.mxu0 0
        %1345 = vmatprep.subr.bf16.mxu0 0
        %1346 = vmatpush1.bf16.msra.mxu0 0
        %1347 = vmatprep.subr.bf16.mxu0 0
        %1348 = vmatpush1.bf16.msra.mxu0 0
        %1349 = vmatprep.subr.bf16.mxu0 0
        %1350 = vmatpush1.bf16.msra.mxu0 0
        %1351 = vmatprep.mubr.bf16.mxu0 0
        %1352 = vmatmul.mubr.bf16.gmra.mrb[0].mxu0 %v1257
        %v1353 = vpop.f32.mrb[0].mxu0
        %v1354 = vadd.f32 %v1269, %v1353
        %v1355 = vpop.f32.mrb[0].mxu0
        %v1356 = vpop.f32.mrb[0].mxu0
        %v1357 = vadd.f32 %v1269, %v1356
        %v1358 = vpop.f32.mrb[0].mxu0
        %1359 = vmatprep.mubr.bf16.mxu0 0
        %1360 = vmatmul.mubr.bf16.gmra.mrb[0].mxu0 %v1258
        %v1361 = vpop.f32.mrb[0].mxu0
        %v1362 = vadd.f32 %v1269, %v1361
        %v1363 = vpop.f32.mrb[0].mxu0
        %v1364 = vpop.f32.mrb[0].mxu0
        %v1365 = vadd.f32 %v1269, %v1364
        %v1366 = vpop.f32.mrb[0].mxu0
        %1367 = vmatprep.mubr.bf16.mxu0 0
        %1368 = vmatmul.mubr.bf16.gmra.mrb[0].mxu0 %v1259
        %v1369 = vpop.f32.mrb[0].mxu0
        %v1370 = vadd.f32 %v1269, %v1369
        %v1371 = vpop.f32.mrb[0].mxu0
        %v1372 = vpop.f32.mrb[0].mxu0
        %v1373 = vadd.f32 %v1269, %v1372
        %v1374 = vpop.f32.mrb[0].mxu0
        %1375 = vmatprep.mubr.bf16.mxu0 0
        %1376 = vmatmul.mubr.bf16.gmra.mrb[0].mxu0 %v1260
        %v1377 = vpop.f32.mrb[0].mxu0
        %v1378 = vadd.f32 %v1269, %v1377
        %v1379 = vpop.f32.mrb[0].mxu0
        %v1380 = vpop.f32.mrb[0].mxu0
        %v1381 = vadd.f32 %v1269, %v1380
        %v1382 = vpop.f32.mrb[0].mxu0
        %1383 = vmatprep.mubr.bf16.mxu0 0
        %1384 = vmatmul.mubr.bf16.gmra.mrb[0].mxu0 %v1261
        %v1385 = vpop.f32.mrb[0].mxu0
        %v1386 = vadd.f32 %v1269, %v1385
        %v1387 = vpop.f32.mrb[0].mxu0
        %v1388 = vpop.f32.mrb[0].mxu0
        %v1389 = vadd.f32 %v1269, %v1388
        %v1390 = vpop.f32.mrb[0].mxu0
        %1391 = vmatprep.mubr.bf16.mxu0 0
        %1392 = vmatmul.mubr.bf16.gmra.mrb[0].mxu0 %v1262
        %v1393 = vpop.f32.mrb[0].mxu0
        %v1394 = vadd.f32 %v1269, %v1393
        %v1395 = vpop.f32.mrb[0].mxu0
        %v1396 = vpop.f32.mrb[0].mxu0
        %v1397 = vadd.f32 %v1269, %v1396
        %v1398 = vpop.f32.mrb[0].mxu0
        %1399 = vmatprep.mubr.bf16.mxu0 0
        %1400 = vmatmul.mubr.bf16.gmra.mrb[0].mxu0 %v1263
        %v1401 = vpop.f32.mrb[0].mxu0
        %v1402 = vadd.f32 %v1269, %v1401
        %v1403 = vpop.f32.mrb[0].mxu0
        %v1404 = vpop.f32.mrb[0].mxu0
        %v1405 = vadd.f32 %v1269, %v1404
        %v1406 = vpop.f32.mrb[0].mxu0
        %1407 = vmatprep.mubr.bf16.mxu0 0
        %1408 = vmatmul.mubr.bf16.gmra.mrb[0].mxu0 %v1264
        %v1409 = vpop.f32.mrb[0].mxu0
        %v1410 = vadd.f32 %v1269, %v1409
        %v1411 = vpop.f32.mrb[0].mxu0
        %v1412 = vpop.f32.mrb[0].mxu0
        %v1413 = vadd.f32 %v1269, %v1412
        %v1414 = vpop.f32.mrb[0].mxu0
        %1415 = vdwg.mxu0
        %vm1416 = vcmp.gt.f32.partialorder %v1354, 0.0
        %vm1417 = vcmp.gt.f32.partialorder %v1357, 0.0
        %vm1418 = vcmp.gt.f32.partialorder %v1362, 0.0
        %vm1419 = vcmp.gt.f32.partialorder %v1365, 0.0
        %vm1420 = vcmp.gt.f32.partialorder %v1370, 0.0
        %vm1421 = vcmp.gt.f32.partialorder %v1373, 0.0
        %vm1422 = vcmp.gt.f32.partialorder %v1378, 0.0
        %vm1423 = vcmp.gt.f32.partialorder %v1381, 0.0
        %vm1424 = vcmp.gt.f32.partialorder %v1386, 0.0
        %vm1425 = vcmp.gt.f32.partialorder %v1389, 0.0
        %vm1426 = vcmp.gt.f32.partialorder %v1394, 0.0
        %vm1427 = vcmp.gt.f32.partialorder %v1397, 0.0
        %vm1428 = vcmp.gt.f32.partialorder %v1402, 0.0
        %vm1429 = vcmp.gt.f32.partialorder %v1405, 0.0
        %vm1430 = vcmp.gt.f32.partialorder %v1410, 0.0
        %vm1431 = vcmp.gt.f32.partialorder %v1413, 0.0
        %v1432 = vmul.f32 %v1354, 0.01
        %v1433 = vmul.f32 %v1357, 0.01
        %v1434 = vmul.f32 %v1362, 0.01
        %v1435 = vmul.f32 %v1365, 0.01
        %v1436 = vmul.f32 %v1370, 0.01
        %v1437 = vmul.f32 %v1373, 0.01
        %v1438 = vmul.f32 %v1378, 0.01
        %v1439 = vmul.f32 %v1381, 0.01
        %v1440 = vmul.f32 %v1386, 0.01
        %v1441 = vmul.f32 %v1389, 0.01
        %v1442 = vmul.f32 %v1394, 0.01
        %v1443 = vmul.f32 %v1397, 0.01
        %v1444 = vmul.f32 %v1402, 0.01
        %v1445 = vmul.f32 %v1405, 0.01
        %v1446 = vmul.f32 %v1410, 0.01
        %v1447 = vmul.f32 %v1413, 0.01
        %v1448 = vsel %vm1416, %v1354, %v1432
        %v1449 = vsel %vm1417, %v1357, %v1433
        %v1450 = vsel %vm1418, %v1362, %v1434
        %v1451 = vsel %vm1419, %v1365, %v1435
        %v1452 = vsel %vm1420, %v1370, %v1436
        %v1453 = vsel %vm1421, %v1373, %v1437
        %v1454 = vsel %vm1422, %v1378, %v1438
        %v1455 = vsel %vm1423, %v1381, %v1439
        %v1456 = vsel %vm1424, %v1386, %v1440
        %v1457 = vsel %vm1425, %v1389, %v1441
        %v1458 = vsel %vm1426, %v1394, %v1442
        %v1459 = vsel %vm1427, %v1397, %v1443
        %v1460 = vsel %vm1428, %v1402, %v1444
        %v1461 = vsel %vm1429, %v1405, %v1445
        %v1462 = vsel %vm1430, %v1410, %v1446
        %v1463 = vsel %vm1431, %v1413, %v1447
        %v1464 = vld [vmem:[#allocation10] sm:$0xf]
        %v1465 = vld [vmem:[#allocation10 + $0x4] sm:$0xf]
        %v1466 = vld [vmem:[#allocation10 + $0x8] sm:$0xf]
        %v1467 = vld [vmem:[#allocation10 + $0xc] sm:$0xf]
        %v1468 = vld [vmem:[#allocation10 + $0x10] sm:$0xf]
        %v1469 = vld [vmem:[#allocation10 + $0x14] sm:$0xf]
        %v1470 = vld [vmem:[#allocation10 + $0x18] sm:$0xf]
        %v1471 = vld [vmem:[#allocation10 + $0x1c] sm:$0xf]
        %v1472 = vld [vmem:[#allocation10 + $0x20] sm:$0xf]
        %v1473 = vld [vmem:[#allocation10 + $0x24] sm:$0xf]
        %v1474 = vld [vmem:[#allocation10 + $0x28] sm:$0xf]
        %v1475 = vld [vmem:[#allocation10 + $0x2c] sm:$0xf]
        %v1476 = vld [vmem:[#allocation10 + $0x30] sm:$0xf]
        %v1477 = vld [vmem:[#allocation10 + $0x34] sm:$0xf]
        %v1478 = vld [vmem:[#allocation10 + $0x38] sm:$0xf]
        %v1479 = vld [vmem:[#allocation10 + $0x3c] sm:$0xf]
        %v1480 = vld [vmem:[%s7] sm:$0x1]
        %v1481 = vpack.c.bf16 %v1449, %v1448
        %v1482 = vpack.c.bf16 %v1451, %v1450
        %v1483 = vpack.c.bf16 %v1453, %v1452
        %v1484 = vpack.c.bf16 %v1455, %v1454
        %v1485 = vpack.c.bf16 %v1457, %v1456
        %v1486 = vpack.c.bf16 %v1459, %v1458
        %v1487 = vpack.c.bf16 %v1461, %v1460
        %v1488 = vpack.c.bf16 %v1463, %v1462
        %v1490 = vlaneseq
        %v1491 = vshrl.u32 %v1490, 7
        %v1492 = vsub.s32 0, %v1491
        %v1493 = vrot.slane %v1480, %v1492
        %v1511 = vunpack.c.l.b16 %v1464
        %v1512 = vunpack.c.l.b16 %v1465
        %v1513 = vunpack.c.l.b16 %v1466
        %v1514 = vunpack.c.l.b16 %v1467
        %v1515 = vunpack.c.l.b16 %v1468
        %v1516 = vunpack.c.l.b16 %v1469
        %v1517 = vunpack.c.l.b16 %v1470
        %v1518 = vunpack.c.l.b16 %v1471
        %v1519 = vunpack.c.l.b16 %v1472
        %v1520 = vunpack.c.l.b16 %v1473
        %v1521 = vunpack.c.l.b16 %v1474
        %v1522 = vunpack.c.l.b16 %v1475
        %v1523 = vunpack.c.l.b16 %v1476
        %v1524 = vunpack.c.l.b16 %v1477
        %v1525 = vunpack.c.l.b16 %v1478
        %v1526 = vunpack.c.l.b16 %v1479
        %v1527 = vpack.c.b16 %v1512, %v1511
        %v1528 = vpack.c.b16 %v1514, %v1513
        %v1529 = vpack.c.b16 %v1516, %v1515
        %v1530 = vpack.c.b16 %v1518, %v1517
        %v1531 = vpack.c.b16 %v1520, %v1519
        %v1532 = vpack.c.b16 %v1522, %v1521
        %v1533 = vpack.c.b16 %v1524, %v1523
        %v1534 = vpack.c.b16 %v1526, %v1525
        %1543 = vmatprep.subr.bf16.mxu0 0
        %1544 = vmatpush1.bf16.msra.mxu0 %v1527
        %1545 = vmatprep.subr.bf16.mxu0 0
        %1546 = vmatpush1.bf16.msra.mxu0 %v1528
        %1547 = vmatprep.subr.bf16.mxu0 0
        %1548 = vmatpush1.bf16.msra.mxu0 %v1529
        %1549 = vmatprep.subr.bf16.mxu0 0
        %1550 = vmatpush1.bf16.msra.mxu0 %v1530
        %1551 = vmatprep.subr.bf16.mxu0 0
        %1552 = vmatpush1.bf16.msra.mxu0 %v1531
        %1553 = vmatprep.subr.bf16.mxu0 0
        %1554 = vmatpush1.bf16.msra.mxu0 %v1532
        %1555 = vmatprep.subr.bf16.mxu0 0
        %1556 = vmatpush1.bf16.msra.mxu0 %v1533
        %1557 = vmatprep.subr.bf16.mxu0 0
        %1558 = vmatpush1.bf16.msra.mxu0 %v1534
        %1559 = vmatprep.subr.bf16.mxu0 0
        %1560 = vmatpush1.bf16.msra.mxu0 0
        %1561 = vmatprep.subr.bf16.mxu0 0
        %1562 = vmatpush1.bf16.msra.mxu0 0
        %1563 = vmatprep.subr.bf16.mxu0 0
        %1564 = vmatpush1.bf16.msra.mxu0 0
        %1565 = vmatprep.subr.bf16.mxu0 0
        %1566 = vmatpush1.bf16.msra.mxu0 0
        %1567 = vmatprep.subr.bf16.mxu0 0
        %1568 = vmatpush1.bf16.msra.mxu0 0
        %1569 = vmatprep.subr.bf16.mxu0 0
        %1570 = vmatpush1.bf16.msra.mxu0 0
        %1571 = vmatprep.subr.bf16.mxu0 0
        %1572 = vmatpush1.bf16.msra.mxu0 0
        %1573 = vmatprep.subr.bf16.mxu0 0
        %1574 = vmatpush1.bf16.msra.mxu0 0
        %1575 = vmatprep.mubr.bf16.mxu0 0
        %1576 = vmatmul.mubr.bf16.gmra.mrb[0].mxu0 %v1481
        %v1577 = vpop.f32.mrb[0].mxu0
        %v1578 = vadd.f32 %v1493, %v1577
        %v1579 = vpop.f32.mrb[0].mxu0
        %v1580 = vpop.f32.mrb[0].mxu0
        %v1581 = vadd.f32 %v1493, %v1580
        %v1582 = vpop.f32.mrb[0].mxu0
        %1583 = vmatprep.mubr.bf16.mxu0 0
        %1584 = vmatmul.mubr.bf16.gmra.mrb[0].mxu0 %v1482
        %v1585 = vpop.f32.mrb[0].mxu0
        %v1586 = vadd.f32 %v1493, %v1585
        %v1587 = vpop.f32.mrb[0].mxu0
        %v1588 = vpop.f32.mrb[0].mxu0
        %v1589 = vadd.f32 %v1493, %v1588
        %v1590 = vpop.f32.mrb[0].mxu0
        %1591 = vmatprep.mubr.bf16.mxu0 0
        %1592 = vmatmul.mubr.bf16.gmra.mrb[0].mxu0 %v1483
        %v1593 = vpop.f32.mrb[0].mxu0
        %v1594 = vadd.f32 %v1493, %v1593
        %v1595 = vpop.f32.mrb[0].mxu0
        %v1596 = vpop.f32.mrb[0].mxu0
        %v1597 = vadd.f32 %v1493, %v1596
        %v1598 = vpop.f32.mrb[0].mxu0
        %1599 = vmatprep.mubr.bf16.mxu0 0
        %1600 = vmatmul.mubr.bf16.gmra.mrb[0].mxu0 %v1484
        %v1601 = vpop.f32.mrb[0].mxu0
        %v1602 = vadd.f32 %v1493, %v1601
        %v1603 = vpop.f32.mrb[0].mxu0
        %v1604 = vpop.f32.mrb[0].mxu0
        %v1605 = vadd.f32 %v1493, %v1604
        %v1606 = vpop.f32.mrb[0].mxu0
        %1607 = vmatprep.mubr.bf16.mxu0 0
        %1608 = vmatmul.mubr.bf16.gmra.mrb[0].mxu0 %v1485
        %v1609 = vpop.f32.mrb[0].mxu0
        %v1610 = vadd.f32 %v1493, %v1609
        %v1611 = vpop.f32.mrb[0].mxu0
        %v1612 = vpop.f32.mrb[0].mxu0
        %v1613 = vadd.f32 %v1493, %v1612
        %v1614 = vpop.f32.mrb[0].mxu0
        %1615 = vmatprep.mubr.bf16.mxu0 0
        %1616 = vmatmul.mubr.bf16.gmra.mrb[0].mxu0 %v1486
        %v1617 = vpop.f32.mrb[0].mxu0
        %v1618 = vadd.f32 %v1493, %v1617
        %v1619 = vpop.f32.mrb[0].mxu0
        %v1620 = vpop.f32.mrb[0].mxu0
        %v1621 = vadd.f32 %v1493, %v1620
        %v1622 = vpop.f32.mrb[0].mxu0
        %1623 = vmatprep.mubr.bf16.mxu0 0
        %1624 = vmatmul.mubr.bf16.gmra.mrb[0].mxu0 %v1487
        %v1625 = vpop.f32.mrb[0].mxu0
        %v1626 = vadd.f32 %v1493, %v1625
        %v1627 = vpop.f32.mrb[0].mxu0
        %v1628 = vpop.f32.mrb[0].mxu0
        %v1629 = vadd.f32 %v1493, %v1628
        %v1630 = vpop.f32.mrb[0].mxu0
        %1631 = vmatprep.mubr.bf16.mxu0 0
        %1632 = vmatmul.mubr.bf16.gmra.mrb[0].mxu0 %v1488
        %v1633 = vpop.f32.mrb[0].mxu0
        %v1634 = vadd.f32 %v1493, %v1633
        %v1635 = vpop.f32.mrb[0].mxu0
        %v1636 = vpop.f32.mrb[0].mxu0
        %v1637 = vadd.f32 %v1493, %v1636
        %v1638 = vpop.f32.mrb[0].mxu0
        %1639 = vdwg.mxu0
        %vm1640 = vcmp.gt.f32.partialorder %v1578, 0.0
        %vm1641 = vcmp.gt.f32.partialorder %v1581, 0.0
        %vm1642 = vcmp.gt.f32.partialorder %v1586, 0.0
        %vm1643 = vcmp.gt.f32.partialorder %v1589, 0.0
        %vm1644 = vcmp.gt.f32.partialorder %v1594, 0.0
        %vm1645 = vcmp.gt.f32.partialorder %v1597, 0.0
        %vm1646 = vcmp.gt.f32.partialorder %v1602, 0.0
        %vm1647 = vcmp.gt.f32.partialorder %v1605, 0.0
        %vm1648 = vcmp.gt.f32.partialorder %v1610, 0.0
        %vm1649 = vcmp.gt.f32.partialorder %v1613, 0.0
        %vm1650 = vcmp.gt.f32.partialorder %v1618, 0.0
        %vm1651 = vcmp.gt.f32.partialorder %v1621, 0.0
        %vm1652 = vcmp.gt.f32.partialorder %v1626, 0.0
        %vm1653 = vcmp.gt.f32.partialorder %v1629, 0.0
        %vm1654 = vcmp.gt.f32.partialorder %v1634, 0.0
        %vm1655 = vcmp.gt.f32.partialorder %v1637, 0.0
        %v1656 = vmul.f32 %v1578, 0.01
        %v1657 = vmul.f32 %v1581, 0.01
        %v1658 = vmul.f32 %v1586, 0.01
        %v1659 = vmul.f32 %v1589, 0.01
        %v1660 = vmul.f32 %v1594, 0.01
        %v1661 = vmul.f32 %v1597, 0.01
        %v1662 = vmul.f32 %v1602, 0.01
        %v1663 = vmul.f32 %v1605, 0.01
        %v1664 = vmul.f32 %v1610, 0.01
        %v1665 = vmul.f32 %v1613, 0.01
        %v1666 = vmul.f32 %v1618, 0.01
        %v1667 = vmul.f32 %v1621, 0.01
        %v1668 = vmul.f32 %v1626, 0.01
        %v1669 = vmul.f32 %v1629, 0.01
        %v1670 = vmul.f32 %v1634, 0.01
        %v1671 = vmul.f32 %v1637, 0.01
        %v1672 = vsel %vm1640, %v1578, %v1656
        %v1673 = vsel %vm1641, %v1581, %v1657
        %v1674 = vsel %vm1642, %v1586, %v1658
        %v1675 = vsel %vm1643, %v1589, %v1659
        %v1676 = vsel %vm1644, %v1594, %v1660
        %v1677 = vsel %vm1645, %v1597, %v1661
        %v1678 = vsel %vm1646, %v1602, %v1662
        %v1679 = vsel %vm1647, %v1605, %v1663
        %v1680 = vsel %vm1648, %v1610, %v1664
        %v1681 = vsel %vm1649, %v1613, %v1665
        %v1682 = vsel %vm1650, %v1618, %v1666
        %v1683 = vsel %vm1651, %v1621, %v1667
        %v1684 = vsel %vm1652, %v1626, %v1668
        %v1685 = vsel %vm1653, %v1629, %v1669
        %v1686 = vsel %vm1654, %v1634, %v1670
        %v1687 = vsel %vm1655, %v1637, %v1671
        %v1688 = vld [vmem:[#allocation11] sm:$0xf]
        %v1689 = vld [vmem:[#allocation11 + $0x4] sm:$0xf]
        %v1690 = vld [vmem:[#allocation11 + $0x8] sm:$0xf]
        %v1691 = vld [vmem:[#allocation11 + $0xc] sm:$0xf]
        %v1692 = vld [vmem:[#allocation11 + $0x10] sm:$0xf]
        %v1693 = vld [vmem:[#allocation11 + $0x14] sm:$0xf]
        %v1694 = vld [vmem:[#allocation11 + $0x18] sm:$0xf]
        %v1695 = vld [vmem:[#allocation11 + $0x1c] sm:$0xf]
        %v1696 = vld [vmem:[#allocation11 + $0x20] sm:$0xf]
        %v1697 = vld [vmem:[#allocation11 + $0x24] sm:$0xf]
        %v1698 = vld [vmem:[#allocation11 + $0x28] sm:$0xf]
        %v1699 = vld [vmem:[#allocation11 + $0x2c] sm:$0xf]
        %v1700 = vld [vmem:[#allocation11 + $0x30] sm:$0xf]
        %v1701 = vld [vmem:[#allocation11 + $0x34] sm:$0xf]
        %v1702 = vld [vmem:[#allocation11 + $0x38] sm:$0xf]
        %v1703 = vld [vmem:[#allocation11 + $0x3c] sm:$0xf]
        %v1704 = vld [vmem:[%s9] sm:$0x1]
        %v1705 = vpack.c.bf16 %v1673, %v1672
        %v1706 = vpack.c.bf16 %v1675, %v1674
        %v1707 = vpack.c.bf16 %v1677, %v1676
        %v1708 = vpack.c.bf16 %v1679, %v1678
        %v1709 = vpack.c.bf16 %v1681, %v1680
        %v1710 = vpack.c.bf16 %v1683, %v1682
        %v1711 = vpack.c.bf16 %v1685, %v1684
        %v1712 = vpack.c.bf16 %v1687, %v1686
        %v1714 = vlaneseq
        %v1715 = vshrl.u32 %v1714, 7
        %v1716 = vsub.s32 0, %v1715
        %v1717 = vrot.slane %v1704, %v1716
        %v1735 = vunpack.c.l.b16 %v1688
        %v1736 = vunpack.c.l.b16 %v1689
        %v1737 = vunpack.c.l.b16 %v1690
        %v1738 = vunpack.c.l.b16 %v1691
        %v1739 = vunpack.c.l.b16 %v1692
        %v1740 = vunpack.c.l.b16 %v1693
        %v1741 = vunpack.c.l.b16 %v1694
        %v1742 = vunpack.c.l.b16 %v1695
        %v1743 = vunpack.c.l.b16 %v1696
        %v1744 = vunpack.c.l.b16 %v1697
        %v1745 = vunpack.c.l.b16 %v1698
        %v1746 = vunpack.c.l.b16 %v1699
        %v1747 = vunpack.c.l.b16 %v1700
        %v1748 = vunpack.c.l.b16 %v1701
        %v1749 = vunpack.c.l.b16 %v1702
        %v1750 = vunpack.c.l.b16 %v1703
        %v1751 = vpack.c.b16 %v1736, %v1735
        %v1752 = vpack.c.b16 %v1738, %v1737
        %v1753 = vpack.c.b16 %v1740, %v1739
        %v1754 = vpack.c.b16 %v1742, %v1741
        %v1755 = vpack.c.b16 %v1744, %v1743
        %v1756 = vpack.c.b16 %v1746, %v1745
        %v1757 = vpack.c.b16 %v1748, %v1747
        %v1758 = vpack.c.b16 %v1750, %v1749
        %1767 = vmatprep.subr.bf16.mxu0 0
        %1768 = vmatpush1.bf16.msra.mxu0 %v1751
        %1769 = vmatprep.subr.bf16.mxu0 0
        %1770 = vmatpush1.bf16.msra.mxu0 %v1752
        %1771 = vmatprep.subr.bf16.mxu0 0
        %1772 = vmatpush1.bf16.msra.mxu0 %v1753
        %1773 = vmatprep.subr.bf16.mxu0 0
        %1774 = vmatpush1.bf16.msra.mxu0 %v1754
        %1775 = vmatprep.subr.bf16.mxu0 0
        %1776 = vmatpush1.bf16.msra.mxu0 %v1755
        %1777 = vmatprep.subr.bf16.mxu0 0
        %1778 = vmatpush1.bf16.msra.mxu0 %v1756
        %1779 = vmatprep.subr.bf16.mxu0 0
        %1780 = vmatpush1.bf16.msra.mxu0 %v1757
        %1781 = vmatprep.subr.bf16.mxu0 0
        %1782 = vmatpush1.bf16.msra.mxu0 %v1758
        %1783 = vmatprep.subr.bf16.mxu0 0
        %1784 = vmatpush1.bf16.msra.mxu0 0
        %1785 = vmatprep.subr.bf16.mxu0 0
        %1786 = vmatpush1.bf16.msra.mxu0 0
        %1787 = vmatprep.subr.bf16.mxu0 0
        %1788 = vmatpush1.bf16.msra.mxu0 0
        %1789 = vmatprep.subr.bf16.mxu0 0
        %1790 = vmatpush1.bf16.msra.mxu0 0
        %1791 = vmatprep.subr.bf16.mxu0 0
        %1792 = vmatpush1.bf16.msra.mxu0 0
        %1793 = vmatprep.subr.bf16.mxu0 0
        %1794 = vmatpush1.bf16.msra.mxu0 0
        %1795 = vmatprep.subr.bf16.mxu0 0
        %1796 = vmatpush1.bf16.msra.mxu0 0
        %1797 = vmatprep.subr.bf16.mxu0 0
        %1798 = vmatpush1.bf16.msra.mxu0 0
        %1799 = vmatprep.mubr.bf16.mxu0 0
        %1800 = vmatmul.mubr.bf16.gmra.mrb[0].mxu0 %v1705
        %v1801 = vpop.f32.mrb[0].mxu0
        %v1802 = vadd.f32 %v1717, %v1801
        %v1803 = vpop.f32.mrb[0].mxu0
        %v1804 = vpop.f32.mrb[0].mxu0
        %v1805 = vadd.f32 %v1717, %v1804
        %v1806 = vpop.f32.mrb[0].mxu0
        %1807 = vmatprep.mubr.bf16.mxu0 0
        %1808 = vmatmul.mubr.bf16.gmra.mrb[0].mxu0 %v1706
        %v1809 = vpop.f32.mrb[0].mxu0
        %v1810 = vadd.f32 %v1717, %v1809
        %v1811 = vpop.f32.mrb[0].mxu0
        %v1812 = vpop.f32.mrb[0].mxu0
        %v1813 = vadd.f32 %v1717, %v1812
        %v1814 = vpop.f32.mrb[0].mxu0
        %1815 = vmatprep.mubr.bf16.mxu0 0
        %1816 = vmatmul.mubr.bf16.gmra.mrb[0].mxu0 %v1707
        %v1817 = vpop.f32.mrb[0].mxu0
        %v1818 = vadd.f32 %v1717, %v1817
        %v1819 = vpop.f32.mrb[0].mxu0
        %v1820 = vpop.f32.mrb[0].mxu0
        %v1821 = vadd.f32 %v1717, %v1820
        %v1822 = vpop.f32.mrb[0].mxu0
        %1823 = vmatprep.mubr.bf16.mxu0 0
        %1824 = vmatmul.mubr.bf16.gmra.mrb[0].mxu0 %v1708
        %v1825 = vpop.f32.mrb[0].mxu0
        %v1826 = vadd.f32 %v1717, %v1825
        %v1827 = vpop.f32.mrb[0].mxu0
        %v1828 = vpop.f32.mrb[0].mxu0
        %v1829 = vadd.f32 %v1717, %v1828
        %v1830 = vpop.f32.mrb[0].mxu0
        %1831 = vmatprep.mubr.bf16.mxu0 0
        %1832 = vmatmul.mubr.bf16.gmra.mrb[0].mxu0 %v1709
        %v1833 = vpop.f32.mrb[0].mxu0
        %v1834 = vadd.f32 %v1717, %v1833
        %v1835 = vpop.f32.mrb[0].mxu0
        %v1836 = vpop.f32.mrb[0].mxu0
        %v1837 = vadd.f32 %v1717, %v1836
        %v1838 = vpop.f32.mrb[0].mxu0
        %1839 = vmatprep.mubr.bf16.mxu0 0
        %1840 = vmatmul.mubr.bf16.gmra.mrb[0].mxu0 %v1710
        %v1841 = vpop.f32.mrb[0].mxu0
        %v1842 = vadd.f32 %v1717, %v1841
        %v1843 = vpop.f32.mrb[0].mxu0
        %v1844 = vpop.f32.mrb[0].mxu0
        %v1845 = vadd.f32 %v1717, %v1844
        %v1846 = vpop.f32.mrb[0].mxu0
        %1847 = vmatprep.mubr.bf16.mxu0 0
        %1848 = vmatmul.mubr.bf16.gmra.mrb[0].mxu0 %v1711
        %v1849 = vpop.f32.mrb[0].mxu0
        %v1850 = vadd.f32 %v1717, %v1849
        %v1851 = vpop.f32.mrb[0].mxu0
        %v1852 = vpop.f32.mrb[0].mxu0
        %v1853 = vadd.f32 %v1717, %v1852
        %v1854 = vpop.f32.mrb[0].mxu0
        %1855 = vmatprep.mubr.bf16.mxu0 0
        %1856 = vmatmul.mubr.bf16.gmra.mrb[0].mxu0 %v1712
        %v1857 = vpop.f32.mrb[0].mxu0
        %v1858 = vadd.f32 %v1717, %v1857
        %v1859 = vpop.f32.mrb[0].mxu0
        %v1860 = vpop.f32.mrb[0].mxu0
        %v1861 = vadd.f32 %v1717, %v1860
        %v1862 = vpop.f32.mrb[0].mxu0
        %1863 = vdwg.mxu0
        %vm1864 = vcmp.gt.f32.partialorder %v1802, 0.0
        %vm1865 = vcmp.gt.f32.partialorder %v1805, 0.0
        %vm1866 = vcmp.gt.f32.partialorder %v1810, 0.0
        %vm1867 = vcmp.gt.f32.partialorder %v1813, 0.0
        %vm1868 = vcmp.gt.f32.partialorder %v1818, 0.0
        %vm1869 = vcmp.gt.f32.partialorder %v1821, 0.0
        %vm1870 = vcmp.gt.f32.partialorder %v1826, 0.0
        %vm1871 = vcmp.gt.f32.partialorder %v1829, 0.0
        %vm1872 = vcmp.gt.f32.partialorder %v1834, 0.0
        %vm1873 = vcmp.gt.f32.partialorder %v1837, 0.0
        %vm1874 = vcmp.gt.f32.partialorder %v1842, 0.0
        %vm1875 = vcmp.gt.f32.partialorder %v1845, 0.0
        %vm1876 = vcmp.gt.f32.partialorder %v1850, 0.0
        %vm1877 = vcmp.gt.f32.partialorder %v1853, 0.0
        %vm1878 = vcmp.gt.f32.partialorder %v1858, 0.0
        %vm1879 = vcmp.gt.f32.partialorder %v1861, 0.0
        %v1880 = vmul.f32 %v1802, 0.01
        %v1881 = vmul.f32 %v1805, 0.01
        %v1882 = vmul.f32 %v1810, 0.01
        %v1883 = vmul.f32 %v1813, 0.01
        %v1884 = vmul.f32 %v1818, 0.01
        %v1885 = vmul.f32 %v1821, 0.01
        %v1886 = vmul.f32 %v1826, 0.01
        %v1887 = vmul.f32 %v1829, 0.01
        %v1888 = vmul.f32 %v1834, 0.01
        %v1889 = vmul.f32 %v1837, 0.01
        %v1890 = vmul.f32 %v1842, 0.01
        %v1891 = vmul.f32 %v1845, 0.01
        %v1892 = vmul.f32 %v1850, 0.01
        %v1893 = vmul.f32 %v1853, 0.01
        %v1894 = vmul.f32 %v1858, 0.01
        %v1895 = vmul.f32 %v1861, 0.01
        %v1896 = vsel %vm1864, %v1802, %v1880
        %v1897 = vsel %vm1865, %v1805, %v1881
        %v1898 = vsel %vm1866, %v1810, %v1882
        %v1899 = vsel %vm1867, %v1813, %v1883
        %v1900 = vsel %vm1868, %v1818, %v1884
        %v1901 = vsel %vm1869, %v1821, %v1885
        %v1902 = vsel %vm1870, %v1826, %v1886
        %v1903 = vsel %vm1871, %v1829, %v1887
        %v1904 = vsel %vm1872, %v1834, %v1888
        %v1905 = vsel %vm1873, %v1837, %v1889
        %v1906 = vsel %vm1874, %v1842, %v1890
        %v1907 = vsel %vm1875, %v1845, %v1891
        %v1908 = vsel %vm1876, %v1850, %v1892
        %v1909 = vsel %vm1877, %v1853, %v1893
        %v1910 = vsel %vm1878, %v1858, %v1894
        %v1911 = vsel %vm1879, %v1861, %v1895
        %v1912 = vld [vmem:[#allocation13] sm:$0xf]
        %v1913 = vld [vmem:[#allocation13 + $0x4] sm:$0xf]
        %v1914 = vld [vmem:[#allocation13 + $0x8] sm:$0xf]
        %v1915 = vld [vmem:[#allocation13 + $0xc] sm:$0xf]
        %v1916 = vld [vmem:[#allocation13 + $0x10] sm:$0xf]
        %v1917 = vld [vmem:[#allocation13 + $0x14] sm:$0xf]
        %v1918 = vld [vmem:[#allocation13 + $0x18] sm:$0xf]
        %v1919 = vld [vmem:[#allocation13 + $0x1c] sm:$0xf]
        %v1920 = vld [vmem:[#allocation13 + $0x20] sm:$0xf]
        %v1921 = vld [vmem:[#allocation13 + $0x24] sm:$0xf]
        %v1922 = vld [vmem:[#allocation13 + $0x28] sm:$0xf]
        %v1923 = vld [vmem:[#allocation13 + $0x2c] sm:$0xf]
        %v1924 = vld [vmem:[#allocation13 + $0x30] sm:$0xf]
        %v1925 = vld [vmem:[#allocation13 + $0x34] sm:$0xf]
        %v1926 = vld [vmem:[#allocation13 + $0x38] sm:$0xf]
        %v1927 = vld [vmem:[#allocation13 + $0x3c] sm:$0xf]
        %v1928 = vld [vmem:[#allocation14] sm:$0x1]
        %v1929 = vpack.c.bf16 %v1897, %v1896
        %v1930 = vpack.c.bf16 %v1899, %v1898
        %v1931 = vpack.c.bf16 %v1901, %v1900
        %v1932 = vpack.c.bf16 %v1903, %v1902
        %v1933 = vpack.c.bf16 %v1905, %v1904
        %v1934 = vpack.c.bf16 %v1907, %v1906
        %v1935 = vpack.c.bf16 %v1909, %v1908
        %v1936 = vpack.c.bf16 %v1911, %v1910
        %v1938 = vlaneseq
        %v1939 = vshrl.u32 %v1938, 7
        %v1940 = vsub.s32 0, %v1939
        %v1941 = vrot.slane %v1928, %v1940
        %v1959 = vunpack.c.l.b16 %v1912
        %v1960 = vunpack.c.l.b16 %v1913
        %v1961 = vunpack.c.l.b16 %v1914
        %v1962 = vunpack.c.l.b16 %v1915
        %v1963 = vunpack.c.l.b16 %v1916
        %v1964 = vunpack.c.l.b16 %v1917
        %v1965 = vunpack.c.l.b16 %v1918
        %v1966 = vunpack.c.l.b16 %v1919
        %v1967 = vunpack.c.l.b16 %v1920
        %v1968 = vunpack.c.l.b16 %v1921
        %v1969 = vunpack.c.l.b16 %v1922
        %v1970 = vunpack.c.l.b16 %v1923
        %v1971 = vunpack.c.l.b16 %v1924
        %v1972 = vunpack.c.l.b16 %v1925
        %v1973 = vunpack.c.l.b16 %v1926
        %v1974 = vunpack.c.l.b16 %v1927
        %v1975 = vpack.c.b16 %v1960, %v1959
        %v1976 = vpack.c.b16 %v1962, %v1961
        %v1977 = vpack.c.b16 %v1964, %v1963
        %v1978 = vpack.c.b16 %v1966, %v1965
        %v1979 = vpack.c.b16 %v1968, %v1967
        %v1980 = vpack.c.b16 %v1970, %v1969
        %v1981 = vpack.c.b16 %v1972, %v1971
        %v1982 = vpack.c.b16 %v1974, %v1973
        %1991 = vmatprep.subr.bf16.mxu0 0
        %1992 = vmatpush1.bf16.msra.mxu0 %v1975
        %1993 = vmatprep.subr.bf16.mxu0 0
        %1994 = vmatpush1.bf16.msra.mxu0 %v1976
        %1995 = vmatprep.subr.bf16.mxu0 0
        %1996 = vmatpush1.bf16.msra.mxu0 %v1977
        %1997 = vmatprep.subr.bf16.mxu0 0
        %1998 = vmatpush1.bf16.msra.mxu0 %v1978
        %1999 = vmatprep.subr.bf16.mxu0 0
        %2000 = vmatpush1.bf16.msra.mxu0 %v1979
        %2001 = vmatprep.subr.bf16.mxu0 0
        %2002 = vmatpush1.bf16.msra.mxu0 %v1980
        %2003 = vmatprep.subr.bf16.mxu0 0
        %2004 = vmatpush1.bf16.msra.mxu0 %v1981
        %2005 = vmatprep.subr.bf16.mxu0 0
        %2006 = vmatpush1.bf16.msra.mxu0 %v1982
        %2007 = vmatprep.subr.bf16.mxu0 0
        %2008 = vmatpush1.bf16.msra.mxu0 0
        %2009 = vmatprep.subr.bf16.mxu0 0
        %2010 = vmatpush1.bf16.msra.mxu0 0
        %2011 = vmatprep.subr.bf16.mxu0 0
        %2012 = vmatpush1.bf16.msra.mxu0 0
        %2013 = vmatprep.subr.bf16.mxu0 0
        %2014 = vmatpush1.bf16.msra.mxu0 0
        %2015 = vmatprep.subr.bf16.mxu0 0
        %2016 = vmatpush1.bf16.msra.mxu0 0
        %2017 = vmatprep.subr.bf16.mxu0 0
        %2018 = vmatpush1.bf16.msra.mxu0 0
        %2019 = vmatprep.subr.bf16.mxu0 0
        %2020 = vmatpush1.bf16.msra.mxu0 0
        %2021 = vmatprep.subr.bf16.mxu0 0
        %2022 = vmatpush1.bf16.msra.mxu0 0
        %2023 = vmatprep.mubr.bf16.mxu0 0
        %2024 = vmatmul.mubr.bf16.gmra.mrb[0].mxu0 %v1929
        %v2025 = vpop.f32.mrb[0].mxu0
        %v2026 = vadd.f32 %v1941, %v2025
        %v2027 = vpop.f32.mrb[0].mxu0
        %v2028 = vpop.f32.mrb[0].mxu0
        %v2029 = vadd.f32 %v1941, %v2028
        %v2030 = vpop.f32.mrb[0].mxu0
        %2031 = vmatprep.mubr.bf16.mxu0 0
        %2032 = vmatmul.mubr.bf16.gmra.mrb[0].mxu0 %v1930
        %v2033 = vpop.f32.mrb[0].mxu0
        %v2034 = vadd.f32 %v1941, %v2033
        %v2035 = vpop.f32.mrb[0].mxu0
        %v2036 = vpop.f32.mrb[0].mxu0
        %v2037 = vadd.f32 %v1941, %v2036
        %v2038 = vpop.f32.mrb[0].mxu0
        %2039 = vmatprep.mubr.bf16.mxu0 0
        %2040 = vmatmul.mubr.bf16.gmra.mrb[0].mxu0 %v1931
        %v2041 = vpop.f32.mrb[0].mxu0
        %v2042 = vadd.f32 %v1941, %v2041
        %v2043 = vpop.f32.mrb[0].mxu0
        %v2044 = vpop.f32.mrb[0].mxu0
        %v2045 = vadd.f32 %v1941, %v2044
        %v2046 = vpop.f32.mrb[0].mxu0
        %2047 = vmatprep.mubr.bf16.mxu0 0
        %2048 = vmatmul.mubr.bf16.gmra.mrb[0].mxu0 %v1932
        %v2049 = vpop.f32.mrb[0].mxu0
        %v2050 = vadd.f32 %v1941, %v2049
        %v2051 = vpop.f32.mrb[0].mxu0
        %v2052 = vpop.f32.mrb[0].mxu0
        %v2053 = vadd.f32 %v1941, %v2052
        %v2054 = vpop.f32.mrb[0].mxu0
        %2055 = vmatprep.mubr.bf16.mxu0 0
        %2056 = vmatmul.mubr.bf16.gmra.mrb[0].mxu0 %v1933
        %v2057 = vpop.f32.mrb[0].mxu0
        %v2058 = vadd.f32 %v1941, %v2057
        %v2059 = vpop.f32.mrb[0].mxu0
        %v2060 = vpop.f32.mrb[0].mxu0
        %v2061 = vadd.f32 %v1941, %v2060
        %v2062 = vpop.f32.mrb[0].mxu0
        %2063 = vmatprep.mubr.bf16.mxu0 0
        %2064 = vmatmul.mubr.bf16.gmra.mrb[0].mxu0 %v1934
        %v2065 = vpop.f32.mrb[0].mxu0
        %v2066 = vadd.f32 %v1941, %v2065
        %v2067 = vpop.f32.mrb[0].mxu0
        %v2068 = vpop.f32.mrb[0].mxu0
        %v2069 = vadd.f32 %v1941, %v2068
        %v2070 = vpop.f32.mrb[0].mxu0
        %2071 = vmatprep.mubr.bf16.mxu0 0
        %2072 = vmatmul.mubr.bf16.gmra.mrb[0].mxu0 %v1935
        %v2073 = vpop.f32.mrb[0].mxu0
        %v2074 = vadd.f32 %v1941, %v2073
        %v2075 = vpop.f32.mrb[0].mxu0
        %v2076 = vpop.f32.mrb[0].mxu0
        %v2077 = vadd.f32 %v1941, %v2076
        %v2078 = vpop.f32.mrb[0].mxu0
        %2079 = vmatprep.mubr.bf16.mxu0 0
        %2080 = vmatmul.mubr.bf16.gmra.mrb[0].mxu0 %v1936
        %v2081 = vpop.f32.mrb[0].mxu0
        %v2082 = vadd.f32 %v1941, %v2081
        %v2083 = vpop.f32.mrb[0].mxu0
        %v2084 = vpop.f32.mrb[0].mxu0
        %v2085 = vadd.f32 %v1941, %v2084
        %v2086 = vpop.f32.mrb[0].mxu0
        %2087 = vdwg.mxu0
        %v2088 = vld [vmem:[#allocation16] sm:$0xf]
        %v2089 = vld [vmem:[#allocation16 + $0x4] sm:$0xf]
        %v2090 = vld [vmem:[#allocation16 + $0x8] sm:$0xf]
        %v2091 = vld [vmem:[#allocation16 + $0xc] sm:$0xf]
        %v2092 = vld [vmem:[#allocation16 + $0x10] sm:$0xf]
        %v2093 = vld [vmem:[#allocation16 + $0x14] sm:$0xf]
        %v2094 = vld [vmem:[#allocation16 + $0x18] sm:$0xf]
        %v2095 = vld [vmem:[#allocation16 + $0x1c] sm:$0xf]
        %v2096 = vld [vmem:[#allocation16 + $0x20] sm:$0xf]
        %v2097 = vld [vmem:[#allocation16 + $0x24] sm:$0xf]
        %v2098 = vld [vmem:[#allocation16 + $0x28] sm:$0xf]
        %v2099 = vld [vmem:[#allocation16 + $0x2c] sm:$0xf]
        %v2100 = vld [vmem:[#allocation16 + $0x30] sm:$0xf]
        %v2101 = vld [vmem:[#allocation16 + $0x34] sm:$0xf]
        %v2102 = vld [vmem:[#allocation16 + $0x38] sm:$0xf]
        %v2103 = vld [vmem:[#allocation16 + $0x3c] sm:$0xf]
        %v2104 = vld [vmem:[#allocation17] sm:$0x1]
        %v2106 = vlaneseq
        %v2107 = vshrl.u32 %v2106, 7
        %v2108 = vsub.s32 0, %v2107
        %v2109 = vrot.slane %v2104, %v2108
        %v2127 = vunpack.c.l.b16 %v2088
        %v2128 = vunpack.c.l.b16 %v2089
        %v2129 = vunpack.c.l.b16 %v2090
        %v2130 = vunpack.c.l.b16 %v2091
        %v2131 = vunpack.c.l.b16 %v2092
        %v2132 = vunpack.c.l.b16 %v2093
        %v2133 = vunpack.c.l.b16 %v2094
        %v2134 = vunpack.c.l.b16 %v2095
        %v2135 = vunpack.c.l.b16 %v2096
        %v2136 = vunpack.c.l.b16 %v2097
        %v2137 = vunpack.c.l.b16 %v2098
        %v2138 = vunpack.c.l.b16 %v2099
        %v2139 = vunpack.c.l.b16 %v2100
        %v2140 = vunpack.c.l.b16 %v2101
        %v2141 = vunpack.c.l.b16 %v2102
        %v2142 = vunpack.c.l.b16 %v2103
        %v2143 = vpack.c.b16 %v2128, %v2127
        %v2144 = vpack.c.b16 %v2130, %v2129
        %v2145 = vpack.c.b16 %v2132, %v2131
        %v2146 = vpack.c.b16 %v2134, %v2133
        %v2147 = vpack.c.b16 %v2136, %v2135
        %v2148 = vpack.c.b16 %v2138, %v2137
        %v2149 = vpack.c.b16 %v2140, %v2139
        %v2150 = vpack.c.b16 %v2142, %v2141
        %2159 = vmatprep.subr.bf16.mxu0 0
        %2160 = vmatpush1.bf16.msra.mxu0 %v2143
        %2161 = vmatprep.subr.bf16.mxu0 0
        %2162 = vmatpush1.bf16.msra.mxu0 %v2144
        %2163 = vmatprep.subr.bf16.mxu0 0
        %2164 = vmatpush1.bf16.msra.mxu0 %v2145
        %2165 = vmatprep.subr.bf16.mxu0 0
        %2166 = vmatpush1.bf16.msra.mxu0 %v2146
        %2167 = vmatprep.subr.bf16.mxu0 0
        %2168 = vmatpush1.bf16.msra.mxu0 %v2147
        %2169 = vmatprep.subr.bf16.mxu0 0
        %2170 = vmatpush1.bf16.msra.mxu0 %v2148
        %2171 = vmatprep.subr.bf16.mxu0 0
        %2172 = vmatpush1.bf16.msra.mxu0 %v2149
        %2173 = vmatprep.subr.bf16.mxu0 0
        %2174 = vmatpush1.bf16.msra.mxu0 %v2150
        %2175 = vmatprep.subr.bf16.mxu0 0
        %2176 = vmatpush1.bf16.msra.mxu0 0
        %2177 = vmatprep.subr.bf16.mxu0 0
        %2178 = vmatpush1.bf16.msra.mxu0 0
        %2179 = vmatprep.subr.bf16.mxu0 0
        %2180 = vmatpush1.bf16.msra.mxu0 0
        %2181 = vmatprep.subr.bf16.mxu0 0
        %2182 = vmatpush1.bf16.msra.mxu0 0
        %2183 = vmatprep.subr.bf16.mxu0 0
        %2184 = vmatpush1.bf16.msra.mxu0 0
        %2185 = vmatprep.subr.bf16.mxu0 0
        %2186 = vmatpush1.bf16.msra.mxu0 0
        %2187 = vmatprep.subr.bf16.mxu0 0
        %2188 = vmatpush1.bf16.msra.mxu0 0
        %2189 = vmatprep.subr.bf16.mxu0 0
        %2190 = vmatpush1.bf16.msra.mxu0 0
        %2191 = vmatprep.mubr.bf16.mxu0 0
        %2192 = vmatmul.mubr.bf16.gmra.mrb[0].mxu0 %v1929
        %v2193 = vpop.f32.mrb[0].mxu0
        %v2194 = vadd.f32 %v2109, %v2193
        %v2195 = vpop.f32.mrb[0].mxu0
        %v2196 = vpop.f32.mrb[0].mxu0
        %v2197 = vadd.f32 %v2109, %v2196
        %v2198 = vpop.f32.mrb[0].mxu0
        %2199 = vmatprep.mubr.bf16.mxu0 0
        %2200 = vmatmul.mubr.bf16.gmra.mrb[0].mxu0 %v1930
        %v2201 = vpop.f32.mrb[0].mxu0
        %v2202 = vadd.f32 %v2109, %v2201
        %v2203 = vpop.f32.mrb[0].mxu0
        %v2204 = vpop.f32.mrb[0].mxu0
        %v2205 = vadd.f32 %v2109, %v2204
        %v2206 = vpop.f32.mrb[0].mxu0
        %2207 = vmatprep.mubr.bf16.mxu0 0
        %2208 = vmatmul.mubr.bf16.gmra.mrb[0].mxu0 %v1931
        %v2209 = vpop.f32.mrb[0].mxu0
        %v2210 = vadd.f32 %v2109, %v2209
        %v2211 = vpop.f32.mrb[0].mxu0
        %v2212 = vpop.f32.mrb[0].mxu0
        %v2213 = vadd.f32 %v2109, %v2212
        %v2214 = vpop.f32.mrb[0].mxu0
        %2215 = vmatprep.mubr.bf16.mxu0 0
        %2216 = vmatmul.mubr.bf16.gmra.mrb[0].mxu0 %v1932
        %v2217 = vpop.f32.mrb[0].mxu0
        %v2218 = vadd.f32 %v2109, %v2217
        %v2219 = vpop.f32.mrb[0].mxu0
        %v2220 = vpop.f32.mrb[0].mxu0
        %v2221 = vadd.f32 %v2109, %v2220
        %v2222 = vpop.f32.mrb[0].mxu0
        %2223 = vmatprep.mubr.bf16.mxu0 0
        %2224 = vmatmul.mubr.bf16.gmra.mrb[0].mxu0 %v1933
        %v2225 = vpop.f32.mrb[0].mxu0
        %v2226 = vadd.f32 %v2109, %v2225
        %v2227 = vpop.f32.mrb[0].mxu0
        %v2228 = vpop.f32.mrb[0].mxu0
        %v2229 = vadd.f32 %v2109, %v2228
        %v2230 = vpop.f32.mrb[0].mxu0
        %2231 = vmatprep.mubr.bf16.mxu0 0
        %2232 = vmatmul.mubr.bf16.gmra.mrb[0].mxu0 %v1934
        %v2233 = vpop.f32.mrb[0].mxu0
        %v2234 = vadd.f32 %v2109, %v2233
        %v2235 = vpop.f32.mrb[0].mxu0
        %v2236 = vpop.f32.mrb[0].mxu0
        %v2237 = vadd.f32 %v2109, %v2236
        %v2238 = vpop.f32.mrb[0].mxu0
        %2239 = vmatprep.mubr.bf16.mxu0 0
        %2240 = vmatmul.mubr.bf16.gmra.mrb[0].mxu0 %v1935
        %v2241 = vpop.f32.mrb[0].mxu0
        %v2242 = vadd.f32 %v2109, %v2241
        %v2243 = vpop.f32.mrb[0].mxu0
        %v2244 = vpop.f32.mrb[0].mxu0
        %v2245 = vadd.f32 %v2109, %v2244
        %v2246 = vpop.f32.mrb[0].mxu0
        %2247 = vmatprep.mubr.bf16.mxu0 0
        %2248 = vmatmul.mubr.bf16.gmra.mrb[0].mxu0 %v1936
        %v2249 = vpop.f32.mrb[0].mxu0
        %v2250 = vadd.f32 %v2109, %v2249
        %v2251 = vpop.f32.mrb[0].mxu0
        %v2252 = vpop.f32.mrb[0].mxu0
        %v2253 = vadd.f32 %v2109, %v2252
        %v2254 = vpop.f32.mrb[0].mxu0
        %2255 = vdwg.mxu0
        %v2256 = vld [vmem:[%s862] sm:$0xff]
        %v2257 = vld [vmem:[%s862 + $0x8] sm:$0xff]
        %v2258 = vld [vmem:[%s862 + $0x10] sm:$0xff]
        %v2259 = vld [vmem:[%s862 + $0x18] sm:$0xff]
        %v2260 = vld [vmem:[%s862 + $0x20] sm:$0xff]
        %v2261 = vld [vmem:[%s862 + $0x28] sm:$0xff]
        %v2262 = vld [vmem:[%s862 + $0x30] sm:$0xff]
        %v2263 = vld [vmem:[%s862 + $0x38] sm:$0xff]
        %v2264 = vld [vmem:[%s862 + $0x40] sm:$0xff]
        %v2265 = vld [vmem:[%s862 + $0x48] sm:$0xff]
        %v2266 = vld [vmem:[%s862 + $0x50] sm:$0xff]
        %v2267 = vld [vmem:[%s862 + $0x58] sm:$0xff]
        %v2268 = vld [vmem:[%s862 + $0x60] sm:$0xff]
        %v2269 = vld [vmem:[%s862 + $0x68] sm:$0xff]
        %v2270 = vld [vmem:[%s862 + $0x70] sm:$0xff]
        %v2271 = vld [vmem:[%s862 + $0x78] sm:$0xff]
        %v2272 = vmul.f32 %v2194, 0.5
        %v2273 = vmul.f32 %v2197, 0.5
        %v2274 = vmul.f32 %v2202, 0.5
        %v2275 = vmul.f32 %v2205, 0.5
        %v2276 = vmul.f32 %v2210, 0.5
        %v2277 = vmul.f32 %v2213, 0.5
        %v2278 = vmul.f32 %v2218, 0.5
        %v2279 = vmul.f32 %v2221, 0.5
        %v2280 = vmul.f32 %v2226, 0.5
        %v2281 = vmul.f32 %v2229, 0.5
        %v2282 = vmul.f32 %v2234, 0.5
        %v2283 = vmul.f32 %v2237, 0.5
        %v2284 = vmul.f32 %v2242, 0.5
        %v2285 = vmul.f32 %v2245, 0.5
        %v2286 = vmul.f32 %v2250, 0.5
        %v2287 = vmul.f32 %v2253, 0.5
        %v2288 = vmul.f32 %v2272, 1.442695
        %v2289 = vpow.pop %v2288
        %v2290 = vmul.f32 %v2273, 1.442695
        %v2291 = vpow.pop %v2290
        %v2292 = vmul.f32 %v2274, 1.442695
        %v2293 = vpow.pop %v2292
        %v2294 = vmul.f32 %v2275, 1.442695
        %v2295 = vpow.pop %v2294
        %v2296 = vmul.f32 %v2276, 1.442695
        %v2297 = vpow.pop %v2296
        %v2298 = vmul.f32 %v2277, 1.442695
        %v2299 = vpow.pop %v2298
        %v2300 = vmul.f32 %v2278, 1.442695
        %v2301 = vpow.pop %v2300
        %v2302 = vmul.f32 %v2279, 1.442695
        %v2303 = vpow.pop %v2302
        %v2304 = vmul.f32 %v2280, 1.442695
        %v2305 = vpow.pop %v2304
        %v2306 = vmul.f32 %v2281, 1.442695
        %v2307 = vpow.pop %v2306
        %v2308 = vmul.f32 %v2282, 1.442695
        %v2309 = vpow.pop %v2308
        %v2310 = vmul.f32 %v2283, 1.442695
        %v2311 = vpow.pop %v2310
        %v2312 = vmul.f32 %v2284, 1.442695
        %v2313 = vpow.pop %v2312
        %v2314 = vmul.f32 %v2285, 1.442695
        %v2315 = vpow.pop %v2314
        %v2316 = vmul.f32 %v2286, 1.442695
        %v2317 = vpow.pop %v2316
        %v2318 = vmul.f32 %v2287, 1.442695
        %v2319 = vpow.pop %v2318
        %v2320 = vmul.f32 %v2256, %v2289
        %v2321 = vmul.f32 %v2257, %v2291
        %v2322 = vmul.f32 %v2258, %v2293
        %v2323 = vmul.f32 %v2259, %v2295
        %v2324 = vmul.f32 %v2260, %v2297
        %v2325 = vmul.f32 %v2261, %v2299
        %v2326 = vmul.f32 %v2262, %v2301
        %v2327 = vmul.f32 %v2263, %v2303
        %v2328 = vmul.f32 %v2264, %v2305
        %v2329 = vmul.f32 %v2265, %v2307
        %v2330 = vmul.f32 %v2266, %v2309
        %v2331 = vmul.f32 %v2267, %v2311
        %v2332 = vmul.f32 %v2268, %v2313
        %v2333 = vmul.f32 %v2269, %v2315
        %v2334 = vmul.f32 %v2270, %v2317
        %v2335 = vmul.f32 %v2271, %v2319
        %v2336 = vadd.f32 %v2026, %v2320
        %v2337 = vadd.f32 %v2029, %v2321
        %v2338 = vadd.f32 %v2034, %v2322
        %v2339 = vadd.f32 %v2037, %v2323
        %v2340 = vadd.f32 %v2042, %v2324
        %v2341 = vadd.f32 %v2045, %v2325
        %v2342 = vadd.f32 %v2050, %v2326
        %v2343 = vadd.f32 %v2053, %v2327
        %v2344 = vadd.f32 %v2058, %v2328
        %v2345 = vadd.f32 %v2061, %v2329
        %v2346 = vadd.f32 %v2066, %v2330
        %v2347 = vadd.f32 %v2069, %v2331
        %v2348 = vadd.f32 %v2074, %v2332
        %v2349 = vadd.f32 %v2077, %v2333
        %v2350 = vadd.f32 %v2082, %v2334
        %v2351 = vadd.f32 %v2085, %v2335
        %v2352 = vld [vmem:[#allocation19] sm:$0xf]
        %v2353 = vld [vmem:[#allocation19 + $0x4] sm:$0xf]
        %v2354 = vld [vmem:[#allocation19 + $0x8] sm:$0xf]
        %v2355 = vld [vmem:[#allocation19 + $0xc] sm:$0xf]
        %v2356 = vld [vmem:[#allocation19 + $0x10] sm:$0xf]
        %v2357 = vld [vmem:[#allocation19 + $0x14] sm:$0xf]
        %v2358 = vld [vmem:[#allocation19 + $0x18] sm:$0xf]
        %v2359 = vld [vmem:[#allocation19 + $0x1c] sm:$0xf]
        %v2360 = vld [vmem:[#allocation19 + $0x20] sm:$0xf]
        %v2361 = vld [vmem:[#allocation19 + $0x24] sm:$0xf]
        %v2362 = vld [vmem:[#allocation19 + $0x28] sm:$0xf]
        %v2363 = vld [vmem:[#allocation19 + $0x2c] sm:$0xf]
        %v2364 = vld [vmem:[#allocation19 + $0x30] sm:$0xf]
        %v2365 = vld [vmem:[#allocation19 + $0x34] sm:$0xf]
        %v2366 = vld [vmem:[#allocation19 + $0x38] sm:$0xf]
        %v2367 = vld [vmem:[#allocation19 + $0x3c] sm:$0xf]
        %v2368 = vld [vmem:[#allocation20] sm:$0x1]
        %v2369 = vpack.c.bf16 %v2337, %v2336
        %v2370 = vpack.c.bf16 %v2339, %v2338
        %v2371 = vpack.c.bf16 %v2341, %v2340
        %v2372 = vpack.c.bf16 %v2343, %v2342
        %v2373 = vpack.c.bf16 %v2345, %v2344
        %v2374 = vpack.c.bf16 %v2347, %v2346
        %v2375 = vpack.c.bf16 %v2349, %v2348
        %v2376 = vpack.c.bf16 %v2351, %v2350
        %v2378 = vlaneseq
        %v2379 = vshrl.u32 %v2378, 7
        %v2380 = vsub.s32 0, %v2379
        %v2381 = vrot.slane %v2368, %v2380
        %v2399 = vunpack.c.l.b16 %v2352
        %v2400 = vunpack.c.l.b16 %v2353
        %v2401 = vunpack.c.l.b16 %v2354
        %v2402 = vunpack.c.l.b16 %v2355
        %v2403 = vunpack.c.l.b16 %v2356
        %v2404 = vunpack.c.l.b16 %v2357
        %v2405 = vunpack.c.l.b16 %v2358
        %v2406 = vunpack.c.l.b16 %v2359
        %v2407 = vunpack.c.l.b16 %v2360
        %v2408 = vunpack.c.l.b16 %v2361
        %v2409 = vunpack.c.l.b16 %v2362
        %v2410 = vunpack.c.l.b16 %v2363
        %v2411 = vunpack.c.l.b16 %v2364
        %v2412 = vunpack.c.l.b16 %v2365
        %v2413 = vunpack.c.l.b16 %v2366
        %v2414 = vunpack.c.l.b16 %v2367
        %v2415 = vpack.c.b16 %v2400, %v2399
        %v2416 = vpack.c.b16 %v2402, %v2401
        %v2417 = vpack.c.b16 %v2404, %v2403
        %v2418 = vpack.c.b16 %v2406, %v2405
        %v2419 = vpack.c.b16 %v2408, %v2407
        %v2420 = vpack.c.b16 %v2410, %v2409
        %v2421 = vpack.c.b16 %v2412, %v2411
        %v2422 = vpack.c.b16 %v2414, %v2413
        %2431 = vmatprep.subr.bf16.mxu0 0
        %2432 = vmatpush1.bf16.msra.mxu0 %v2415
        %2433 = vmatprep.subr.bf16.mxu0 0
        %2434 = vmatpush1.bf16.msra.mxu0 %v2416
        %2435 = vmatprep.subr.bf16.mxu0 0
        %2436 = vmatpush1.bf16.msra.mxu0 %v2417
        %2437 = vmatprep.subr.bf16.mxu0 0
        %2438 = vmatpush1.bf16.msra.mxu0 %v2418
        %2439 = vmatprep.subr.bf16.mxu0 0
        %2440 = vmatpush1.bf16.msra.mxu0 %v2419
        %2441 = vmatprep.subr.bf16.mxu0 0
        %2442 = vmatpush1.bf16.msra.mxu0 %v2420
        %2443 = vmatprep.subr.bf16.mxu0 0
        %2444 = vmatpush1.bf16.msra.mxu0 %v2421
        %2445 = vmatprep.subr.bf16.mxu0 0
        %2446 = vmatpush1.bf16.msra.mxu0 %v2422
        %2447 = vmatprep.subr.bf16.mxu0 0
        %2448 = vmatpush1.bf16.msra.mxu0 0
        %2449 = vmatprep.subr.bf16.mxu0 0
        %2450 = vmatpush1.bf16.msra.mxu0 0
        %2451 = vmatprep.subr.bf16.mxu0 0
        %2452 = vmatpush1.bf16.msra.mxu0 0
        %2453 = vmatprep.subr.bf16.mxu0 0
        %2454 = vmatpush1.bf16.msra.mxu0 0
        %2455 = vmatprep.subr.bf16.mxu0 0
        %2456 = vmatpush1.bf16.msra.mxu0 0
        %2457 = vmatprep.subr.bf16.mxu0 0
        %2458 = vmatpush1.bf16.msra.mxu0 0
        %2459 = vmatprep.subr.bf16.mxu0 0
        %2460 = vmatpush1.bf16.msra.mxu0 0
        %2461 = vmatprep.subr.bf16.mxu0 0
        %2462 = vmatpush1.bf16.msra.mxu0 0
        %2463 = vmatprep.mubr.bf16.mxu0 0
        %2464 = vmatmul.mubr.bf16.gmra.mrb[0].mxu0 %v2369
        %v2465 = vpop.f32.mrb[0].mxu0
        %v2466 = vadd.f32 %v2381, %v2465
        %v2467 = vpop.f32.mrb[0].mxu0
        %v2468 = vpop.f32.mrb[0].mxu0
        %v2469 = vadd.f32 %v2381, %v2468
        %v2470 = vpop.f32.mrb[0].mxu0
        %2471 = vmatprep.mubr.bf16.mxu0 0
        %2472 = vmatmul.mubr.bf16.gmra.mrb[0].mxu0 %v2370
        %v2473 = vpop.f32.mrb[0].mxu0
        %v2474 = vadd.f32 %v2381, %v2473
        %v2475 = vpop.f32.mrb[0].mxu0
        %v2476 = vpop.f32.mrb[0].mxu0
        %v2477 = vadd.f32 %v2381, %v2476
        %v2478 = vpop.f32.mrb[0].mxu0
        %2479 = vmatprep.mubr.bf16.mxu0 0
        %2480 = vmatmul.mubr.bf16.gmra.mrb[0].mxu0 %v2371
        %v2481 = vpop.f32.mrb[0].mxu0
        %v2482 = vadd.f32 %v2381, %v2481
        %v2483 = vpop.f32.mrb[0].mxu0
        %v2484 = vpop.f32.mrb[0].mxu0
        %v2485 = vadd.f32 %v2381, %v2484
        %v2486 = vpop.f32.mrb[0].mxu0
        %2487 = vmatprep.mubr.bf16.mxu0 0
        %2488 = vmatmul.mubr.bf16.gmra.mrb[0].mxu0 %v2372
        %v2489 = vpop.f32.mrb[0].mxu0
        %v2490 = vadd.f32 %v2381, %v2489
        %v2491 = vpop.f32.mrb[0].mxu0
        %v2492 = vpop.f32.mrb[0].mxu0
        %v2493 = vadd.f32 %v2381, %v2492
        %v2494 = vpop.f32.mrb[0].mxu0
        %2495 = vmatprep.mubr.bf16.mxu0 0
        %2496 = vmatmul.mubr.bf16.gmra.mrb[0].mxu0 %v2373
        %v2497 = vpop.f32.mrb[0].mxu0
        %v2498 = vadd.f32 %v2381, %v2497
        %v2499 = vpop.f32.mrb[0].mxu0
        %v2500 = vpop.f32.mrb[0].mxu0
        %v2501 = vadd.f32 %v2381, %v2500
        %v2502 = vpop.f32.mrb[0].mxu0
        %2503 = vmatprep.mubr.bf16.mxu0 0
        %2504 = vmatmul.mubr.bf16.gmra.mrb[0].mxu0 %v2374
        %v2505 = vpop.f32.mrb[0].mxu0
        %v2506 = vadd.f32 %v2381, %v2505
        %v2507 = vpop.f32.mrb[0].mxu0
        %v2508 = vpop.f32.mrb[0].mxu0
        %v2509 = vadd.f32 %v2381, %v2508
        %v2510 = vpop.f32.mrb[0].mxu0
        %2511 = vmatprep.mubr.bf16.mxu0 0
        %2512 = vmatmul.mubr.bf16.gmra.mrb[0].mxu0 %v2375
        %v2513 = vpop.f32.mrb[0].mxu0
        %v2514 = vadd.f32 %v2381, %v2513
        %v2515 = vpop.f32.mrb[0].mxu0
        %v2516 = vpop.f32.mrb[0].mxu0
        %v2517 = vadd.f32 %v2381, %v2516
        %v2518 = vpop.f32.mrb[0].mxu0
        %2519 = vmatprep.mubr.bf16.mxu0 0
        %2520 = vmatmul.mubr.bf16.gmra.mrb[0].mxu0 %v2376
        %v2521 = vpop.f32.mrb[0].mxu0
        %v2522 = vadd.f32 %v2381, %v2521
        %v2523 = vpop.f32.mrb[0].mxu0
        %v2524 = vpop.f32.mrb[0].mxu0
        %v2525 = vadd.f32 %v2381, %v2524
        %v2526 = vpop.f32.mrb[0].mxu0
        %2527 = vdwg.mxu0
        %vm2528 = vcmp.gt.f32.partialorder %v2466, 0.0
        %vm2529 = vcmp.gt.f32.partialorder %v2469, 0.0
        %vm2530 = vcmp.gt.f32.partialorder %v2474, 0.0
        %vm2531 = vcmp.gt.f32.partialorder %v2477, 0.0
        %vm2532 = vcmp.gt.f32.partialorder %v2482, 0.0
        %vm2533 = vcmp.gt.f32.partialorder %v2485, 0.0
        %vm2534 = vcmp.gt.f32.partialorder %v2490, 0.0
        %vm2535 = vcmp.gt.f32.partialorder %v2493, 0.0
        %vm2536 = vcmp.gt.f32.partialorder %v2498, 0.0
        %vm2537 = vcmp.gt.f32.partialorder %v2501, 0.0
        %vm2538 = vcmp.gt.f32.partialorder %v2506, 0.0
        %vm2539 = vcmp.gt.f32.partialorder %v2509, 0.0
        %vm2540 = vcmp.gt.f32.partialorder %v2514, 0.0
        %vm2541 = vcmp.gt.f32.partialorder %v2517, 0.0
        %vm2542 = vcmp.gt.f32.partialorder %v2522, 0.0
        %vm2543 = vcmp.gt.f32.partialorder %v2525, 0.0
        %v2544 = vmul.f32 %v2466, 0.01
        %v2545 = vmul.f32 %v2469, 0.01
        %v2546 = vmul.f32 %v2474, 0.01
        %v2547 = vmul.f32 %v2477, 0.01
        %v2548 = vmul.f32 %v2482, 0.01
        %v2549 = vmul.f32 %v2485, 0.01
        %v2550 = vmul.f32 %v2490, 0.01
        %v2551 = vmul.f32 %v2493, 0.01
        %v2552 = vmul.f32 %v2498, 0.01
        %v2553 = vmul.f32 %v2501, 0.01
        %v2554 = vmul.f32 %v2506, 0.01
        %v2555 = vmul.f32 %v2509, 0.01
        %v2556 = vmul.f32 %v2514, 0.01
        %v2557 = vmul.f32 %v2517, 0.01
        %v2558 = vmul.f32 %v2522, 0.01
        %v2559 = vmul.f32 %v2525, 0.01
        %v2560 = vsel %vm2528, %v2466, %v2544
        %v2561 = vsel %vm2529, %v2469, %v2545
        %v2562 = vsel %vm2530, %v2474, %v2546
        %v2563 = vsel %vm2531, %v2477, %v2547
        %v2564 = vsel %vm2532, %v2482, %v2548
        %v2565 = vsel %vm2533, %v2485, %v2549
        %v2566 = vsel %vm2534, %v2490, %v2550
        %v2567 = vsel %vm2535, %v2493, %v2551
        %v2568 = vsel %vm2536, %v2498, %v2552
        %v2569 = vsel %vm2537, %v2501, %v2553
        %v2570 = vsel %vm2538, %v2506, %v2554
        %v2571 = vsel %vm2539, %v2509, %v2555
        %v2572 = vsel %vm2540, %v2514, %v2556
        %v2573 = vsel %vm2541, %v2517, %v2557
        %v2574 = vsel %vm2542, %v2522, %v2558
        %v2575 = vsel %vm2543, %v2525, %v2559
        %v2576 = vld [vmem:[#allocation22] sm:$0xf]
        %v2577 = vld [vmem:[#allocation22 + $0x4] sm:$0xf]
        %v2578 = vld [vmem:[#allocation22 + $0x8] sm:$0xf]
        %v2579 = vld [vmem:[#allocation22 + $0xc] sm:$0xf]
        %v2580 = vld [vmem:[#allocation22 + $0x10] sm:$0xf]
        %v2581 = vld [vmem:[#allocation22 + $0x14] sm:$0xf]
        %v2582 = vld [vmem:[#allocation22 + $0x18] sm:$0xf]
        %v2583 = vld [vmem:[#allocation22 + $0x1c] sm:$0xf]
        %v2584 = vld [vmem:[#allocation22 + $0x20] sm:$0xf]
        %v2585 = vld [vmem:[#allocation22 + $0x24] sm:$0xf]
        %v2586 = vld [vmem:[#allocation22 + $0x28] sm:$0xf]
        %v2587 = vld [vmem:[#allocation22 + $0x2c] sm:$0xf]
        %v2588 = vld [vmem:[#allocation22 + $0x30] sm:$0xf]
        %v2589 = vld [vmem:[#allocation22 + $0x34] sm:$0xf]
        %v2590 = vld [vmem:[#allocation22 + $0x38] sm:$0xf]
        %v2591 = vld [vmem:[#allocation22 + $0x3c] sm:$0xf]
        %v2592 = vld [vmem:[#allocation23] sm:$0x1]
        %v2593 = vpack.c.bf16 %v2561, %v2560
        %v2594 = vpack.c.bf16 %v2563, %v2562
        %v2595 = vpack.c.bf16 %v2565, %v2564
        %v2596 = vpack.c.bf16 %v2567, %v2566
        %v2597 = vpack.c.bf16 %v2569, %v2568
        %v2598 = vpack.c.bf16 %v2571, %v2570
        %v2599 = vpack.c.bf16 %v2573, %v2572
        %v2600 = vpack.c.bf16 %v2575, %v2574
        %v2602 = vlaneseq
        %v2603 = vshrl.u32 %v2602, 7
        %v2604 = vsub.s32 0, %v2603
        %v2605 = vrot.slane %v2592, %v2604
        %v2623 = vunpack.c.l.b16 %v2576
        %v2624 = vunpack.c.l.b16 %v2577
        %v2625 = vunpack.c.l.b16 %v2578
        %v2626 = vunpack.c.l.b16 %v2579
        %v2627 = vunpack.c.l.b16 %v2580
        %v2628 = vunpack.c.l.b16 %v2581
        %v2629 = vunpack.c.l.b16 %v2582
        %v2630 = vunpack.c.l.b16 %v2583
        %v2631 = vunpack.c.l.b16 %v2584
        %v2632 = vunpack.c.l.b16 %v2585
        %v2633 = vunpack.c.l.b16 %v2586
        %v2634 = vunpack.c.l.b16 %v2587
        %v2635 = vunpack.c.l.b16 %v2588
        %v2636 = vunpack.c.l.b16 %v2589
        %v2637 = vunpack.c.l.b16 %v2590
        %v2638 = vunpack.c.l.b16 %v2591
        %v2639 = vpack.c.b16 %v2624, %v2623
        %v2640 = vpack.c.b16 %v2626, %v2625
        %v2641 = vpack.c.b16 %v2628, %v2627
        %v2642 = vpack.c.b16 %v2630, %v2629
        %v2643 = vpack.c.b16 %v2632, %v2631
        %v2644 = vpack.c.b16 %v2634, %v2633
        %v2645 = vpack.c.b16 %v2636, %v2635
        %v2646 = vpack.c.b16 %v2638, %v2637
        %2655 = vmatprep.subr.bf16.mxu0 0
        %2656 = vmatpush1.bf16.msra.mxu0 %v2639
        %2657 = vmatprep.subr.bf16.mxu0 0
        %2658 = vmatpush1.bf16.msra.mxu0 %v2640
        %2659 = vmatprep.subr.bf16.mxu0 0
        %2660 = vmatpush1.bf16.msra.mxu0 %v2641
        %2661 = vmatprep.subr.bf16.mxu0 0
        %2662 = vmatpush1.bf16.msra.mxu0 %v2642
        %2663 = vmatprep.subr.bf16.mxu0 0
        %2664 = vmatpush1.bf16.msra.mxu0 %v2643
        %2665 = vmatprep.subr.bf16.mxu0 0
        %2666 = vmatpush1.bf16.msra.mxu0 %v2644
        %2667 = vmatprep.subr.bf16.mxu0 0
        %2668 = vmatpush1.bf16.msra.mxu0 %v2645
        %2669 = vmatprep.subr.bf16.mxu0 0
        %2670 = vmatpush1.bf16.msra.mxu0 %v2646
        %2671 = vmatprep.subr.bf16.mxu0 0
        %2672 = vmatpush1.bf16.msra.mxu0 0
        %2673 = vmatprep.subr.bf16.mxu0 0
        %2674 = vmatpush1.bf16.msra.mxu0 0
        %2675 = vmatprep.subr.bf16.mxu0 0
        %2676 = vmatpush1.bf16.msra.mxu0 0
        %2677 = vmatprep.subr.bf16.mxu0 0
        %2678 = vmatpush1.bf16.msra.mxu0 0
        %2679 = vmatprep.subr.bf16.mxu0 0
        %2680 = vmatpush1.bf16.msra.mxu0 0
        %2681 = vmatprep.subr.bf16.mxu0 0
        %2682 = vmatpush1.bf16.msra.mxu0 0
        %2683 = vmatprep.subr.bf16.mxu0 0
        %2684 = vmatpush1.bf16.msra.mxu0 0
        %2685 = vmatprep.subr.bf16.mxu0 0
        %2686 = vmatpush1.bf16.msra.mxu0 0
        %2687 = vmatprep.mubr.bf16.mxu0 0
        %2688 = vmatmul.mubr.bf16.gmra.mrb[0].mxu0 %v2593
        %v2689 = vpop.f32.mrb[0].mxu0
        %v2690 = vadd.f32 %v2605, %v2689
        %v2691 = vpop.f32.mrb[0].mxu0
        %v2692 = vpop.f32.mrb[0].mxu0
        %v2693 = vadd.f32 %v2605, %v2692
        %v2694 = vpop.f32.mrb[0].mxu0
        %2695 = vmatprep.mubr.bf16.mxu0 0
        %2696 = vmatmul.mubr.bf16.gmra.mrb[0].mxu0 %v2594
        %v2697 = vpop.f32.mrb[0].mxu0
        %v2698 = vadd.f32 %v2605, %v2697
        %v2699 = vpop.f32.mrb[0].mxu0
        %v2700 = vpop.f32.mrb[0].mxu0
        %v2701 = vadd.f32 %v2605, %v2700
        %v2702 = vpop.f32.mrb[0].mxu0
        %2703 = vmatprep.mubr.bf16.mxu0 0
        %2704 = vmatmul.mubr.bf16.gmra.mrb[0].mxu0 %v2595
        %v2705 = vpop.f32.mrb[0].mxu0
        %v2706 = vadd.f32 %v2605, %v2705
        %v2707 = vpop.f32.mrb[0].mxu0
        %v2708 = vpop.f32.mrb[0].mxu0
        %v2709 = vadd.f32 %v2605, %v2708
        %v2710 = vpop.f32.mrb[0].mxu0
        %2711 = vmatprep.mubr.bf16.mxu0 0
        %2712 = vmatmul.mubr.bf16.gmra.mrb[0].mxu0 %v2596
        %v2713 = vpop.f32.mrb[0].mxu0
        %v2714 = vadd.f32 %v2605, %v2713
        %v2715 = vpop.f32.mrb[0].mxu0
        %v2716 = vpop.f32.mrb[0].mxu0
        %v2717 = vadd.f32 %v2605, %v2716
        %v2718 = vpop.f32.mrb[0].mxu0
        %2719 = vmatprep.mubr.bf16.mxu0 0
        %2720 = vmatmul.mubr.bf16.gmra.mrb[0].mxu0 %v2597
        %v2721 = vpop.f32.mrb[0].mxu0
        %v2722 = vadd.f32 %v2605, %v2721
        %v2723 = vpop.f32.mrb[0].mxu0
        %v2724 = vpop.f32.mrb[0].mxu0
        %v2725 = vadd.f32 %v2605, %v2724
        %v2726 = vpop.f32.mrb[0].mxu0
        %2727 = vmatprep.mubr.bf16.mxu0 0
        %2728 = vmatmul.mubr.bf16.gmra.mrb[0].mxu0 %v2598
        %v2729 = vpop.f32.mrb[0].mxu0
        %v2730 = vadd.f32 %v2605, %v2729
        %v2731 = vpop.f32.mrb[0].mxu0
        %v2732 = vpop.f32.mrb[0].mxu0
        %v2733 = vadd.f32 %v2605, %v2732
        %v2734 = vpop.f32.mrb[0].mxu0
        %2735 = vmatprep.mubr.bf16.mxu0 0
        %2736 = vmatmul.mubr.bf16.gmra.mrb[0].mxu0 %v2599
        %v2737 = vpop.f32.mrb[0].mxu0
        %v2738 = vadd.f32 %v2605, %v2737
        %v2739 = vpop.f32.mrb[0].mxu0
        %v2740 = vpop.f32.mrb[0].mxu0
        %v2741 = vadd.f32 %v2605, %v2740
        %v2742 = vpop.f32.mrb[0].mxu0
        %2743 = vmatprep.mubr.bf16.mxu0 0
        %2744 = vmatmul.mubr.bf16.gmra.mrb[0].mxu0 %v2600
        %v2745 = vpop.f32.mrb[0].mxu0
        %v2746 = vadd.f32 %v2605, %v2745
        %v2747 = vpop.f32.mrb[0].mxu0
        %v2748 = vpop.f32.mrb[0].mxu0
        %v2749 = vadd.f32 %v2605, %v2748
        %v2750 = vpop.f32.mrb[0].mxu0
        %2751 = vdwg.mxu0
        %vm2752 = vcmp.gt.f32.partialorder %v2690, 0.0
        %vm2753 = vcmp.gt.f32.partialorder %v2693, 0.0
        %vm2754 = vcmp.gt.f32.partialorder %v2698, 0.0
        %vm2755 = vcmp.gt.f32.partialorder %v2701, 0.0
        %vm2756 = vcmp.gt.f32.partialorder %v2706, 0.0
        %vm2757 = vcmp.gt.f32.partialorder %v2709, 0.0
        %vm2758 = vcmp.gt.f32.partialorder %v2714, 0.0
        %vm2759 = vcmp.gt.f32.partialorder %v2717, 0.0
        %vm2760 = vcmp.gt.f32.partialorder %v2722, 0.0
        %vm2761 = vcmp.gt.f32.partialorder %v2725, 0.0
        %vm2762 = vcmp.gt.f32.partialorder %v2730, 0.0
        %vm2763 = vcmp.gt.f32.partialorder %v2733, 0.0
        %vm2764 = vcmp.gt.f32.partialorder %v2738, 0.0
        %vm2765 = vcmp.gt.f32.partialorder %v2741, 0.0
        %vm2766 = vcmp.gt.f32.partialorder %v2746, 0.0
        %vm2767 = vcmp.gt.f32.partialorder %v2749, 0.0
        %v2768 = vmul.f32 %v2690, 0.01
        %v2769 = vmul.f32 %v2693, 0.01
        %v2770 = vmul.f32 %v2698, 0.01
        %v2771 = vmul.f32 %v2701, 0.01
        %v2772 = vmul.f32 %v2706, 0.01
        %v2773 = vmul.f32 %v2709, 0.01
        %v2774 = vmul.f32 %v2714, 0.01
        %v2775 = vmul.f32 %v2717, 0.01
        %v2776 = vmul.f32 %v2722, 0.01
        %v2777 = vmul.f32 %v2725, 0.01
        %v2778 = vmul.f32 %v2730, 0.01
        %v2779 = vmul.f32 %v2733, 0.01
        %v2780 = vmul.f32 %v2738, 0.01
        %v2781 = vmul.f32 %v2741, 0.01
        %v2782 = vmul.f32 %v2746, 0.01
        %v2783 = vmul.f32 %v2749, 0.01
        %v2784 = vsel %vm2752, %v2690, %v2768
        %v2785 = vsel %vm2753, %v2693, %v2769
        %v2786 = vsel %vm2754, %v2698, %v2770
        %v2787 = vsel %vm2755, %v2701, %v2771
        %v2788 = vsel %vm2756, %v2706, %v2772
        %v2789 = vsel %vm2757, %v2709, %v2773
        %v2790 = vsel %vm2758, %v2714, %v2774
        %v2791 = vsel %vm2759, %v2717, %v2775
        %v2792 = vsel %vm2760, %v2722, %v2776
        %v2793 = vsel %vm2761, %v2725, %v2777
        %v2794 = vsel %vm2762, %v2730, %v2778
        %v2795 = vsel %vm2763, %v2733, %v2779
        %v2796 = vsel %vm2764, %v2738, %v2780
        %v2797 = vsel %vm2765, %v2741, %v2781
        %v2798 = vsel %vm2766, %v2746, %v2782
        %v2799 = vsel %vm2767, %v2749, %v2783
        %v2800 = vld [vmem:[%s18] sm:$0xf]
        %v2801 = vld [vmem:[%s18 + $0x4] sm:$0xf]
        %v2802 = vld [vmem:[%s18 + $0x8] sm:$0xf]
        %v2803 = vld [vmem:[%s18 + $0xc] sm:$0xf]
        %v2804 = vld [vmem:[%s18 + $0x10] sm:$0xf]
        %v2805 = vld [vmem:[%s18 + $0x14] sm:$0xf]
        %v2806 = vld [vmem:[%s18 + $0x18] sm:$0xf]
        %v2807 = vld [vmem:[%s18 + $0x1c] sm:$0xf]
        %v2808 = vld [vmem:[%s18 + $0x20] sm:$0xf]
        %v2809 = vld [vmem:[%s18 + $0x24] sm:$0xf]
        %v2810 = vld [vmem:[%s18 + $0x28] sm:$0xf]
        %v2811 = vld [vmem:[%s18 + $0x2c] sm:$0xf]
        %v2812 = vld [vmem:[%s18 + $0x30] sm:$0xf]
        %v2813 = vld [vmem:[%s18 + $0x34] sm:$0xf]
        %v2814 = vld [vmem:[%s18 + $0x38] sm:$0xf]
        %v2815 = vld [vmem:[%s18 + $0x3c] sm:$0xf]
        %v2816 = vld [vmem:[%s19] sm:$0x1]
        %v2817 = vpack.c.bf16 %v2785, %v2784
        %v2818 = vpack.c.bf16 %v2787, %v2786
        %v2819 = vpack.c.bf16 %v2789, %v2788
        %v2820 = vpack.c.bf16 %v2791, %v2790
        %v2821 = vpack.c.bf16 %v2793, %v2792
        %v2822 = vpack.c.bf16 %v2795, %v2794
        %v2823 = vpack.c.bf16 %v2797, %v2796
        %v2824 = vpack.c.bf16 %v2799, %v2798
        %v2826 = vlaneseq
        %v2827 = vshrl.u32 %v2826, 7
        %v2828 = vsub.s32 0, %v2827
        %v2829 = vrot.slane %v2816, %v2828
        %v2847 = vunpack.c.l.b16 %v2800
        %v2848 = vunpack.c.l.b16 %v2801
        %v2849 = vunpack.c.l.b16 %v2802
        %v2850 = vunpack.c.l.b16 %v2803
        %v2851 = vunpack.c.l.b16 %v2804
        %v2852 = vunpack.c.l.b16 %v2805
        %v2853 = vunpack.c.l.b16 %v2806
        %v2854 = vunpack.c.l.b16 %v2807
        %v2855 = vunpack.c.l.b16 %v2808
        %v2856 = vunpack.c.l.b16 %v2809
        %v2857 = vunpack.c.l.b16 %v2810
        %v2858 = vunpack.c.l.b16 %v2811
        %v2859 = vunpack.c.l.b16 %v2812
        %v2860 = vunpack.c.l.b16 %v2813
        %v2861 = vunpack.c.l.b16 %v2814
        %v2862 = vunpack.c.l.b16 %v2815
        %v2863 = vpack.c.b16 %v2848, %v2847
        %v2864 = vpack.c.b16 %v2850, %v2849
        %v2865 = vpack.c.b16 %v2852, %v2851
        %v2866 = vpack.c.b16 %v2854, %v2853
        %v2867 = vpack.c.b16 %v2856, %v2855
        %v2868 = vpack.c.b16 %v2858, %v2857
        %v2869 = vpack.c.b16 %v2860, %v2859
        %v2870 = vpack.c.b16 %v2862, %v2861
        %2879 = vmatprep.subr.bf16.mxu0 0
        %2880 = vmatpush1.bf16.msra.mxu0 %v2863
        %2881 = vmatprep.subr.bf16.mxu0 0
        %2882 = vmatpush1.bf16.msra.mxu0 %v2864
        %2883 = vmatprep.subr.bf16.mxu0 0
        %2884 = vmatpush1.bf16.msra.mxu0 %v2865
        %2885 = vmatprep.subr.bf16.mxu0 0
        %2886 = vmatpush1.bf16.msra.mxu0 %v2866
        %2887 = vmatprep.subr.bf16.mxu0 0
        %2888 = vmatpush1.bf16.msra.mxu0 %v2867
        %2889 = vmatprep.subr.bf16.mxu0 0
        %2890 = vmatpush1.bf16.msra.mxu0 %v2868
        %2891 = vmatprep.subr.bf16.mxu0 0
        %2892 = vmatpush1.bf16.msra.mxu0 %v2869
        %2893 = vmatprep.subr.bf16.mxu0 0
        %2894 = vmatpush1.bf16.msra.mxu0 %v2870
        %2895 = vmatprep.subr.bf16.mxu0 0
        %2896 = vmatpush1.bf16.msra.mxu0 0
        %2897 = vmatprep.subr.bf16.mxu0 0
        %2898 = vmatpush1.bf16.msra.mxu0 0
        %2899 = vmatprep.subr.bf16.mxu0 0
        %2900 = vmatpush1.bf16.msra.mxu0 0
        %2901 = vmatprep.subr.bf16.mxu0 0
        %2902 = vmatpush1.bf16.msra.mxu0 0
        %2903 = vmatprep.subr.bf16.mxu0 0
        %2904 = vmatpush1.bf16.msra.mxu0 0
        %2905 = vmatprep.subr.bf16.mxu0 0
        %2906 = vmatpush1.bf16.msra.mxu0 0
        %2907 = vmatprep.subr.bf16.mxu0 0
        %2908 = vmatpush1.bf16.msra.mxu0 0
        %2909 = vmatprep.subr.bf16.mxu0 0
        %2910 = vmatpush1.bf16.msra.mxu0 0
        %2911 = vmatprep.mubr.bf16.mxu0 0
        %2912 = vmatmul.mubr.bf16.gmra.mrb[0].mxu0 %v2817
        %v2913 = vpop.f32.mrb[0].mxu0
        %v2914 = vadd.f32 %v2829, %v2913
        %v2915 = vpop.f32.mrb[0].mxu0
        %v2916 = vpop.f32.mrb[0].mxu0
        %v2917 = vadd.f32 %v2829, %v2916
        %v2918 = vpop.f32.mrb[0].mxu0
        %2919 = vmatprep.mubr.bf16.mxu0 0
        %2920 = vmatmul.mubr.bf16.gmra.mrb[0].mxu0 %v2818
        %v2921 = vpop.f32.mrb[0].mxu0
        %v2922 = vadd.f32 %v2829, %v2921
        %v2923 = vpop.f32.mrb[0].mxu0
        %v2924 = vpop.f32.mrb[0].mxu0
        %v2925 = vadd.f32 %v2829, %v2924
        %v2926 = vpop.f32.mrb[0].mxu0
        %2927 = vmatprep.mubr.bf16.mxu0 0
        %2928 = vmatmul.mubr.bf16.gmra.mrb[0].mxu0 %v2819
        %v2929 = vpop.f32.mrb[0].mxu0
        %v2930 = vadd.f32 %v2829, %v2929
        %v2931 = vpop.f32.mrb[0].mxu0
        %v2932 = vpop.f32.mrb[0].mxu0
        %v2933 = vadd.f32 %v2829, %v2932
        %v2934 = vpop.f32.mrb[0].mxu0
        %2935 = vmatprep.mubr.bf16.mxu0 0
        %2936 = vmatmul.mubr.bf16.gmra.mrb[0].mxu0 %v2820
        %v2937 = vpop.f32.mrb[0].mxu0
        %v2938 = vadd.f32 %v2829, %v2937
        %v2939 = vpop.f32.mrb[0].mxu0
        %v2940 = vpop.f32.mrb[0].mxu0
        %v2941 = vadd.f32 %v2829, %v2940
        %v2942 = vpop.f32.mrb[0].mxu0
        %2943 = vmatprep.mubr.bf16.mxu0 0
        %2944 = vmatmul.mubr.bf16.gmra.mrb[0].mxu0 %v2821
        %v2945 = vpop.f32.mrb[0].mxu0
        %v2946 = vadd.f32 %v2829, %v2945
        %v2947 = vpop.f32.mrb[0].mxu0
        %v2948 = vpop.f32.mrb[0].mxu0
        %v2949 = vadd.f32 %v2829, %v2948
        %v2950 = vpop.f32.mrb[0].mxu0
        %2951 = vmatprep.mubr.bf16.mxu0 0
        %2952 = vmatmul.mubr.bf16.gmra.mrb[0].mxu0 %v2822
        %v2953 = vpop.f32.mrb[0].mxu0
        %v2954 = vadd.f32 %v2829, %v2953
        %v2955 = vpop.f32.mrb[0].mxu0
        %v2956 = vpop.f32.mrb[0].mxu0
        %v2957 = vadd.f32 %v2829, %v2956
        %v2958 = vpop.f32.mrb[0].mxu0
        %2959 = vmatprep.mubr.bf16.mxu0 0
        %2960 = vmatmul.mubr.bf16.gmra.mrb[0].mxu0 %v2823
        %v2961 = vpop.f32.mrb[0].mxu0
        %v2962 = vadd.f32 %v2829, %v2961
        %v2963 = vpop.f32.mrb[0].mxu0
        %v2964 = vpop.f32.mrb[0].mxu0
        %v2965 = vadd.f32 %v2829, %v2964
        %v2966 = vpop.f32.mrb[0].mxu0
        %2967 = vmatprep.mubr.bf16.mxu0 0
        %2968 = vmatmul.mubr.bf16.gmra.mrb[0].mxu0 %v2824
        %v2969 = vpop.f32.mrb[0].mxu0
        %v2970 = vadd.f32 %v2829, %v2969
        %v2971 = vpop.f32.mrb[0].mxu0
        %v2972 = vpop.f32.mrb[0].mxu0
        %v2973 = vadd.f32 %v2829, %v2972
        %v2974 = vpop.f32.mrb[0].mxu0
        %2975 = vdwg.mxu0
        %vm2976 = vcmp.gt.f32.partialorder %v2914, 0.0
        %vm2977 = vcmp.gt.f32.partialorder %v2917, 0.0
        %vm2978 = vcmp.gt.f32.partialorder %v2922, 0.0
        %vm2979 = vcmp.gt.f32.partialorder %v2925, 0.0
        %vm2980 = vcmp.gt.f32.partialorder %v2930, 0.0
        %vm2981 = vcmp.gt.f32.partialorder %v2933, 0.0
        %vm2982 = vcmp.gt.f32.partialorder %v2938, 0.0
        %vm2983 = vcmp.gt.f32.partialorder %v2941, 0.0
        %vm2984 = vcmp.gt.f32.partialorder %v2946, 0.0
        %vm2985 = vcmp.gt.f32.partialorder %v2949, 0.0
        %vm2986 = vcmp.gt.f32.partialorder %v2954, 0.0
        %vm2987 = vcmp.gt.f32.partialorder %v2957, 0.0
        %vm2988 = vcmp.gt.f32.partialorder %v2962, 0.0
        %vm2989 = vcmp.gt.f32.partialorder %v2965, 0.0
        %vm2990 = vcmp.gt.f32.partialorder %v2970, 0.0
        %vm2991 = vcmp.gt.f32.partialorder %v2973, 0.0
        %v2992 = vmul.f32 %v2914, 0.01
        %v2993 = vmul.f32 %v2917, 0.01
        %v2994 = vmul.f32 %v2922, 0.01
        %v2995 = vmul.f32 %v2925, 0.01
        %v2996 = vmul.f32 %v2930, 0.01
        %v2997 = vmul.f32 %v2933, 0.01
        %v2998 = vmul.f32 %v2938, 0.01
        %v2999 = vmul.f32 %v2941, 0.01
        %v3000 = vmul.f32 %v2946, 0.01
        %v3001 = vmul.f32 %v2949, 0.01
        %v3002 = vmul.f32 %v2954, 0.01
        %v3003 = vmul.f32 %v2957, 0.01
        %v3004 = vmul.f32 %v2962, 0.01
        %v3005 = vmul.f32 %v2965, 0.01
        %v3006 = vmul.f32 %v2970, 0.01
        %v3007 = vmul.f32 %v2973, 0.01
        %v3008 = vsel %vm2976, %v2914, %v2992
        %v3009 = vsel %vm2977, %v2917, %v2993
        %v3010 = vsel %vm2978, %v2922, %v2994
        %v3011 = vsel %vm2979, %v2925, %v2995
        %v3012 = vsel %vm2980, %v2930, %v2996
        %v3013 = vsel %vm2981, %v2933, %v2997
        %v3014 = vsel %vm2982, %v2938, %v2998
        %v3015 = vsel %vm2983, %v2941, %v2999
        %v3016 = vsel %vm2984, %v2946, %v3000
        %v3017 = vsel %vm2985, %v2949, %v3001
        %v3018 = vsel %vm2986, %v2954, %v3002
        %v3019 = vsel %vm2987, %v2957, %v3003
        %v3020 = vsel %vm2988, %v2962, %v3004
        %v3021 = vsel %vm2989, %v2965, %v3005
        %v3022 = vsel %vm2990, %v2970, %v3006
        %v3023 = vsel %vm2991, %v2973, %v3007
        %v3024 = vld [vmem:[#allocation25] sm:$0xf]
        %v3025 = vld [vmem:[#allocation25 + $0x4] sm:$0xf]
        %v3026 = vld [vmem:[#allocation25 + $0x8] sm:$0xf]
        %v3027 = vld [vmem:[#allocation25 + $0xc] sm:$0xf]
        %v3028 = vld [vmem:[#allocation25 + $0x10] sm:$0xf]
        %v3029 = vld [vmem:[#allocation25 + $0x14] sm:$0xf]
        %v3030 = vld [vmem:[#allocation25 + $0x18] sm:$0xf]
        %v3031 = vld [vmem:[#allocation25 + $0x1c] sm:$0xf]
        %v3032 = vld [vmem:[#allocation25 + $0x20] sm:$0xf]
        %v3033 = vld [vmem:[#allocation25 + $0x24] sm:$0xf]
        %v3034 = vld [vmem:[#allocation25 + $0x28] sm:$0xf]
        %v3035 = vld [vmem:[#allocation25 + $0x2c] sm:$0xf]
        %v3036 = vld [vmem:[#allocation25 + $0x30] sm:$0xf]
        %v3037 = vld [vmem:[#allocation25 + $0x34] sm:$0xf]
        %v3038 = vld [vmem:[#allocation25 + $0x38] sm:$0xf]
        %v3039 = vld [vmem:[#allocation25 + $0x3c] sm:$0xf]
        %v3040 = vld [vmem:[%s21] sm:$0x1]
        %v3041 = vpack.c.bf16 %v3009, %v3008
        %v3042 = vpack.c.bf16 %v3011, %v3010
        %v3043 = vpack.c.bf16 %v3013, %v3012
        %v3044 = vpack.c.bf16 %v3015, %v3014
        %v3045 = vpack.c.bf16 %v3017, %v3016
        %v3046 = vpack.c.bf16 %v3019, %v3018
        %v3047 = vpack.c.bf16 %v3021, %v3020
        %v3048 = vpack.c.bf16 %v3023, %v3022
        %v3050 = vlaneseq
        %v3051 = vshrl.u32 %v3050, 7
        %v3052 = vsub.s32 0, %v3051
        %v3053 = vrot.slane %v3040, %v3052
        %v3071 = vunpack.c.l.b16 %v3024
        %v3072 = vunpack.c.l.b16 %v3025
        %v3073 = vunpack.c.l.b16 %v3026
        %v3074 = vunpack.c.l.b16 %v3027
        %v3075 = vunpack.c.l.b16 %v3028
        %v3076 = vunpack.c.l.b16 %v3029
        %v3077 = vunpack.c.l.b16 %v3030
        %v3078 = vunpack.c.l.b16 %v3031
        %v3079 = vunpack.c.l.b16 %v3032
        %v3080 = vunpack.c.l.b16 %v3033
        %v3081 = vunpack.c.l.b16 %v3034
        %v3082 = vunpack.c.l.b16 %v3035
        %v3083 = vunpack.c.l.b16 %v3036
        %v3084 = vunpack.c.l.b16 %v3037
        %v3085 = vunpack.c.l.b16 %v3038
        %v3086 = vunpack.c.l.b16 %v3039
        %v3087 = vpack.c.b16 %v3072, %v3071
        %v3088 = vpack.c.b16 %v3074, %v3073
        %v3089 = vpack.c.b16 %v3076, %v3075
        %v3090 = vpack.c.b16 %v3078, %v3077
        %v3091 = vpack.c.b16 %v3080, %v3079
        %v3092 = vpack.c.b16 %v3082, %v3081
        %v3093 = vpack.c.b16 %v3084, %v3083
        %v3094 = vpack.c.b16 %v3086, %v3085
        %3103 = vmatprep.subr.bf16.mxu0 0
        %3104 = vmatpush1.bf16.msra.mxu0 %v3087
        %3105 = vmatprep.subr.bf16.mxu0 0
        %3106 = vmatpush1.bf16.msra.mxu0 %v3088
        %3107 = vmatprep.subr.bf16.mxu0 0
        %3108 = vmatpush1.bf16.msra.mxu0 %v3089
        %3109 = vmatprep.subr.bf16.mxu0 0
        %3110 = vmatpush1.bf16.msra.mxu0 %v3090
        %3111 = vmatprep.subr.bf16.mxu0 0
        %3112 = vmatpush1.bf16.msra.mxu0 %v3091
        %3113 = vmatprep.subr.bf16.mxu0 0
        %3114 = vmatpush1.bf16.msra.mxu0 %v3092
        %3115 = vmatprep.subr.bf16.mxu0 0
        %3116 = vmatpush1.bf16.msra.mxu0 %v3093
        %3117 = vmatprep.subr.bf16.mxu0 0
        %3118 = vmatpush1.bf16.msra.mxu0 %v3094
        %3119 = vmatprep.subr.bf16.mxu0 0
        %3120 = vmatpush1.bf16.msra.mxu0 0
        %3121 = vmatprep.subr.bf16.mxu0 0
        %3122 = vmatpush1.bf16.msra.mxu0 0
        %3123 = vmatprep.subr.bf16.mxu0 0
        %3124 = vmatpush1.bf16.msra.mxu0 0
        %3125 = vmatprep.subr.bf16.mxu0 0
        %3126 = vmatpush1.bf16.msra.mxu0 0
        %3127 = vmatprep.subr.bf16.mxu0 0
        %3128 = vmatpush1.bf16.msra.mxu0 0
        %3129 = vmatprep.subr.bf16.mxu0 0
        %3130 = vmatpush1.bf16.msra.mxu0 0
        %3131 = vmatprep.subr.bf16.mxu0 0
        %3132 = vmatpush1.bf16.msra.mxu0 0
        %3133 = vmatprep.subr.bf16.mxu0 0
        %3134 = vmatpush1.bf16.msra.mxu0 0
        %3135 = vmatprep.mubr.bf16.mxu0 0
        %3136 = vmatmul.mubr.bf16.gmra.mrb[0].mxu0 %v3041
        %v3137 = vpop.f32.mrb[0].mxu0
        %v3138 = vadd.f32 %v3053, %v3137
        %v3139 = vpop.f32.mrb[0].mxu0
        %v3140 = vpop.f32.mrb[0].mxu0
        %v3141 = vadd.f32 %v3053, %v3140
        %v3142 = vpop.f32.mrb[0].mxu0
        %3143 = vmatprep.mubr.bf16.mxu0 0
        %3144 = vmatmul.mubr.bf16.gmra.mrb[0].mxu0 %v3042
        %v3145 = vpop.f32.mrb[0].mxu0
        %v3146 = vadd.f32 %v3053, %v3145
        %v3147 = vpop.f32.mrb[0].mxu0
        %v3148 = vpop.f32.mrb[0].mxu0
        %v3149 = vadd.f32 %v3053, %v3148
        %v3150 = vpop.f32.mrb[0].mxu0
        %3151 = vmatprep.mubr.bf16.mxu0 0
        %3152 = vmatmul.mubr.bf16.gmra.mrb[0].mxu0 %v3043
        %v3153 = vpop.f32.mrb[0].mxu0
        %v3154 = vadd.f32 %v3053, %v3153
        %v3155 = vpop.f32.mrb[0].mxu0
        %v3156 = vpop.f32.mrb[0].mxu0
        %v3157 = vadd.f32 %v3053, %v3156
        %v3158 = vpop.f32.mrb[0].mxu0
        %3159 = vmatprep.mubr.bf16.mxu0 0
        %3160 = vmatmul.mubr.bf16.gmra.mrb[0].mxu0 %v3044
        %v3161 = vpop.f32.mrb[0].mxu0
        %v3162 = vadd.f32 %v3053, %v3161
        %v3163 = vpop.f32.mrb[0].mxu0
        %v3164 = vpop.f32.mrb[0].mxu0
        %v3165 = vadd.f32 %v3053, %v3164
        %v3166 = vpop.f32.mrb[0].mxu0
        %3167 = vmatprep.mubr.bf16.mxu0 0
        %3168 = vmatmul.mubr.bf16.gmra.mrb[0].mxu0 %v3045
        %v3169 = vpop.f32.mrb[0].mxu0
        %v3170 = vadd.f32 %v3053, %v3169
        %v3171 = vpop.f32.mrb[0].mxu0
        %v3172 = vpop.f32.mrb[0].mxu0
        %v3173 = vadd.f32 %v3053, %v3172
        %v3174 = vpop.f32.mrb[0].mxu0
        %3175 = vmatprep.mubr.bf16.mxu0 0
        %3176 = vmatmul.mubr.bf16.gmra.mrb[0].mxu0 %v3046
        %v3177 = vpop.f32.mrb[0].mxu0
        %v3178 = vadd.f32 %v3053, %v3177
        %v3179 = vpop.f32.mrb[0].mxu0
        %v3180 = vpop.f32.mrb[0].mxu0
        %v3181 = vadd.f32 %v3053, %v3180
        %v3182 = vpop.f32.mrb[0].mxu0
        %3183 = vmatprep.mubr.bf16.mxu0 0
        %3184 = vmatmul.mubr.bf16.gmra.mrb[0].mxu0 %v3047
        %v3185 = vpop.f32.mrb[0].mxu0
        %v3186 = vadd.f32 %v3053, %v3185
        %v3187 = vpop.f32.mrb[0].mxu0
        %v3188 = vpop.f32.mrb[0].mxu0
        %v3189 = vadd.f32 %v3053, %v3188
        %v3190 = vpop.f32.mrb[0].mxu0
        %3191 = vmatprep.mubr.bf16.mxu0 0
        %3192 = vmatmul.mubr.bf16.gmra.mrb[0].mxu0 %v3048
        %v3193 = vpop.f32.mrb[0].mxu0
        %v3194 = vadd.f32 %v3053, %v3193
        %v3195 = vpop.f32.mrb[0].mxu0
        %v3196 = vpop.f32.mrb[0].mxu0
        %v3197 = vadd.f32 %v3053, %v3196
        %v3198 = vpop.f32.mrb[0].mxu0
        %3199 = vdwg.mxu0
        %3200 = vst [vmem:[%s979] sm:$0xff] %v3138
        %3201 = vst [vmem:[%s979 + $0x8] sm:$0xff] %v3141
        %3202 = vst [vmem:[%s979 + $0x10] sm:$0xff] %v3146
        %3203 = vst [vmem:[%s979 + $0x18] sm:$0xff] %v3149
        %3204 = vst [vmem:[%s979 + $0x20] sm:$0xff] %v3154
        %3205 = vst [vmem:[%s979 + $0x28] sm:$0xff] %v3157
        %3206 = vst [vmem:[%s979 + $0x30] sm:$0xff] %v3162
        %3207 = vst [vmem:[%s979 + $0x38] sm:$0xff] %v3165
        %3208 = vst [vmem:[%s979 + $0x40] sm:$0xff] %v3170
        %3209 = vst [vmem:[%s979 + $0x48] sm:$0xff] %v3173
        %3210 = vst [vmem:[%s979 + $0x50] sm:$0xff] %v3178
        %3211 = vst [vmem:[%s979 + $0x58] sm:$0xff] %v3181
        %3212 = vst [vmem:[%s979 + $0x60] sm:$0xff] %v3186
        %3213 = vst [vmem:[%s979 + $0x68] sm:$0xff] %v3189
        %3214 = vst [vmem:[%s979 + $0x70] sm:$0xff] %v3194
        %3215 = vst [vmem:[%s979 + $0x78] sm:$0xff] %v3197
        %3216 = vst [vmem:[%s986] sm:$0xff] %v2026
        %3217 = vst [vmem:[%s986 + $0x8] sm:$0xff] %v2029
        %3218 = vst [vmem:[%s986 + $0x10] sm:$0xff] %v2034
        %3219 = vst [vmem:[%s986 + $0x18] sm:$0xff] %v2037
        %3220 = vst [vmem:[%s986 + $0x20] sm:$0xff] %v2042
        %3221 = vst [vmem:[%s986 + $0x28] sm:$0xff] %v2045
        %3222 = vst [vmem:[%s986 + $0x30] sm:$0xff] %v2050
        %3223 = vst [vmem:[%s986 + $0x38] sm:$0xff] %v2053
        %3224 = vst [vmem:[%s986 + $0x40] sm:$0xff] %v2058
        %3225 = vst [vmem:[%s986 + $0x48] sm:$0xff] %v2061
        %3226 = vst [vmem:[%s986 + $0x50] sm:$0xff] %v2066
        %3227 = vst [vmem:[%s986 + $0x58] sm:$0xff] %v2069
        %3228 = vst [vmem:[%s986 + $0x60] sm:$0xff] %v2074
        %3229 = vst [vmem:[%s986 + $0x68] sm:$0xff] %v2077
        %3230 = vst [vmem:[%s986 + $0x70] sm:$0xff] %v2082
        %3231 = vst [vmem:[%s986 + $0x78] sm:$0xff] %v2085
        %3232 = vst [vmem:[%s993] sm:$0xff] %v2194
        %3233 = vst [vmem:[%s993 + $0x8] sm:$0xff] %v2197
        %3234 = vst [vmem:[%s993 + $0x10] sm:$0xff] %v2202
        %3235 = vst [vmem:[%s993 + $0x18] sm:$0xff] %v2205
        %3236 = vst [vmem:[%s993 + $0x20] sm:$0xff] %v2210
        %3237 = vst [vmem:[%s993 + $0x28] sm:$0xff] %v2213
        %3238 = vst [vmem:[%s993 + $0x30] sm:$0xff] %v2218
        %3239 = vst [vmem:[%s993 + $0x38] sm:$0xff] %v2221
        %3240 = vst [vmem:[%s993 + $0x40] sm:$0xff] %v2226
        %3241 = vst [vmem:[%s993 + $0x48] sm:$0xff] %v2229
        %3242 = vst [vmem:[%s993 + $0x50] sm:$0xff] %v2234
        %3243 = vst [vmem:[%s993 + $0x58] sm:$0xff] %v2237
        %3244 = vst [vmem:[%s993 + $0x60] sm:$0xff] %v2242
        %3245 = vst [vmem:[%s993 + $0x68] sm:$0xff] %v2245
        %3246 = vst [vmem:[%s993 + $0x70] sm:$0xff] %v2250
        %3247 = vst [vmem:[%s993 + $0x78] sm:$0xff] %v2253
        %s3248 = sand.u32 %s534, 1
        %s3249 = scalar_lea.sflag [#allocation4], %s3248
        %s3250 = sand.u32 %s534, 1
        %s3251 = smul.addr %s3250, 128
        %s3252 = scalar_lea.vmem [#allocation26], %s3251
        %s3253 = sand.u32 %s54, 1
        %s3254 = scalar_lea.sflag [#allocation28], %s3253
        %s3255 = sand.u32 %s560, 1
        %s3256 = smul.addr %s3255, 128
        %s3257 = scalar_lea.vmem [#allocation27], %s3256
        %s3258 = sand.u32 %s54, 1
        %s3259 = scalar_lea.sflag [#allocation28], %s3258
        %s3260 = sand.u32 %s586, 1
        %s3261 = smul.addr %s3260, 128
        %s3262 = scalar_lea.vmem [#allocation29], %s3261
        // Predicated region
        $region169: #{tpu_custom_call.1} parent=107 // pred_check
          %p3263 = pneg %p544
        $region170: #{tpu_custom_call.1} parent=107 // pred_check_branch
          %3265 = sbr.rel (%p3263) target = $region172
        $region171: #{tpu_custom_call.1} parent=107 // pred_region
          %s3266 = smul.u32 16, %s54
          %s3268 = ssub.s32 2048, 2048
          %3269 = vsyncadd %s3249, %s3268
          %s3270 = smul.addr %s3266, 128
          %s3271 = scalar_lea.hbm %s22, %s3270
          %s3272 = sshll.u32 %s3252, 4
          %s3273 = int_to_ptr.vmem [resolvable:$true] %s3272
          %3278 = dma.vmem_to_hbm [thread:$0]  %s3273, 2048, %s3271, %s3249, 128, 128, 8
        $region172: #{tpu_custom_call.1} parent=107 // pred_fallthru
          _
        // Predicated region
        $region173: #{tpu_custom_call.1} parent=107 // pred_check
          %p3279 = pneg %p570
        $region174: #{tpu_custom_call.1} parent=107 // pred_check_branch
          %3281 = sbr.rel (%p3279) target = $region176
        $region175: #{tpu_custom_call.1} parent=107 // pred_region
          %s3282 = smul.u32 16, %s54
          %s3284 = ssub.s32 2048, 2048
          %3285 = vsyncadd %s3254, %s3284
          %s3286 = smul.addr %s3282, 128
          %s3287 = scalar_lea.hbm %s23, %s3286
          %s3288 = sshll.u32 %s3257, 4
          %s3289 = int_to_ptr.vmem [resolvable:$true] %s3288
          %3294 = dma.vmem_to_hbm [thread:$0]  %s3289, 2048, %s3287, %s3254, 128, 128, 8
        $region176: #{tpu_custom_call.1} parent=107 // pred_fallthru
          _
        // Predicated region
        $region177: #{tpu_custom_call.1} parent=107 // pred_check
          %p3295 = pneg %p596
        $region178: #{tpu_custom_call.1} parent=107 // pred_check_branch
          %3297 = sbr.rel (%p3295) target = $region180
        $region179: #{tpu_custom_call.1} parent=107 // pred_region
          %s3298 = smul.u32 16, %s54
          %s3300 = ssub.s32 2048, 2048
          %3301 = vsyncadd %s3259, %s3300
          %s3302 = smul.addr %s3298, 128
          %s3303 = scalar_lea.hbm %s24, %s3302
          %s3304 = sshll.u32 %s3262, 4
          %s3305 = int_to_ptr.vmem [resolvable:$true] %s3304
          %3310 = dma.vmem_to_hbm [thread:$0]  %s3305, 2048, %s3303, %s3259, 128, 128, 8
        $region180: #{tpu_custom_call.1} parent=107 // pred_fallthru
          _
      $region108: #{tpu_custom_call.1} parent=5 // pred_fallthru
        _
      %p3311 = scmp.le.s32.totalorder 2, %s49
      // Predicated region
      $region181: #{tpu_custom_call.1} parent=5 // pred_check
        %p3312 = pneg %p3311
      $region182: #{tpu_custom_call.1} parent=5 // pred_check_branch
        %3314 = sbr.rel (%p3312) target = $region184
      $region183: #{tpu_custom_call.1} parent=5 // pred_region
        %s3315 = ssub.s32 %s49, 2
        // Predicated region
        $region185: #{tpu_custom_call.1} parent=183 // pred_check
          %p3316 = pneg %p550
        $region186: #{tpu_custom_call.1} parent=183 // pred_check_branch
          %3318 = sbr.rel (%p3316) target = $region188
        $region187: #{tpu_custom_call.1} parent=183 // pred_region
          %s3319 = sand.u32 %s535, 1
          %s3320 = scalar_lea.sflag [#allocation4], %s3319
          %s3321 = sand.u32 %s535, 1
          %s3322 = smul.addr %s3321, 128
          %s3323 = scalar_lea.vmem [#allocation26], %s3322
          %3324 = dma.done %s3320, 2048
        $region188: #{tpu_custom_call.1} parent=183 // pred_fallthru
          _
        // Predicated region
        $region189: #{tpu_custom_call.1} parent=183 // pred_check
          %p3325 = pneg %p576
        $region190: #{tpu_custom_call.1} parent=183 // pred_check_branch
          %3327 = sbr.rel (%p3325) target = $region192
        $region191: #{tpu_custom_call.1} parent=183 // pred_region
          %s3328 = sand.u32 %s55, 1
          %s3329 = scalar_lea.sflag [#allocation28], %s3328
          %s3330 = sand.u32 %s561, 1
          %s3331 = smul.addr %s3330, 128
          %s3332 = scalar_lea.vmem [#allocation27], %s3331
          %3333 = dma.done %s3329, 2048
        $region192: #{tpu_custom_call.1} parent=183 // pred_fallthru
          _
        // Predicated region
        $region193: #{tpu_custom_call.1} parent=183 // pred_check
          %p3334 = pneg %p602
        $region194: #{tpu_custom_call.1} parent=183 // pred_check_branch
          %3336 = sbr.rel (%p3334) target = $region196
        $region195: #{tpu_custom_call.1} parent=183 // pred_region
          %s3337 = sand.u32 %s55, 1
          %s3338 = scalar_lea.sflag [#allocation28], %s3337
          %s3339 = sand.u32 %s587, 1
          %s3340 = smul.addr %s3339, 128
          %s3341 = scalar_lea.vmem [#allocation29], %s3340
          %3342 = dma.done %s3338, 2048
        $region196: #{tpu_custom_call.1} parent=183 // pred_fallthru
          _
      $region184: #{tpu_custom_call.1} parent=5 // pred_fallthru
        _
    $region6: #{tpu_custom_call.1} parent=1 // loop_footer
      %s53 = sadd.s32 1, %s49
    $region7: #{tpu_custom_call.1} parent=1 // loop_footer_branch
      %48 = sbr.rel target = $region3
    $region8: #{tpu_custom_call.1} parent=1 // loop_exit
      _
    %3343 = vsyncpa [#allocation3], 1
    %s3344 = scalar_lea.sflag [#allocation3], 1
    %3345 = vsyncpa %s3344, 1
    %3346 = vsyncpa [#allocation6], 1
    %s3347 = scalar_lea.sflag [#allocation6], 1
    %3348 = vsyncpa %s3347, 1
    %3349 = vsyncpa [#allocation9], 1
    %3350 = vsyncpa [#allocation12], 1
    %3351 = vsyncpa [#allocation15], 1
    %3352 = vsyncpa [#allocation18], 1
    %3353 = vsyncpa [#allocation21], 1
    %3354 = vsyncpa [#allocation24], 1
    %3355 = vsyncpa [#allocation4], 1
    %s3356 = scalar_lea.sflag [#allocation4], 1
    %3357 = vsyncpa %s3356, 1
    %3358 = vsyncpa [#allocation28], 1
    %s3359 = scalar_lea.sflag [#allocation28], 1
    %3360 = vsyncpa %s3359, 1

</llo_original>
